<compile_context>
chip_gen: v6e
topology: v6e:2x2x1
jax: 0.10.0
libtpu: 0.0.40
codegen_flags: <defaults>
</compile_context>

<pallas_src>
import functools

import jax
import jax.numpy as jnp
import numpy as np
from jax import lax
from jax.experimental import pallas as pl
from jax.experimental.pallas import tpu as pltpu

BN_EPS = 1e-5
VMEM_LIMIT_BYTES = 32 * 1024 * 1024   # explicit; safe on v5e/v6e (128 MiB) and v7x (64 MiB)


def _mosaic_params():
    return pltpu.CompilerParams(
        dimension_semantics=("parallel",),       # batch tiles -> both v7x TensorCores
        vmem_limit_bytes=VMEM_LIMIT_BYTES)


# ----------------------------- in-kernel helpers -----------------------------

def _band_conv(x_bf16, s_ref, m_ref, bias_row):
    """Banded conv:  sum_dy (S[dy] @ x) @ M[dy] + bias   (f32 accumulation).

    x_bf16   : [h_in, w_in*c_in]               bf16 activations (rows=H, lanes=W*C)
    s_ref    : [k_h, h_out, h_in]               bf16 0/1 row selection (H pad/stride)
    m_ref    : [k_h, w_in*c_in, w_out*c_out]    bf16 block-banded weights (W pad/stride)
    bias_row : [1, w_out*c_out]                 f32
    """
    k_h, h_out, _ = s_ref.shape
    wc_out = m_ref.shape[2]
    acc = jnp.zeros((h_out, wc_out), jnp.float32)
    for dy in range(k_h):                               # static unroll (3 or 4 taps)
        rows = jnp.dot(s_ref[dy], x_bf16, preferred_element_type=jnp.float32)
        acc = acc + jnp.dot(rows.astype(jnp.bfloat16), m_ref[dy],
                            preferred_element_type=jnp.float32)
    return acc + bias_row


def _partial_stats(y):
    """Per-lane partial [sum ; sum of squares] over this tile's rows -> [2, lanes]."""
    return jnp.concatenate(
        [jnp.sum(y, axis=0, keepdims=True),
         jnp.sum(y * y, axis=0, keepdims=True)], axis=0)


# -------------------------------- kernels ------------------------------------

def _conv1_kernel(x_ref, s_ref, m_ref, b_ref, y_ref, st_ref):
    # y1 = relu(conv1(x) + b1), plus BN partial stats for this image.
    y = jnp.maximum(_band_conv(x_ref[0], s_ref, m_ref, b_ref[...]), 0.0)
    y_ref[0] = y.astype(y_ref.dtype)
    st_ref[0] = _partial_stats(y)


def _bn1_tmlp_conv2_kernel(y1_ref, sc_ref, sh_ref, t_ref, wt_ref, bt_ref,
                           s_ref, m_ref, b_ref, y2_ref, st_ref):
    # h1 = BN1(y1) + relu(Linear(t))   (time MLP fused; weights pre-tiled to W*C lanes)
    te = jnp.maximum(
        jnp.dot(t_ref[0], wt_ref[...], preferred_element_type=jnp.float32)
        + bt_ref[...], 0.0)                              # [1, W*C]
    h1 = y1_ref[0].astype(jnp.float32) * sc_ref[...] + sh_ref[...] + te
    # y2 = relu(conv2(h1) + b2), plus BN partial stats.
    y = jnp.maximum(_band_conv(h1.astype(jnp.bfloat16), s_ref, m_ref, b_ref[...]), 0.0)
    y2_ref[0] = y.astype(y2_ref.dtype)
    st_ref[0] = _partial_stats(y)


def _bn2_transform_kernel(y2_ref, sc_ref, sh_ref, s_ref, m_ref, b_ref, o_ref):
    # out = Conv2d(Cout, Cout, 4, stride=2, pad=1)(BN2(y2)) + bT
    h2 = y2_ref[0].astype(jnp.float32) * sc_ref[...] + sh_ref[...]
    o_ref[0] = _band_conv(h2.astype(jnp.bfloat16), s_ref, m_ref,
                          b_ref[...]).astype(o_ref.dtype)


# ------------------------------- JAX glue -------------------------------------

def _row_select(k_h, h_in, h_out, stride, pad):
    """0/1 selection matrices handling conv pad/stride along H: S[dy] @ x."""
    s = np.zeros((k_h, h_out, h_in), np.float32)
    for dy in range(k_h):
        for ho in range(h_out):
            hi = ho * stride + dy - pad
            if 0 <= hi < h_in:
                s[dy, ho, hi] = 1.0
    return jnp.asarray(s, dtype=jnp.bfloat16)


def _band_weights(w_hwio, w_in, w_out, stride, pad):
    """Block-banded weight matrices M[dy] in the flattened (W*C) layout."""
    k_h, k_w, c_in, c_out = w_hwio.shape
    sel = np.zeros((k_w, w_in, w_out), np.float32)
    for dx in range(k_w):
        for wo in range(w_out):
            wi = wo * stride + dx - pad
            if 0 <= wi < w_in:
                sel[dx, wi, wo] = 1.0
    m = jnp.einsum("xab,yxio->yaibo", jnp.asarray(sel), w_hwio)
    return m.reshape(k_h, w_in * c_in, w_out * c_out).astype(jnp.bfloat16)


def _bn_scale_shift(stats, gamma, beta, count, w):
    """[N, 2, W*C] partial sums -> per-channel scale/shift tiled back to W*C lanes."""
    c = gamma.shape[-1]
    s = jnp.sum(stats, axis=0).reshape(2, w, c).sum(axis=1)      # [2, C]
    mean = s[0] / count
    var = s[1] / count - mean * mean          # E[y^2] - mean^2, single pass (biased)
    scale = gamma[0] * lax.rsqrt(var + BN_EPS)
    shift = beta[0] - mean * scale
    return jnp.tile(scale, w)[None, :], jnp.tile(shift, w)[None, :]


def block_forward(params, x_nchw, t):
    n, c_in, h, w = x_nchw.shape
    c_out = params["gamma"].shape[-1]
    t_dim = t.shape[-1]
    h_o, w_o = h // 2, w // 2
    wc_in, wc, wc_t = w * c_in, w * c_out, w_o * c_out
    count = float(n * h * w)

    # ---- layout / weight prep (tiny, O(weights*W); no activation expansion) ----
    x2 = jnp.transpose(x_nchw, (0, 2, 3, 1)).reshape(n, h, wc_in).astype(jnp.bfloat16)
    t3 = t.reshape(n, 1, t_dim).astype(jnp.bfloat16)
    s33 = _row_select(3, h, h, 1, 1)                 # shared by conv1 / conv2
    s42 = _row_select(4, h, h_o, 2, 1)               # transform: 4x4, stride 2, pad 1
    m1 = _band_weights(params["w1"], w, w, 1, 1)     # [3, W*Cin,  W*Cout]
    m2 = _band_weights(params["w2"], w, w, 1, 1)     # [3, W*Cout, W*Cout]
    mt = _band_weights(params["wT"], w, w_o, 2, 1)   # [4, W*Cout, Wo*Cout]
    b1w = jnp.tile(params["b1"][0], w)[None, :]
    b2w = jnp.tile(params["b2"][0], w)[None, :]
    btw = jnp.tile(params["bT"][0], w_o)[None, :]
    wtw = jnp.tile(params["wt"], (1, w)).astype(jnp.bfloat16)   # [T, W*Cout]
    btm = jnp.tile(params["bt"][0], w)[None, :]                 # [1, W*Cout]

    # ---- stage 1: conv1 + bias + ReLU, per-image BN partial stats ----
    y1, st1 = pl.pallas_call(
        _conv1_kernel,
        grid=(n,),
        in_specs=[
            pl.BlockSpec((1, h, wc_in), lambda i: (i, 0, 0)),
            pl.BlockSpec((3, h, h), lambda i: (0, 0, 0)),
            pl.BlockSpec((3, wc_in, wc), lambda i: (0, 0, 0)),
            pl.BlockSpec((1, wc), lambda i: (0, 0)),
        ],
        out_specs=(
            pl.BlockSpec((1, h, wc), lambda i: (i, 0, 0)),
            pl.BlockSpec((1, 2, wc), lambda i: (i, 0, 0)),
        ),
        out_shape=(
            jax.ShapeDtypeStruct((n, h, wc), jnp.bfloat16),
            jax.ShapeDtypeStruct((n, 2, wc), jnp.float32),
        ),
        compiler_params=_mosaic_params(),
    )(x2, s33, m1, b1w)

    sc1, sh1 = _bn_scale_shift(st1, params["gamma"], params["beta"], count, w)

    # ---- stage 2: BN1 + fused time-MLP add + conv2 + bias + ReLU + stats ----
    y2, st2 = pl.pallas_call(
        _bn1_tmlp_conv2_kernel,
        grid=(n,),
        in_specs=[
            pl.BlockSpec((1, h, wc), lambda i: (i, 0, 0)),      # y1
            pl.BlockSpec((1, wc), lambda i: (0, 0)),            # BN1 scale
            pl.BlockSpec((1, wc), lambda i: (0, 0)),            # BN1 shift
            pl.BlockSpec((1, 1, t_dim), lambda i: (i, 0, 0)),   # t (per image)
            pl.BlockSpec((t_dim, wc), lambda i: (0, 0)),        # time-MLP W (lane-tiled)
            pl.BlockSpec((1, wc), lambda i: (0, 0)),            # time-MLP b (lane-tiled)
            pl.BlockSpec((3, h, h), lambda i: (0, 0, 0)),       # S rows
            pl.BlockSpec((3, wc, wc), lambda i: (0, 0, 0)),     # M2
            pl.BlockSpec((1, wc), lambda i: (0, 0)),            # b2
        ],
        out_specs=(
            pl.BlockSpec((1, h, wc), lambda i: (i, 0, 0)),
            pl.BlockSpec((1, 2, wc), lambda i: (i, 0, 0)),
        ),
        out_shape=(
            jax.ShapeDtypeStruct((n, h, wc), jnp.bfloat16),
            jax.ShapeDtypeStruct((n, 2, wc), jnp.float32),
        ),
        compiler_params=_mosaic_params(),
    )(y1, sc1, sh1, t3, wtw, btm, s33, m2, b2w)

    sc2, sh2 = _bn_scale_shift(st2, params["gamma"], params["beta"], count, w)

    # ---- stage 3: BN2 + transform Conv2d(Cout, Cout, 4, stride=2, pad=1) ----
    outf = pl.pallas_call(
        _bn2_transform_kernel,
        grid=(n,),
        in_specs=[
            pl.BlockSpec((1, h, wc), lambda i: (i, 0, 0)),
            pl.BlockSpec((1, wc), lambda i: (0, 0)),
            pl.BlockSpec((1, wc), lambda i: (0, 0)),
            pl.BlockSpec((4, h_o, h), lambda i: (0, 0, 0)),
            pl.BlockSpec((4, wc, wc_t), lambda i: (0, 0, 0)),
            pl.BlockSpec((1, wc_t), lambda i: (0, 0)),
        ],
        out_specs=pl.BlockSpec((1, h_o, wc_t), lambda i: (i, 0, 0)),
        out_shape=jax.ShapeDtypeStruct((n, h_o, wc_t), jnp.float32),
        compiler_params=_mosaic_params(),
    )(y2, sc2, sh2, s42, mt, btw)

    out = outf.reshape(n, h_o, w_o, c_out)
    return jnp.transpose(out, (0, 3, 1, 2))          # back to NCHW


# --------------------------- pure-JAX reference ------------------------------

def reference_forward(params, x_nchw, t):
    dn = ("NHWC", "HWIO", "NHWC")
    x = jnp.transpose(x_nchw, (0, 2, 3, 1))

    def bn(v):
        m = jnp.mean(v, axis=(0, 1, 2))
        s = jnp.mean((v - m) ** 2, axis=(0, 1, 2))
        return (v - m) / jnp.sqrt(s + BN_EPS) * params["gamma"][0] + params["beta"][0]

    hx = jax.lax.conv_general_dilated(x, params["w1"], (1, 1), ((1, 1), (1, 1)),
                                      dimension_numbers=dn) + params["b1"][0]
    hx = bn(jax.nn.relu(hx))
    te = jax.nn.relu(t @ params["wt"] + params["bt"][0])
    hx = hx + te[:, None, None, :]
    hx = jax.lax.conv_general_dilated(hx, params["w2"], (1, 1), ((1, 1), (1, 1)),
                                      dimension_numbers=dn) + params["b2"][0]
    hx = bn(jax.nn.relu(hx))
    out = jax.lax.conv_general_dilated(hx, params["wT"], (2, 2), ((1, 1), (1, 1)),
                                       dimension_numbers=dn) + params["bT"][0]
    return jnp.transpose(out, (0, 3, 1, 2))


# ---------------------------------- main -------------------------------------

if __name__ == "__main__":
    N, C_IN, C_OUT, H, W, T_DIM = 2, 4, 8, 16, 16, 32

    key = jax.random.PRNGKey(0)
    ks = jax.random.split(key, 12)
    params = {
        "w1": 0.1 * jax.random.normal(ks[0], (3, 3, C_IN, C_OUT), jnp.float32),
        "b1": 0.1 * jax.random.normal(ks[1], (1, C_OUT), jnp.float32),
        "w2": 0.1 * jax.random.normal(ks[2], (3, 3, C_OUT, C_OUT), jnp.float32),
        "b2": 0.1 * jax.random.normal(ks[3], (1, C_OUT), jnp.float32),
        "wT": 0.1 * jax.random.normal(ks[4], (4, 4, C_OUT, C_OUT), jnp.float32),
        "bT": 0.1 * jax.random.normal(ks[5], (1, C_OUT), jnp.float32),
        "wt": 0.1 * jax.random.normal(ks[6], (T_DIM, C_OUT), jnp.float32),
        "bt": 0.1 * jax.random.normal(ks[7], (1, C_OUT), jnp.float32),
        "gamma": 1.0 + 0.1 * jax.random.normal(ks[8], (1, C_OUT), jnp.float32),
        "beta": 0.1 * jax.random.normal(ks[9], (1, C_OUT), jnp.float32),
    }
    x = jax.random.normal(ks[10], (N, C_IN, H, W), jnp.float32)   # NCHW, like torch
    t = jax.random.normal(ks[11], (N, T_DIM), jnp.float32)

    fwd = jax.jit(functools.partial(block_forward, params))
    out = jax.block_until_ready(fwd(x, t))

    ref = jax.block_until_ready(reference_forward(params, x, t))
    assert out.shape == (N, C_OUT, H // 2, W // 2), out.shape
    # bf16 matmul operands / bf16 inter-stage activation streams (f32 accumulate)
    # -> compare against the f32 reference with bf16-level tolerance.
    np.testing.assert_allclose(np.asarray(out), np.asarray(ref), rtol=2e-2, atol=2e-2)

    print("KERNEL_OK")
</pallas_src>

<mosaic_0001>
module attributes {stable_mosaic.version = 11 : i64} {
  func.func @_bn2_transform_kernel(%arg0: i32, %arg1: memref<1x16x128xbf16, #tpu.memory_space<vmem>>, %arg2: memref<1x128xf32, #tpu.memory_space<vmem>>, %arg3: memref<1x128xf32, #tpu.memory_space<vmem>>, %arg4: memref<4x8x16xbf16, #tpu.memory_space<vmem>>, %arg5: memref<4x128x64xbf16, #tpu.memory_space<vmem>>, %arg6: memref<1x64xf32, #tpu.memory_space<vmem>>, %arg7: memref<1x8x64xf32, #tpu.memory_space<vmem>>) attributes {dimension_semantics = [#tpu.dimension_semantics<parallel>], iteration_bounds = array<i64: 2>, scalar_prefetch = 0 : i64, scratch_operands = 0 : i64, tpu.core_type = #tpu.core_type<tc>, window_params = [{transform_indices = @transform_0, window_bounds = array<i64: 1, 16, 128>}, {pipeline_mode = #tpu.pipeline_mode<synchronous>, transform_indices = @transform_1, window_bounds = array<i64: 1, 128>}, {pipeline_mode = #tpu.pipeline_mode<synchronous>, transform_indices = @transform_2, window_bounds = array<i64: 1, 128>}, {pipeline_mode = #tpu.pipeline_mode<synchronous>, transform_indices = @transform_3, window_bounds = array<i64: 4, 8, 16>}, {pipeline_mode = #tpu.pipeline_mode<synchronous>, transform_indices = @transform_4, window_bounds = array<i64: 4, 128, 64>}, {pipeline_mode = #tpu.pipeline_mode<synchronous>, transform_indices = @transform_5, window_bounds = array<i64: 1, 64>}, {transform_indices = @transform_6, window_bounds = array<i64: 1, 8, 64>}]} {
    %c0 = arith.constant 0 : index
    %c0_0 = arith.constant 0 : index
    %c0_1 = arith.constant 0 : index
    %0 = vector.load %arg1[%c0, %c0_0, %c0_1] : memref<1x16x128xbf16, #tpu.memory_space<vmem>>, vector<1x16x128xbf16>
    %1 = vector.shape_cast %0 : vector<1x16x128xbf16> to vector<16x128xbf16>
    %2 = arith.extf %1 : vector<16x128xbf16> to vector<16x128xf32>
    %c0_2 = arith.constant 0 : index
    %c0_3 = arith.constant 0 : index
    %3 = vector.load %arg2[%c0_2, %c0_3] : memref<1x128xf32, #tpu.memory_space<vmem>>, vector<1x128xf32>
    %4 = vector.broadcast %3 : vector<1x128xf32> to vector<16x128xf32>
    %5 = arith.mulf %2, %4 : vector<16x128xf32>
    %c0_4 = arith.constant 0 : index
    %c0_5 = arith.constant 0 : index
    %6 = vector.load %arg3[%c0_4, %c0_5] : memref<1x128xf32, #tpu.memory_space<vmem>>, vector<1x128xf32>
    %7 = vector.broadcast %6 : vector<1x128xf32> to vector<16x128xf32>
    %8 = arith.addf %5, %7 : vector<16x128xf32>
    %9 = arith.truncf %8 : vector<16x128xf32> to vector<16x128xbf16>
    %c0_6 = arith.constant 0 : index
    %c0_7 = arith.constant 0 : index
    %10 = vector.load %arg6[%c0_6, %c0_7] : memref<1x64xf32, #tpu.memory_space<vmem>>, vector<1x64xf32>
    %cst = arith.constant 0.000000e+00 : f32
    %11 = vector.broadcast %cst : f32 to vector<8x64xf32>
    %c0_8 = arith.constant 0 : index
    %c0_9 = arith.constant 0 : index
    %c0_10 = arith.constant 0 : index
    %12 = vector.load %arg4[%c0_8, %c0_9, %c0_10] : memref<4x8x16xbf16, #tpu.memory_space<vmem>>, vector<1x8x16xbf16>
    %13 = vector.shape_cast %12 : vector<1x8x16xbf16> to vector<8x16xbf16>
    %cst_11 = arith.constant dense<0.000000e+00> : vector<8x128xf32>
    %14 = tpu.matmul %13, %9, %cst_11 {dimension_numbers = #tpu.dot_dimension_numbers<[1], [0], [0], [1], [0, 0, 1, 1], [], []>} : vector<8x16xbf16>, vector<16x128xbf16>, vector<8x128xf32> -> vector<8x128xf32>
    %15 = arith.truncf %14 : vector<8x128xf32> to vector<8x128xbf16>
    %c0_12 = arith.constant 0 : index
    %c0_13 = arith.constant 0 : index
    %c0_14 = arith.constant 0 : index
    %16 = vector.load %arg5[%c0_12, %c0_13, %c0_14] : memref<4x128x64xbf16, #tpu.memory_space<vmem>>, vector<1x128x64xbf16>
    %17 = vector.shape_cast %16 : vector<1x128x64xbf16> to vector<128x64xbf16>
    %cst_15 = arith.constant dense<0.000000e+00> : vector<8x64xf32>
    %18 = tpu.matmul %15, %17, %cst_15 {dimension_numbers = #tpu.dot_dimension_numbers<[1], [0], [0], [1], [0, 0, 1, 1], [], []>} : vector<8x128xbf16>, vector<128x64xbf16>, vector<8x64xf32> -> vector<8x64xf32>
    %19 = arith.addf %11, %18 : vector<8x64xf32>
    %c1 = arith.constant 1 : index
    %c0_16 = arith.constant 0 : index
    %c0_17 = arith.constant 0 : index
    %20 = vector.load %arg4[%c1, %c0_16, %c0_17] : memref<4x8x16xbf16, #tpu.memory_space<vmem>>, vector<1x8x16xbf16>
    %21 = vector.shape_cast %20 : vector<1x8x16xbf16> to vector<8x16xbf16>
    %cst_18 = arith.constant dense<0.000000e+00> : vector<8x128xf32>
    %22 = tpu.matmul %21, %9, %cst_18 {dimension_numbers = #tpu.dot_dimension_numbers<[1], [0], [0], [1], [0, 0, 1, 1], [], []>} : vector<8x16xbf16>, vector<16x128xbf16>, vector<8x128xf32> -> vector<8x128xf32>
    %23 = arith.truncf %22 : vector<8x128xf32> to vector<8x128xbf16>
    %c1_19 = arith.constant 1 : index
    %c0_20 = arith.constant 0 : index
    %c0_21 = arith.constant 0 : index
    %24 = vector.load %arg5[%c1_19, %c0_20, %c0_21] : memref<4x128x64xbf16, #tpu.memory_space<vmem>>, vector<1x128x64xbf16>
    %25 = vector.shape_cast %24 : vector<1x128x64xbf16> to vector<128x64xbf16>
    %cst_22 = arith.constant dense<0.000000e+00> : vector<8x64xf32>
    %26 = tpu.matmul %23, %25, %cst_22 {dimension_numbers = #tpu.dot_dimension_numbers<[1], [0], [0], [1], [0, 0, 1, 1], [], []>} : vector<8x128xbf16>, vector<128x64xbf16>, vector<8x64xf32> -> vector<8x64xf32>
    %27 = arith.addf %19, %26 : vector<8x64xf32>
    %c2 = arith.constant 2 : index
    %c0_23 = arith.constant 0 : index
    %c0_24 = arith.constant 0 : index
    %28 = vector.load %arg4[%c2, %c0_23, %c0_24] : memref<4x8x16xbf16, #tpu.memory_space<vmem>>, vector<1x8x16xbf16>
    %29 = vector.shape_cast %28 : vector<1x8x16xbf16> to vector<8x16xbf16>
    %cst_25 = arith.constant dense<0.000000e+00> : vector<8x128xf32>
    %30 = tpu.matmul %29, %9, %cst_25 {dimension_numbers = #tpu.dot_dimension_numbers<[1], [0], [0], [1], [0, 0, 1, 1], [], []>} : vector<8x16xbf16>, vector<16x128xbf16>, vector<8x128xf32> -> vector<8x128xf32>
    %31 = arith.truncf %30 : vector<8x128xf32> to vector<8x128xbf16>
    %c2_26 = arith.constant 2 : index
    %c0_27 = arith.constant 0 : index
    %c0_28 = arith.constant 0 : index
    %32 = vector.load %arg5[%c2_26, %c0_27, %c0_28] : memref<4x128x64xbf16, #tpu.memory_space<vmem>>, vector<1x128x64xbf16>
    %33 = vector.shape_cast %32 : vector<1x128x64xbf16> to vector<128x64xbf16>
    %cst_29 = arith.constant dense<0.000000e+00> : vector<8x64xf32>
    %34 = tpu.matmul %31, %33, %cst_29 {dimension_numbers = #tpu.dot_dimension_numbers<[1], [0], [0], [1], [0, 0, 1, 1], [], []>} : vector<8x128xbf16>, vector<128x64xbf16>, vector<8x64xf32> -> vector<8x64xf32>
    %35 = arith.addf %27, %34 : vector<8x64xf32>
    %c3 = arith.constant 3 : index
    %c0_30 = arith.constant 0 : index
    %c0_31 = arith.constant 0 : index
    %36 = vector.load %arg4[%c3, %c0_30, %c0_31] : memref<4x8x16xbf16, #tpu.memory_space<vmem>>, vector<1x8x16xbf16>
    %37 = vector.shape_cast %36 : vector<1x8x16xbf16> to vector<8x16xbf16>
    %cst_32 = arith.constant dense<0.000000e+00> : vector<8x128xf32>
    %38 = tpu.matmul %37, %9, %cst_32 {dimension_numbers = #tpu.dot_dimension_numbers<[1], [0], [0], [1], [0, 0, 1, 1], [], []>} : vector<8x16xbf16>, vector<16x128xbf16>, vector<8x128xf32> -> vector<8x128xf32>
    %39 = arith.truncf %38 : vector<8x128xf32> to vector<8x128xbf16>
    %c3_33 = arith.constant 3 : index
    %c0_34 = arith.constant 0 : index
    %c0_35 = arith.constant 0 : index
    %40 = vector.load %arg5[%c3_33, %c0_34, %c0_35] : memref<4x128x64xbf16, #tpu.memory_space<vmem>>, vector<1x128x64xbf16>
    %41 = vector.shape_cast %40 : vector<1x128x64xbf16> to vector<128x64xbf16>
    %cst_36 = arith.constant dense<0.000000e+00> : vector<8x64xf32>
    %42 = tpu.matmul %39, %41, %cst_36 {dimension_numbers = #tpu.dot_dimension_numbers<[1], [0], [0], [1], [0, 0, 1, 1], [], []>} : vector<8x128xbf16>, vector<128x64xbf16>, vector<8x64xf32> -> vector<8x64xf32>
    %43 = arith.addf %35, %42 : vector<8x64xf32>
    %44 = vector.broadcast %10 : vector<1x64xf32> to vector<8x64xf32>
    %45 = arith.addf %43, %44 : vector<8x64xf32>
    %c0_37 = arith.constant 0 : index
    %c0_38 = arith.constant 0 : index
    %c0_39 = arith.constant 0 : index
    %46 = vector.load %arg7[%c0_37, %c0_38, %c0_39] : memref<1x8x64xf32, #tpu.memory_space<vmem>>, vector<1x8x64xf32>
    %47 = vector.shape_cast %46 : vector<1x8x64xf32> to vector<8x64xf32>
    %48 = vector.shape_cast %45 : vector<8x64xf32> to vector<1x8x64xf32>
    tpu.vector_store %arg7[%c0_37, %c0_38, %c0_39], %48 {strides = array<i32>} : memref<1x8x64xf32, #tpu.memory_space<vmem>>, vector<1x8x64xf32>,
    return
  }
  func.func @transform_0(%arg0: i32) -> (i32, i32, i32) {
    %c0_i32 = arith.constant 0 : i32
    %c0_i32_0 = arith.constant 0 : i32
    %c0_i32_1 = arith.constant 0 : i32
    return %arg0, %c0_i32, %c0_i32_0 : i32, i32, i32
  }
  func.func @transform_1(%arg0: i32) -> (i32, i32) {
    %c0_i32 = arith.constant 0 : i32
    %c0_i32_0 = arith.constant 0 : i32
    %c0_i32_1 = arith.constant 0 : i32
    return %c0_i32, %c0_i32_0 : i32, i32
  }
  func.func @transform_2(%arg0: i32) -> (i32, i32) {
    %c0_i32 = arith.constant 0 : i32
    %c0_i32_0 = arith.constant 0 : i32
    %c0_i32_1 = arith.constant 0 : i32
    return %c0_i32, %c0_i32_0 : i32, i32
  }
  func.func @transform_3(%arg0: i32) -> (i32, i32, i32) {
    %c0_i32 = arith.constant 0 : i32
    %c0_i32_0 = arith.constant 0 : i32
    %c0_i32_1 = arith.constant 0 : i32
    %c0_i32_2 = arith.constant 0 : i32
    return %c0_i32, %c0_i32_0, %c0_i32_1 : i32, i32, i32
  }
  func.func @transform_4(%arg0: i32) -> (i32, i32, i32) {
    %c0_i32 = arith.constant 0 : i32
    %c0_i32_0 = arith.constant 0 : i32
    %c0_i32_1 = arith.constant 0 : i32
    %c0_i32_2 = arith.constant 0 : i32
    return %c0_i32, %c0_i32_0, %c0_i32_1 : i32, i32, i32
  }
  func.func @transform_5(%arg0: i32) -> (i32, i32) {
    %c0_i32 = arith.constant 0 : i32
    %c0_i32_0 = arith.constant 0 : i32
    %c0_i32_1 = arith.constant 0 : i32
    return %c0_i32, %c0_i32_0 : i32, i32
  }
  func.func @transform_6(%arg0: i32) -> (i32, i32, i32) {
    %c0_i32 = arith.constant 0 : i32
    %c0_i32_0 = arith.constant 0 : i32
    %c0_i32_1 = arith.constant 0 : i32
    return %arg0, %c0_i32, %c0_i32_0 : i32, i32, i32
  }
}

module attributes {stable_mosaic.version = 11 : i64} {
  func.func @_conv1_kernel(%arg0: i32, %arg1: memref<1x16x64xbf16, #tpu.memory_space<vmem>>, %arg2: memref<3x16x16xbf16, #tpu.memory_space<vmem>>, %arg3: memref<3x64x128xbf16, #tpu.memory_space<vmem>>, %arg4: memref<1x128xf32, #tpu.memory_space<vmem>>, %arg5: memref<1x16x128xbf16, #tpu.memory_space<vmem>>, %arg6: memref<1x2x128xf32, #tpu.memory_space<vmem>>) attributes {dimension_semantics = [#tpu.dimension_semantics<parallel>], iteration_bounds = array<i64: 2>, scalar_prefetch = 0 : i64, scratch_operands = 0 : i64, tpu.core_type = #tpu.core_type<tc>, window_params = [{transform_indices = @transform_0, window_bounds = array<i64: 1, 16, 64>}, {pipeline_mode = #tpu.pipeline_mode<synchronous>, transform_indices = @transform_1, window_bounds = array<i64: 3, 16, 16>}, {pipeline_mode = #tpu.pipeline_mode<synchronous>, transform_indices = @transform_2, window_bounds = array<i64: 3, 64, 128>}, {pipeline_mode = #tpu.pipeline_mode<synchronous>, transform_indices = @transform_3, window_bounds = array<i64: 1, 128>}, {transform_indices = @transform_4, window_bounds = array<i64: 1, 16, 128>}, {transform_indices = @transform_5, window_bounds = array<i64: 1, 2, 128>}]} {
    %c0 = arith.constant 0 : index
    %c0_0 = arith.constant 0 : index
    %c0_1 = arith.constant 0 : index
    %0 = vector.load %arg1[%c0, %c0_0, %c0_1] : memref<1x16x64xbf16, #tpu.memory_space<vmem>>, vector<1x16x64xbf16>
    %1 = vector.shape_cast %0 : vector<1x16x64xbf16> to vector<16x64xbf16>
    %c0_2 = arith.constant 0 : index
    %c0_3 = arith.constant 0 : index
    %2 = vector.load %arg4[%c0_2, %c0_3] : memref<1x128xf32, #tpu.memory_space<vmem>>, vector<1x128xf32>
    %cst = arith.constant 0.000000e+00 : f32
    %3 = vector.broadcast %cst : f32 to vector<16x128xf32>
    %c0_4 = arith.constant 0 : index
    %c0_5 = arith.constant 0 : index
    %c0_6 = arith.constant 0 : index
    %4 = vector.load %arg2[%c0_4, %c0_5, %c0_6] : memref<3x16x16xbf16, #tpu.memory_space<vmem>>, vector<1x16x16xbf16>
    %5 = vector.shape_cast %4 : vector<1x16x16xbf16> to vector<16x16xbf16>
    %cst_7 = arith.constant dense<0.000000e+00> : vector<16x64xf32>
    %6 = tpu.matmul %5, %1, %cst_7 {dimension_numbers = #tpu.dot_dimension_numbers<[1], [0], [0], [1], [0, 0, 1, 1], [], []>} : vector<16x16xbf16>, vector<16x64xbf16>, vector<16x64xf32> -> vector<16x64xf32>
    %7 = arith.truncf %6 : vector<16x64xf32> to vector<16x64xbf16>
    %c0_8 = arith.constant 0 : index
    %c0_9 = arith.constant 0 : index
    %c0_10 = arith.constant 0 : index
    %8 = vector.load %arg3[%c0_8, %c0_9, %c0_10] : memref<3x64x128xbf16, #tpu.memory_space<vmem>>, vector<1x64x128xbf16>
    %9 = vector.shape_cast %8 : vector<1x64x128xbf16> to vector<64x128xbf16>
    %cst_11 = arith.constant dense<0.000000e+00> : vector<16x128xf32>
    %10 = tpu.matmul %7, %9, %cst_11 {dimension_numbers = #tpu.dot_dimension_numbers<[1], [0], [0], [1], [0, 0, 1, 1], [], []>} : vector<16x64xbf16>, vector<64x128xbf16>, vector<16x128xf32> -> vector<16x128xf32>
    %11 = arith.addf %3, %10 : vector<16x128xf32>
    %c1 = arith.constant 1 : index
    %c0_12 = arith.constant 0 : index
    %c0_13 = arith.constant 0 : index
    %12 = vector.load %arg2[%c1, %c0_12, %c0_13] : memref<3x16x16xbf16, #tpu.memory_space<vmem>>, vector<1x16x16xbf16>
    %13 = vector.shape_cast %12 : vector<1x16x16xbf16> to vector<16x16xbf16>
    %cst_14 = arith.constant dense<0.000000e+00> : vector<16x64xf32>
    %14 = tpu.matmul %13, %1, %cst_14 {dimension_numbers = #tpu.dot_dimension_numbers<[1], [0], [0], [1], [0, 0, 1, 1], [], []>} : vector<16x16xbf16>, vector<16x64xbf16>, vector<16x64xf32> -> vector<16x64xf32>
    %15 = arith.truncf %14 : vector<16x64xf32> to vector<16x64xbf16>
    %c1_15 = arith.constant 1 : index
    %c0_16 = arith.constant 0 : index
    %c0_17 = arith.constant 0 : index
    %16 = vector.load %arg3[%c1_15, %c0_16, %c0_17] : memref<3x64x128xbf16, #tpu.memory_space<vmem>>, vector<1x64x128xbf16>
    %17 = vector.shape_cast %16 : vector<1x64x128xbf16> to vector<64x128xbf16>
    %cst_18 = arith.constant dense<0.000000e+00> : vector<16x128xf32>
    %18 = tpu.matmul %15, %17, %cst_18 {dimension_numbers = #tpu.dot_dimension_numbers<[1], [0], [0], [1], [0, 0, 1, 1], [], []>} : vector<16x64xbf16>, vector<64x128xbf16>, vector<16x128xf32> -> vector<16x128xf32>
    %19 = arith.addf %11, %18 : vector<16x128xf32>
    %c2 = arith.constant 2 : index
    %c0_19 = arith.constant 0 : index
    %c0_20 = arith.constant 0 : index
    %20 = vector.load %arg2[%c2, %c0_19, %c0_20] : memref<3x16x16xbf16, #tpu.memory_space<vmem>>, vector<1x16x16xbf16>
    %21 = vector.shape_cast %20 : vector<1x16x16xbf16> to vector<16x16xbf16>
    %cst_21 = arith.constant dense<0.000000e+00> : vector<16x64xf32>
    %22 = tpu.matmul %21, %1, %cst_21 {dimension_numbers = #tpu.dot_dimension_numbers<[1], [0], [0], [1], [0, 0, 1, 1], [], []>} : vector<16x16xbf16>, vector<16x64xbf16>, vector<16x64xf32> -> vector<16x64xf32>
    %23 = arith.truncf %22 : vector<16x64xf32> to vector<16x64xbf16>
    %c2_22 = arith.constant 2 : index
    %c0_23 = arith.constant 0 : index
    %c0_24 = arith.constant 0 : index
    %24 = vector.load %arg3[%c2_22, %c0_23, %c0_24] : memref<3x64x128xbf16, #tpu.memory_space<vmem>>, vector<1x64x128xbf16>
    %25 = vector.shape_cast %24 : vector<1x64x128xbf16> to vector<64x128xbf16>
    %cst_25 = arith.constant dense<0.000000e+00> : vector<16x128xf32>
    %26 = tpu.matmul %23, %25, %cst_25 {dimension_numbers = #tpu.dot_dimension_numbers<[1], [0], [0], [1], [0, 0, 1, 1], [], []>} : vector<16x64xbf16>, vector<64x128xbf16>, vector<16x128xf32> -> vector<16x128xf32>
    %27 = arith.addf %19, %26 : vector<16x128xf32>
    %28 = vector.broadcast %2 : vector<1x128xf32> to vector<16x128xf32>
    %29 = arith.addf %27, %28 : vector<16x128xf32>
    %cst_26 = arith.constant 0.000000e+00 : f32
    %30 = vector.broadcast %cst_26 : f32 to vector<16x128xf32>
    %31 = arith.maximumf %29, %30 : vector<16x128xf32>
    %32 = arith.truncf %31 : vector<16x128xf32> to vector<16x128xbf16>
    %c0_27 = arith.constant 0 : index
    %c0_28 = arith.constant 0 : index
    %c0_29 = arith.constant 0 : index
    %33 = vector.load %arg5[%c0_27, %c0_28, %c0_29] : memref<1x16x128xbf16, #tpu.memory_space<vmem>>, vector<1x16x128xbf16>
    %34 = vector.shape_cast %33 : vector<1x16x128xbf16> to vector<16x128xbf16>
    %35 = vector.shape_cast %32 : vector<16x128xbf16> to vector<1x16x128xbf16>
    tpu.vector_store %arg5[%c0_27, %c0_28, %c0_29], %35 {strides = array<i32>} : memref<1x16x128xbf16, #tpu.memory_space<vmem>>, vector<1x16x128xbf16>,
    %cst_30 = arith.constant dense<0.000000e+00> : vector<128xf32>
    %36 = vector.multi_reduction <add>, %31, %cst_30 [0] : vector<16x128xf32> to vector<128xf32>
    %37 = vector.shape_cast %36 : vector<128xf32> to vector<1x128xf32>
    %38 = arith.mulf %31, %31 : vector<16x128xf32>
    %cst_31 = arith.constant dense<0.000000e+00> : vector<128xf32>
    %39 = vector.multi_reduction <add>, %38, %cst_31 [0] : vector<16x128xf32> to vector<128xf32>
    %40 = vector.shape_cast %39 : vector<128xf32> to vector<1x128xf32>
    %41 = tpu.concatenate %37, %40 in 0 : vector<1x128xf32>, vector<1x128xf32> -> vector<2x128xf32>
    %c0_32 = arith.constant 0 : index
    %c0_33 = arith.constant 0 : index
    %c0_34 = arith.constant 0 : index
    %42 = vector.load %arg6[%c0_32, %c0_33, %c0_34] : memref<1x2x128xf32, #tpu.memory_space<vmem>>, vector<1x2x128xf32>
    %43 = vector.shape_cast %42 : vector<1x2x128xf32> to vector<2x128xf32>
    %44 = vector.shape_cast %41 : vector<2x128xf32> to vector<1x2x128xf32>
    tpu.vector_store %arg6[%c0_32, %c0_33, %c0_34], %44 {strides = array<i32>} : memref<1x2x128xf32, #tpu.memory_space<vmem>>, vector<1x2x128xf32>,
    return
  }
  func.func @transform_0(%arg0: i32) -> (i32, i32, i32) {
    %c0_i32 = arith.constant 0 : i32
    %c0_i32_0 = arith.constant 0 : i32
    %c0_i32_1 = arith.constant 0 : i32
    return %arg0, %c0_i32, %c0_i32_0 : i32, i32, i32
  }
  func.func @transform_1(%arg0: i32) -> (i32, i32, i32) {
    %c0_i32 = arith.constant 0 : i32
    %c0_i32_0 = arith.constant 0 : i32
    %c0_i32_1 = arith.constant 0 : i32
    %c0_i32_2 = arith.constant 0 : i32
    return %c0_i32, %c0_i32_0, %c0_i32_1 : i32, i32, i32
  }
  func.func @transform_2(%arg0: i32) -> (i32, i32, i32) {
    %c0_i32 = arith.constant 0 : i32
    %c0_i32_0 = arith.constant 0 : i32
    %c0_i32_1 = arith.constant 0 : i32
    %c0_i32_2 = arith.constant 0 : i32
    return %c0_i32, %c0_i32_0, %c0_i32_1 : i32, i32, i32
  }
  func.func @transform_3(%arg0: i32) -> (i32, i32) {
    %c0_i32 = arith.constant 0 : i32
    %c0_i32_0 = arith.constant 0 : i32
    %c0_i32_1 = arith.constant 0 : i32
    return %c0_i32, %c0_i32_0 : i32, i32
  }
  func.func @transform_4(%arg0: i32) -> (i32, i32, i32) {
    %c0_i32 = arith.constant 0 : i32
    %c0_i32_0 = arith.constant 0 : i32
    %c0_i32_1 = arith.constant 0 : i32
    return %arg0, %c0_i32, %c0_i32_0 : i32, i32, i32
  }
  func.func @transform_5(%arg0: i32) -> (i32, i32, i32) {
    %c0_i32 = arith.constant 0 : i32
    %c0_i32_0 = arith.constant 0 : i32
    %c0_i32_1 = arith.constant 0 : i32
    return %arg0, %c0_i32, %c0_i32_0 : i32, i32, i32
  }
}

module attributes {stable_mosaic.version = 11 : i64} {
  func.func @_bn1_tmlp_conv2_kernel(%arg0: i32, %arg1: memref<1x16x128xbf16, #tpu.memory_space<vmem>>, %arg2: memref<1x128xf32, #tpu.memory_space<vmem>>, %arg3: memref<1x128xf32, #tpu.memory_space<vmem>>, %arg4: memref<1x1x32xbf16, #tpu.memory_space<vmem>>, %arg5: memref<32x128xbf16, #tpu.memory_space<vmem>>, %arg6: memref<1x128xf32, #tpu.memory_space<vmem>>, %arg7: memref<3x16x16xbf16, #tpu.memory_space<vmem>>, %arg8: memref<3x128x128xbf16, #tpu.memory_space<vmem>>, %arg9: memref<1x128xf32, #tpu.memory_space<vmem>>, %arg10: memref<1x16x128xbf16, #tpu.memory_space<vmem>>, %arg11: memref<1x2x128xf32, #tpu.memory_space<vmem>>) attributes {dimension_semantics = [#tpu.dimension_semantics<parallel>], iteration_bounds = array<i64: 2>, scalar_prefetch = 0 : i64, scratch_operands = 0 : i64, tpu.core_type = #tpu.core_type<tc>, window_params = [{transform_indices = @transform_0, window_bounds = array<i64: 1, 16, 128>}, {pipeline_mode = #tpu.pipeline_mode<synchronous>, transform_indices = @transform_1, window_bounds = array<i64: 1, 128>}, {pipeline_mode = #tpu.pipeline_mode<synchronous>, transform_indices = @transform_2, window_bounds = array<i64: 1, 128>}, {transform_indices = @transform_3, window_bounds = array<i64: 1, 1, 32>}, {pipeline_mode = #tpu.pipeline_mode<synchronous>, transform_indices = @transform_4, window_bounds = array<i64: 32, 128>}, {pipeline_mode = #tpu.pipeline_mode<synchronous>, transform_indices = @transform_5, window_bounds = array<i64: 1, 128>}, {pipeline_mode = #tpu.pipeline_mode<synchronous>, transform_indices = @transform_6, window_bounds = array<i64: 3, 16, 16>}, {pipeline_mode = #tpu.pipeline_mode<synchronous>, transform_indices = @transform_7, window_bounds = array<i64: 3, 128, 128>}, {pipeline_mode = #tpu.pipeline_mode<synchronous>, transform_indices = @transform_8, window_bounds = array<i64: 1, 128>}, {transform_indices = @transform_9, window_bounds = array<i64: 1, 16, 128>}, {transform_indices = @transform_10, window_bounds = array<i64: 1, 2, 128>}]} {
    %c0 = arith.constant 0 : index
    %c0_0 = arith.constant 0 : index
    %c0_1 = arith.constant 0 : index
    %0 = vector.load %arg4[%c0, %c0_0, %c0_1] : memref<1x1x32xbf16, #tpu.memory_space<vmem>>, vector<1x1x32xbf16>
    %1 = vector.shape_cast %0 : vector<1x1x32xbf16> to vector<1x32xbf16>
    %c0_2 = arith.constant 0 : index
    %c0_3 = arith.constant 0 : index
    %2 = vector.load %arg5[%c0_2, %c0_3] : memref<32x128xbf16, #tpu.memory_space<vmem>>, vector<32x128xbf16>
    %cst = arith.constant dense<0.000000e+00> : vector<1x128xf32>
    %3 = tpu.matmul %1, %2, %cst {dimension_numbers = #tpu.dot_dimension_numbers<[1], [0], [0], [1], [0, 0, 1, 1], [], []>} : vector<1x32xbf16>, vector<32x128xbf16>, vector<1x128xf32> -> vector<1x128xf32>
    %c0_4 = arith.constant 0 : index
    %c0_5 = arith.constant 0 : index
    %4 = vector.load %arg6[%c0_4, %c0_5] : memref<1x128xf32, #tpu.memory_space<vmem>>, vector<1x128xf32>
    %5 = arith.addf %3, %4 : vector<1x128xf32>
    %cst_6 = arith.constant 0.000000e+00 : f32
    %6 = vector.broadcast %cst_6 : f32 to vector<1x128xf32>
    %7 = arith.maximumf %5, %6 : vector<1x128xf32>
    %c0_7 = arith.constant 0 : index
    %c0_8 = arith.constant 0 : index
    %c0_9 = arith.constant 0 : index
    %8 = vector.load %arg1[%c0_7, %c0_8, %c0_9] : memref<1x16x128xbf16, #tpu.memory_space<vmem>>, vector<1x16x128xbf16>
    %9 = vector.shape_cast %8 : vector<1x16x128xbf16> to vector<16x128xbf16>
    %10 = arith.extf %9 : vector<16x128xbf16> to vector<16x128xf32>
    %c0_10 = arith.constant 0 : index
    %c0_11 = arith.constant 0 : index
    %11 = vector.load %arg2[%c0_10, %c0_11] : memref<1x128xf32, #tpu.memory_space<vmem>>, vector<1x128xf32>
    %12 = vector.broadcast %11 : vector<1x128xf32> to vector<16x128xf32>
    %13 = arith.mulf %10, %12 : vector<16x128xf32>
    %c0_12 = arith.constant 0 : index
    %c0_13 = arith.constant 0 : index
    %14 = vector.load %arg3[%c0_12, %c0_13] : memref<1x128xf32, #tpu.memory_space<vmem>>, vector<1x128xf32>
    %15 = vector.broadcast %14 : vector<1x128xf32> to vector<16x128xf32>
    %16 = arith.addf %13, %15 : vector<16x128xf32>
    %17 = vector.broadcast %7 : vector<1x128xf32> to vector<16x128xf32>
    %18 = arith.addf %16, %17 : vector<16x128xf32>
    %19 = arith.truncf %18 : vector<16x128xf32> to vector<16x128xbf16>
    %c0_14 = arith.constant 0 : index
    %c0_15 = arith.constant 0 : index
    %20 = vector.load %arg9[%c0_14, %c0_15] : memref<1x128xf32, #tpu.memory_space<vmem>>, vector<1x128xf32>
    %cst_16 = arith.constant 0.000000e+00 : f32
    %21 = vector.broadcast %cst_16 : f32 to vector<16x128xf32>
    %c0_17 = arith.constant 0 : index
    %c0_18 = arith.constant 0 : index
    %c0_19 = arith.constant 0 : index
    %22 = vector.load %arg7[%c0_17, %c0_18, %c0_19] : memref<3x16x16xbf16, #tpu.memory_space<vmem>>, vector<1x16x16xbf16>
    %23 = vector.shape_cast %22 : vector<1x16x16xbf16> to vector<16x16xbf16>
    %cst_20 = arith.constant dense<0.000000e+00> : vector<16x128xf32>
    %24 = tpu.matmul %23, %19, %cst_20 {dimension_numbers = #tpu.dot_dimension_numbers<[1], [0], [0], [1], [0, 0, 1, 1], [], []>} : vector<16x16xbf16>, vector<16x128xbf16>, vector<16x128xf32> -> vector<16x128xf32>
    %25 = arith.truncf %24 : vector<16x128xf32> to vector<16x128xbf16>
    %c0_21 = arith.constant 0 : index
    %c0_22 = arith.constant 0 : index
    %c0_23 = arith.constant 0 : index
    %26 = vector.load %arg8[%c0_21, %c0_22, %c0_23] : memref<3x128x128xbf16, #tpu.memory_space<vmem>>, vector<1x128x128xbf16>
    %27 = vector.shape_cast %26 : vector<1x128x128xbf16> to vector<128x128xbf16>
    %cst_24 = arith.constant dense<0.000000e+00> : vector<16x128xf32>
    %28 = tpu.matmul %25, %27, %cst_24 {dimension_numbers = #tpu.dot_dimension_numbers<[1], [0], [0], [1], [0, 0, 1, 1], [], []>} : vector<16x128xbf16>, vector<128x128xbf16>, vector<16x128xf32> -> vector<16x128xf32>
    %29 = arith.addf %21, %28 : vector<16x128xf32>
    %c1 = arith.constant 1 : index
    %c0_25 = arith.constant 0 : index
    %c0_26 = arith.constant 0 : index
    %30 = vector.load %arg7[%c1, %c0_25, %c0_26] : memref<3x16x16xbf16, #tpu.memory_space<vmem>>, vector<1x16x16xbf16>
    %31 = vector.shape_cast %30 : vector<1x16x16xbf16> to vector<16x16xbf16>
    %cst_27 = arith.constant dense<0.000000e+00> : vector<16x128xf32>
    %32 = tpu.matmul %31, %19, %cst_27 {dimension_numbers = #tpu.dot_dimension_numbers<[1], [0], [0], [1], [0, 0, 1, 1], [], []>} : vector<16x16xbf16>, vector<16x128xbf16>, vector<16x128xf32> -> vector<16x128xf32>
    %33 = arith.truncf %32 : vector<16x128xf32> to vector<16x128xbf16>
    %c1_28 = arith.constant 1 : index
    %c0_29 = arith.constant 0 : index
    %c0_30 = arith.constant 0 : index
    %34 = vector.load %arg8[%c1_28, %c0_29, %c0_30] : memref<3x128x128xbf16, #tpu.memory_space<vmem>>, vector<1x128x128xbf16>
    %35 = vector.shape_cast %34 : vector<1x128x128xbf16> to vector<128x128xbf16>
    %cst_31 = arith.constant dense<0.000000e+00> : vector<16x128xf32>
    %36 = tpu.matmul %33, %35, %cst_31 {dimension_numbers = #tpu.dot_dimension_numbers<[1], [0], [0], [1], [0, 0, 1, 1], [], []>} : vector<16x128xbf16>, vector<128x128xbf16>, vector<16x128xf32> -> vector<16x128xf32>
    %37 = arith.addf %29, %36 : vector<16x128xf32>
    %c2 = arith.constant 2 : index
    %c0_32 = arith.constant 0 : index
    %c0_33 = arith.constant 0 : index
    %38 = vector.load %arg7[%c2, %c0_32, %c0_33] : memref<3x16x16xbf16, #tpu.memory_space<vmem>>, vector<1x16x16xbf16>
    %39 = vector.shape_cast %38 : vector<1x16x16xbf16> to vector<16x16xbf16>
    %cst_34 = arith.constant dense<0.000000e+00> : vector<16x128xf32>
    %40 = tpu.matmul %39, %19, %cst_34 {dimension_numbers = #tpu.dot_dimension_numbers<[1], [0], [0], [1], [0, 0, 1, 1], [], []>} : vector<16x16xbf16>, vector<16x128xbf16>, vector<16x128xf32> -> vector<16x128xf32>
    %41 = arith.truncf %40 : vector<16x128xf32> to vector<16x128xbf16>
    %c2_35 = arith.constant 2 : index
    %c0_36 = arith.constant 0 : index
    %c0_37 = arith.constant 0 : index
    %42 = vector.load %arg8[%c2_35, %c0_36, %c0_37] : memref<3x128x128xbf16, #tpu.memory_space<vmem>>, vector<1x128x128xbf16>
    %43 = vector.shape_cast %42 : vector<1x128x128xbf16> to vector<128x128xbf16>
    %cst_38 = arith.constant dense<0.000000e+00> : vector<16x128xf32>
    %44 = tpu.matmul %41, %43, %cst_38 {dimension_numbers = #tpu.dot_dimension_numbers<[1], [0], [0], [1], [0, 0, 1, 1], [], []>} : vector<16x128xbf16>, vector<128x128xbf16>, vector<16x128xf32> -> vector<16x128xf32>
    %45 = arith.addf %37, %44 : vector<16x128xf32>
    %46 = vector.broadcast %20 : vector<1x128xf32> to vector<16x128xf32>
    %47 = arith.addf %45, %46 : vector<16x128xf32>
    %cst_39 = arith.constant 0.000000e+00 : f32
    %48 = vector.broadcast %cst_39 : f32 to vector<16x128xf32>
    %49 = arith.maximumf %47, %48 : vector<16x128xf32>
    %50 = arith.truncf %49 : vector<16x128xf32> to vector<16x128xbf16>
    %c0_40 = arith.constant 0 : index
    %c0_41 = arith.constant 0 : index
    %c0_42 = arith.constant 0 : index
    %51 = vector.load %arg10[%c0_40, %c0_41, %c0_42] : memref<1x16x128xbf16, #tpu.memory_space<vmem>>, vector<1x16x128xbf16>
    %52 = vector.shape_cast %51 : vector<1x16x128xbf16> to vector<16x128xbf16>
    %53 = vector.shape_cast %50 : vector<16x128xbf16> to vector<1x16x128xbf16>
    tpu.vector_store %arg10[%c0_40, %c0_41, %c0_42], %53 {strides = array<i32>} : memref<1x16x128xbf16, #tpu.memory_space<vmem>>, vector<1x16x128xbf16>,
    %cst_43 = arith.constant dense<0.000000e+00> : vector<128xf32>
    %54 = vector.multi_reduction <add>, %49, %cst_43 [0] : vector<16x128xf32> to vector<128xf32>
    %55 = vector.shape_cast %54 : vector<128xf32> to vector<1x128xf32>
    %56 = arith.mulf %49, %49 : vector<16x128xf32>
    %cst_44 = arith.constant dense<0.000000e+00> : vector<128xf32>
    %57 = vector.multi_reduction <add>, %56, %cst_44 [0] : vector<16x128xf32> to vector<128xf32>
    %58 = vector.shape_cast %57 : vector<128xf32> to vector<1x128xf32>
    %59 = tpu.concatenate %55, %58 in 0 : vector<1x128xf32>, vector<1x128xf32> -> vector<2x128xf32>
    %c0_45 = arith.constant 0 : index
    %c0_46 = arith.constant 0 : index
    %c0_47 = arith.constant 0 : index
    %60 = vector.load %arg11[%c0_45, %c0_46, %c0_47] : memref<1x2x128xf32, #tpu.memory_space<vmem>>, vector<1x2x128xf32>
    %61 = vector.shape_cast %60 : vector<1x2x128xf32> to vector<2x128xf32>
    %62 = vector.shape_cast %59 : vector<2x128xf32> to vector<1x2x128xf32>
    tpu.vector_store %arg11[%c0_45, %c0_46, %c0_47], %62 {strides = array<i32>} : memref<1x2x128xf32, #tpu.memory_space<vmem>>, vector<1x2x128xf32>,
    return
  }
  func.func @transform_0(%arg0: i32) -> (i32, i32, i32) {
    %c0_i32 = arith.constant 0 : i32
    %c0_i32_0 = arith.constant 0 : i32
    %c0_i32_1 = arith.constant 0 : i32
    return %arg0, %c0_i32, %c0_i32_0 : i32, i32, i32
  }
  func.func @transform_1(%arg0: i32) -> (i32, i32) {
    %c0_i32 = arith.constant 0 : i32
    %c0_i32_0 = arith.constant 0 : i32
    %c0_i32_1 = arith.constant 0 : i32
    return %c0_i32, %c0_i32_0 : i32, i32
  }
  func.func @transform_2(%arg0: i32) -> (i32, i32) {
    %c0_i32 = arith.constant 0 : i32
    %c0_i32_0 = arith.constant 0 : i32
    %c0_i32_1 = arith.constant 0 : i32
    return %c0_i32, %c0_i32_0 : i32, i32
  }
  func.func @transform_3(%arg0: i32) -> (i32, i32, i32) {
    %c0_i32 = arith.constant 0 : i32
    %c0_i32_0 = arith.constant 0 : i32
    %c0_i32_1 = arith.constant 0 : i32
    return %arg0, %c0_i32, %c0_i32_0 : i32, i32, i32
  }
  func.func @transform_4(%arg0: i32) -> (i32, i32) {
    %c0_i32 = arith.constant 0 : i32
    %c0_i32_0 = arith.constant 0 : i32
    %c0_i32_1 = arith.constant 0 : i32
    return %c0_i32, %c0_i32_0 : i32, i32
  }
  func.func @transform_5(%arg0: i32) -> (i32, i32) {
    %c0_i32 = arith.constant 0 : i32
    %c0_i32_0 = arith.constant 0 : i32
    %c0_i32_1 = arith.constant 0 : i32
    return %c0_i32, %c0_i32_0 : i32, i32
  }
  func.func @transform_6(%arg0: i32) -> (i32, i32, i32) {
    %c0_i32 = arith.constant 0 : i32
    %c0_i32_0 = arith.constant 0 : i32
    %c0_i32_1 = arith.constant 0 : i32
    %c0_i32_2 = arith.constant 0 : i32
    return %c0_i32, %c0_i32_0, %c0_i32_1 : i32, i32, i32
  }
  func.func @transform_7(%arg0: i32) -> (i32, i32, i32) {
    %c0_i32 = arith.constant 0 : i32
    %c0_i32_0 = arith.constant 0 : i32
    %c0_i32_1 = arith.constant 0 : i32
    %c0_i32_2 = arith.constant 0 : i32
    return %c0_i32, %c0_i32_0, %c0_i32_1 : i32, i32, i32
  }
  func.func @transform_8(%arg0: i32) -> (i32, i32) {
    %c0_i32 = arith.constant 0 : i32
    %c0_i32_0 = arith.constant 0 : i32
    %c0_i32_1 = arith.constant 0 : i32
    return %c0_i32, %c0_i32_0 : i32, i32
  }
  func.func @transform_9(%arg0: i32) -> (i32, i32, i32) {
    %c0_i32 = arith.constant 0 : i32
    %c0_i32_0 = arith.constant 0 : i32
    %c0_i32_1 = arith.constant 0 : i32
    return %arg0, %c0_i32, %c0_i32_0 : i32, i32, i32
  }
  func.func @transform_10(%arg0: i32) -> (i32, i32, i32) {
    %c0_i32 = arith.constant 0 : i32
    %c0_i32_0 = arith.constant 0 : i32
    %c0_i32_1 = arith.constant 0 : i32
    return %arg0, %c0_i32, %c0_i32_0 : i32, i32, i32
  }
}

</mosaic_0001>

<llo_original>
// kernel: tile.50
$region0: #{tile.50}
  #allocation0 [shape = 's32[1]{0}', space=sflag, size = 0x4, scoped, tag = 'scoped memory for tile.50']
  %s0 = inlined_call_operand.vmem [shape: f32[8], index: 0, kind: input, shape index: {}]
  %s1 = inlined_call_operand.vmem [shape: f32[8,8], index: 1, kind: output, shape index: {}]
  // Predicated region
  $region2: #{tile.50} parent=0 // pred_check
    _
  $region3: #{tile.50} parent=0 // pred_check_branch
    %3 = sbr.rel (0) target = $region5
  $region4: #{tile.50} parent=0 // pred_region
    _
  $region5: #{tile.50} parent=0 // pred_fallthru
    _
  %v4 = vld [vmem:[%s0] ss:$0 sm:$0xff]
  %5 = vst [vmem:[%s1] sm:$0xff] %v4

// kernel: tile.51
$region0: #{tile.51}
  %s0 = inlined_call_operand.vmem [shape: f32[8,8], index: 0, kind: input, shape index: {}]
  %s1 = inlined_call_operand.vmem [shape: f32[1,64], index: 1, kind: output, shape index: {}]
  $region1: #{tile.51} parent=0
    #allocation0 [shape = 'u8[4096]{0}', space=vmem, size = 0x1000, scoped, tag = 'scoped mem for output reshape']
    %v2 = vld [vmem:[%s0] sm:$0x1]
    %vm3 = vcmask 64512
    %4 = vst.msk [vmem:[#allocation0] sm:$0x1] %vm3, %v2
    %s5 = scalar_lea.vmem %s0, 7
    %v6 = vld [vmem:[%s5] sm:$0x1]
    %7 = vrot.lane.b32.xlu0 %v6, 56
    %v8 = vpop.permute.xlu0 %7
    %vm9 = vcmask 523712
    %10 = vst.msk [vmem:[#allocation0] sm:$0x1] %vm9, %v8
    %s11 = scalar_lea.vmem %s0, 6
    %v12 = vld [vmem:[%s11] sm:$0x1]
    %13 = vrot.lane.b32.xlu0 %v12, 48
    %v14 = vpop.permute.xlu0 %13
    %vm15 = vcmask 458112
    %16 = vst.msk [vmem:[#allocation0] sm:$0x1] %vm15, %v14
    %s17 = scalar_lea.vmem %s0, 5
    %v18 = vld [vmem:[%s17] sm:$0x1]
    %19 = vrot.lane.b32.xlu0 %v18, 40
    %v20 = vpop.permute.xlu0 %19
    %vm21 = vcmask 392512
    %22 = vst.msk [vmem:[#allocation0] sm:$0x1] %vm21, %v20
    %s23 = scalar_lea.vmem %s0, 4
    %v24 = vld [vmem:[%s23] sm:$0x1]
    %25 = vrot.lane.b32.xlu0 %v24, 32
    %v26 = vpop.permute.xlu0 %25
    %vm27 = vcmask 326912
    %28 = vst.msk [vmem:[#allocation0] sm:$0x1] %vm27, %v26
    %s29 = scalar_lea.vmem %s0, 3
    %v30 = vld [vmem:[%s29] sm:$0x1]
    %31 = vrot.lane.b32.xlu0 %v30, 24
    %v32 = vpop.permute.xlu0 %31
    %vm33 = vcmask 261312
    %34 = vst.msk [vmem:[#allocation0] sm:$0x1] %vm33, %v32
    %s35 = scalar_lea.vmem %s0, 2
    %v36 = vld [vmem:[%s35] sm:$0x1]
    %37 = vrot.lane.b32.xlu0 %v36, 16
    %v38 = vpop.permute.xlu0 %37
    %vm39 = vcmask 195712
    %40 = vst.msk [vmem:[#allocation0] sm:$0x1] %vm39, %v38
    %s41 = scalar_lea.vmem %s0, 1
    %v42 = vld [vmem:[%s41] sm:$0x1]
    %43 = vrot.lane.b32.xlu0 %v42, 8
    %v44 = vpop.permute.xlu0 %43
    %vm45 = vcmask 130112
    %46 = vst.msk [vmem:[#allocation0] sm:$0x1] %vm45, %v44
    %s48 = sshll.u32 1, 1
    %s49 = ssub.s32 %s48, 1
    %v51 = vld [vmem:[#allocation0] sm:%s49]
    %s52 = sshll.u32 1, 1
    %s53 = ssub.s32 %s52, 1
    %54 = vst [vmem:[%s1] sm:%s53] %v51

// kernel: tile.43
$region0: #{tile.43}
  %s0 = inlined_call_operand.vmem [shape: f32[16,8], index: 0, kind: input, shape index: {}]
  %s1 = inlined_call_operand.vmem [shape: f32[1,128], index: 1, kind: output, shape index: {}]
  $region1: #{tile.43} parent=0
    #allocation0 [shape = 'u8[4096]{0}', space=vmem, size = 0x1000, scoped, tag = 'scoped mem for output reshape']
    %v2 = vld [vmem:[%s0] sm:$0x1]
    %vm3 = vcmask 64512
    %4 = vst.msk [vmem:[#allocation0] sm:$0x1] %vm3, %v2
    %s5 = scalar_lea.vmem %s0, 15
    %v6 = vld [vmem:[%s5] sm:$0x1]
    %7 = vrot.lane.b32.xlu0 %v6, 120
    %v8 = vpop.permute.xlu0 %7
    %vm9 = vcmask 1048512
    %10 = vst.msk [vmem:[#allocation0] sm:$0x1] %vm9, %v8
    %s11 = scalar_lea.vmem %s0, 14
    %v12 = vld [vmem:[%s11] sm:$0x1]
    %13 = vrot.lane.b32.xlu0 %v12, 112
    %v14 = vpop.permute.xlu0 %13
    %vm15 = vcmask 982912
    %16 = vst.msk [vmem:[#allocation0] sm:$0x1] %vm15, %v14
    %s17 = scalar_lea.vmem %s0, 13
    %v18 = vld [vmem:[%s17] sm:$0x1]
    %19 = vrot.lane.b32.xlu0 %v18, 104
    %v20 = vpop.permute.xlu0 %19
    %vm21 = vcmask 917312
    %22 = vst.msk [vmem:[#allocation0] sm:$0x1] %vm21, %v20
    %s23 = scalar_lea.vmem %s0, 12
    %v24 = vld [vmem:[%s23] sm:$0x1]
    %25 = vrot.lane.b32.xlu0 %v24, 96
    %v26 = vpop.permute.xlu0 %25
    %vm27 = vcmask 851712
    %28 = vst.msk [vmem:[#allocation0] sm:$0x1] %vm27, %v26
    %s29 = scalar_lea.vmem %s0, 11
    %v30 = vld [vmem:[%s29] sm:$0x1]
    %31 = vrot.lane.b32.xlu0 %v30, 88
    %v32 = vpop.permute.xlu0 %31
    %vm33 = vcmask 786112
    %34 = vst.msk [vmem:[#allocation0] sm:$0x1] %vm33, %v32
    %s35 = scalar_lea.vmem %s0, 10
    %v36 = vld [vmem:[%s35] sm:$0x1]
    %37 = vrot.lane.b32.xlu0 %v36, 80
    %v38 = vpop.permute.xlu0 %37
    %vm39 = vcmask 720512
    %40 = vst.msk [vmem:[#allocation0] sm:$0x1] %vm39, %v38
    %s41 = scalar_lea.vmem %s0, 9
    %v42 = vld [vmem:[%s41] sm:$0x1]
    %43 = vrot.lane.b32.xlu0 %v42, 72
    %v44 = vpop.permute.xlu0 %43
    %vm45 = vcmask 654912
    %46 = vst.msk [vmem:[#allocation0] sm:$0x1] %vm45, %v44
    %s47 = scalar_lea.vmem %s0, 8
    %v48 = vld [vmem:[%s47] sm:$0x1]
    %49 = vrot.lane.b32.xlu0 %v48, 64
    %v50 = vpop.permute.xlu0 %49
    %vm51 = vcmask 589312
    %52 = vst.msk [vmem:[#allocation0] sm:$0x1] %vm51, %v50
    %s53 = scalar_lea.vmem %s0, 7
    %v54 = vld [vmem:[%s53] sm:$0x1]
    %55 = vrot.lane.b32.xlu0 %v54, 56
    %v56 = vpop.permute.xlu0 %55
    %vm57 = vcmask 523712
    %58 = vst.msk [vmem:[#allocation0] sm:$0x1] %vm57, %v56
    %s59 = scalar_lea.vmem %s0, 6
    %v60 = vld [vmem:[%s59] sm:$0x1]
    %61 = vrot.lane.b32.xlu0 %v60, 48
    %v62 = vpop.permute.xlu0 %61
    %vm63 = vcmask 458112
    %64 = vst.msk [vmem:[#allocation0] sm:$0x1] %vm63, %v62
    %s65 = scalar_lea.vmem %s0, 5
    %v66 = vld [vmem:[%s65] sm:$0x1]
    %67 = vrot.lane.b32.xlu0 %v66, 40
    %v68 = vpop.permute.xlu0 %67
    %vm69 = vcmask 392512
    %70 = vst.msk [vmem:[#allocation0] sm:$0x1] %vm69, %v68
    %s71 = scalar_lea.vmem %s0, 4
    %v72 = vld [vmem:[%s71] sm:$0x1]
    %73 = vrot.lane.b32.xlu0 %v72, 32
    %v74 = vpop.permute.xlu0 %73
    %vm75 = vcmask 326912
    %76 = vst.msk [vmem:[#allocation0] sm:$0x1] %vm75, %v74
    %s77 = scalar_lea.vmem %s0, 3
    %v78 = vld [vmem:[%s77] sm:$0x1]
    %79 = vrot.lane.b32.xlu0 %v78, 24
    %v80 = vpop.permute.xlu0 %79
    %vm81 = vcmask 261312
    %82 = vst.msk [vmem:[#allocation0] sm:$0x1] %vm81, %v80
    %s83 = scalar_lea.vmem %s0, 2
    %v84 = vld [vmem:[%s83] sm:$0x1]
    %85 = vrot.lane.b32.xlu0 %v84, 16
    %v86 = vpop.permute.xlu0 %85
    %vm87 = vcmask 195712
    %88 = vst.msk [vmem:[#allocation0] sm:$0x1] %vm87, %v86
    %s89 = scalar_lea.vmem %s0, 1
    %v90 = vld [vmem:[%s89] sm:$0x1]
    %91 = vrot.lane.b32.xlu0 %v90, 8
    %v92 = vpop.permute.xlu0 %91
    %vm93 = vcmask 130112
    %94 = vst.msk [vmem:[#allocation0] sm:$0x1] %vm93, %v92
    %s96 = sshll.u32 1, 1
    %s97 = ssub.s32 %s96, 1
    %v99 = vld [vmem:[#allocation0] sm:%s97]
    %s100 = sshll.u32 1, 1
    %s101 = ssub.s32 %s100, 1
    %102 = vst [vmem:[%s1] sm:%s101] %v99

// kernel: tile.42
$region0: #{tile.42}
  #allocation0 [shape = 's32[1]{0}', space=sflag, size = 0x4, scoped, tag = 'scoped memory for tile.42']
  %s0 = inlined_call_operand.vmem [shape: f32[8], index: 0, kind: input, shape index: {}]
  %s1 = inlined_call_operand.vmem [shape: f32[16,8], index: 1, kind: output, shape index: {}]
  // Predicated region
  $region2: #{tile.42} parent=0 // pred_check
    _
  $region3: #{tile.42} parent=0 // pred_check_branch
    %3 = sbr.rel (0) target = $region5
  $region4: #{tile.42} parent=0 // pred_region
    _
  $region5: #{tile.42} parent=0 // pred_fallthru
    _
  %v4 = vld [vmem:[%s0] ss:$0 sm:$0xff]
  %5 = vst [vmem:[%s1] sm:$0xff] %v4
  %s6 = scalar_lea.vmem %s1, 8
  %7 = vst [vmem:[%s6] sm:$0xff] %v4

// kernel: block_forward.5
$region0: #{block_forward.5}
  #allocation0 [shape = 'u32[]', space=smem, size = 0x4, offset = 0x4, fixed_abs, tag = 'smem constant byte address 0x4 - core index']
  #allocation1 [shape = 'u32[144,128]{1,0:T(1,128)}', space=vmem, size = 0x12000, scoped, tag = 'internal scratch']
  %s0 = inlined_call_operand.vmem [shape: bf16[2,16,128], index: 0, kind: input, shape index: {}]
  %s1 = inlined_call_operand.vmem [shape: f32[1,128], index: 1, kind: input, shape index: {}]
  %s2 = inlined_call_operand.vmem [shape: f32[1,128], index: 2, kind: input, shape index: {}]
  %s3 = inlined_call_operand.vmem [shape: bf16[4,8,16], index: 3, kind: input, shape index: {}]
  %s4 = inlined_call_operand.vmem [shape: bf16[4,128,64], index: 4, kind: input, shape index: {}]
  %s5 = inlined_call_operand.vmem [shape: f32[1,64], index: 5, kind: input, shape index: {}]
  %s6 = inlined_call_operand.vmem [shape: f32[2,8,64], index: 6, kind: output, shape index: {}]
  %s7 = sld [smem:[#allocation0]]
  $region57: #{block_forward.5} parent=0
    _
  %s9 = ssub.s32 1, %s7
  %s10 = scalar_select 0, %s9, %s7
  loop: start=0, step=1, limit=4
  $region2: #{block_forward.5} parent=0 // loop_pre_header
    _
  $region3: #{block_forward.5} parent=0 // loop_header
    %s12 = sphi 0, %s16
    %p13 = scmp.ge.s32.totalorder %s12, 4
    %s22 = sphi 0, %s24
    %s25 = sphi 0, %s22
    %s26 = sphi 0, %s25
    %s42 = sphi 0, %s26
    %s46 = sphi 0, %s46
    %s48 = sphi 0, %s46
    %s49 = sphi 0, %s48
    %s63 = sphi 0, %s49
    %s67 = sphi 0, %s67
    %s69 = sphi 0, %s67
    %s70 = sphi 0, %s69
    %s84 = sphi 0, %s70
    %s88 = sphi 0, %s88
    %s90 = sphi 0, %s88
    %s91 = sphi 0, %s90
    %s105 = sphi 0, %s91
    %s109 = sphi 0, %s109
    %s111 = sphi 0, %s109
    %s112 = sphi 0, %s111
    %s126 = sphi 0, %s112
    %s130 = sphi 0, %s130
    %s132 = sphi 0, %s130
    %s133 = sphi 0, %s132
    %s147 = sphi 0, %s133
    %s153 = sphi 0, %s155
    %s156 = sphi 0, %s153
    %s157 = sphi 0, %s156
    %s173 = sphi 0, %s157
  $region4: #{block_forward.5} parent=0 // loop_header_branch
    %15 = sbr.rel (%p13) target = $region8
  $region5: #{block_forward.5} parent=0 // loop_body
    %s17 = ssub.s32 %s12, 1
    %s18 = ssub.s32 %s12, 2
    %s19 = sadd.s32 %s12, 1
    %s20 = ssub.s32 %s12, %s19
    %p21 = scmp.eq.s32.totalorder %s20, 0
    %s23 = sadd.s32 %s22, 1
    %s24 = scalar_select %p21, %s22, %s23
    %p27 = pneg %p21
    %p28 = scmp.eq.s32.totalorder %s12, 1
    %p29 = por %p27, %p28
    %p30 = scmp.ne.s32.totalorder %s22, %s25
    %p31 = scmp.eq.s32.totalorder %s12, 0
    %p32 = por %p30, %p31
    %p33 = scmp.ne.s32.totalorder %s22, %s25
    %p34 = scmp.eq.s32.totalorder %s17, 1
    %p35 = por %p33, %p34
    %p36 = scmp.ne.s32.totalorder %s25, %s26
    %p37 = scmp.eq.s32.totalorder %s17, 0
    %p38 = por %p36, %p37
    %p39 = scmp.ne.s32.totalorder %s25, %s26
    %p40 = scmp.eq.s32.totalorder %s18, 1
    %p41 = por %p39, %p40
    %p43 = scmp.ne.s32.totalorder %s26, %s42
    %p44 = scmp.eq.s32.totalorder %s18, 0
    %p45 = por %p43, %p44
    %s47 = sadd.s32 %s46, 1
    %p50 = scmp.eq.s32.totalorder %s12, 1
    %p51 = scmp.ne.s32.totalorder %s46, %s48
    %p52 = scmp.eq.s32.totalorder %s12, 0
    %p53 = por %p51, %p52
    %p54 = scmp.ne.s32.totalorder %s46, %s48
    %p55 = scmp.eq.s32.totalorder %s17, 1
    %p56 = por %p54, %p55
    %p57 = scmp.ne.s32.totalorder %s48, %s49
    %p58 = scmp.eq.s32.totalorder %s17, 0
    %p59 = por %p57, %p58
    %p60 = scmp.ne.s32.totalorder %s48, %s49
    %p61 = scmp.eq.s32.totalorder %s18, 1
    %p62 = por %p60, %p61
    %p64 = scmp.ne.s32.totalorder %s49, %s63
    %p65 = scmp.eq.s32.totalorder %s18, 0
    %p66 = por %p64, %p65
    %s68 = sadd.s32 %s67, 1
    %p71 = scmp.eq.s32.totalorder %s12, 1
    %p72 = scmp.ne.s32.totalorder %s67, %s69
    %p73 = scmp.eq.s32.totalorder %s12, 0
    %p74 = por %p72, %p73
    %p75 = scmp.ne.s32.totalorder %s67, %s69
    %p76 = scmp.eq.s32.totalorder %s17, 1
    %p77 = por %p75, %p76
    %p78 = scmp.ne.s32.totalorder %s69, %s70
    %p79 = scmp.eq.s32.totalorder %s17, 0
    %p80 = por %p78, %p79
    %p81 = scmp.ne.s32.totalorder %s69, %s70
    %p82 = scmp.eq.s32.totalorder %s18, 1
    %p83 = por %p81, %p82
    %p85 = scmp.ne.s32.totalorder %s70, %s84
    %p86 = scmp.eq.s32.totalorder %s18, 0
    %p87 = por %p85, %p86
    %s89 = sadd.s32 %s88, 1
    %p92 = scmp.eq.s32.totalorder %s12, 1
    %p93 = scmp.ne.s32.totalorder %s88, %s90
    %p94 = scmp.eq.s32.totalorder %s12, 0
    %p95 = por %p93, %p94
    %p96 = scmp.ne.s32.totalorder %s88, %s90
    %p97 = scmp.eq.s32.totalorder %s17, 1
    %p98 = por %p96, %p97
    %p99 = scmp.ne.s32.totalorder %s90, %s91
    %p100 = scmp.eq.s32.totalorder %s17, 0
    %p101 = por %p99, %p100
    %p102 = scmp.ne.s32.totalorder %s90, %s91
    %p103 = scmp.eq.s32.totalorder %s18, 1
    %p104 = por %p102, %p103
    %p106 = scmp.ne.s32.totalorder %s91, %s105
    %p107 = scmp.eq.s32.totalorder %s18, 0
    %p108 = por %p106, %p107
    %s110 = sadd.s32 %s109, 1
    %p113 = scmp.eq.s32.totalorder %s12, 1
    %p114 = scmp.ne.s32.totalorder %s109, %s111
    %p115 = scmp.eq.s32.totalorder %s12, 0
    %p116 = por %p114, %p115
    %p117 = scmp.ne.s32.totalorder %s109, %s111
    %p118 = scmp.eq.s32.totalorder %s17, 1
    %p119 = por %p117, %p118
    %p120 = scmp.ne.s32.totalorder %s111, %s112
    %p121 = scmp.eq.s32.totalorder %s17, 0
    %p122 = por %p120, %p121
    %p123 = scmp.ne.s32.totalorder %s111, %s112
    %p124 = scmp.eq.s32.totalorder %s18, 1
    %p125 = por %p123, %p124
    %p127 = scmp.ne.s32.totalorder %s112, %s126
    %p128 = scmp.eq.s32.totalorder %s18, 0
    %p129 = por %p127, %p128
    %s131 = sadd.s32 %s130, 1
    %p134 = scmp.eq.s32.totalorder %s12, 1
    %p135 = scmp.ne.s32.totalorder %s130, %s132
    %p136 = scmp.eq.s32.totalorder %s12, 0
    %p137 = por %p135, %p136
    %p138 = scmp.ne.s32.totalorder %s130, %s132
    %p139 = scmp.eq.s32.totalorder %s17, 1
    %p140 = por %p138, %p139
    %p141 = scmp.ne.s32.totalorder %s132, %s133
    %p142 = scmp.eq.s32.totalorder %s17, 0
    %p143 = por %p141, %p142
    %p144 = scmp.ne.s32.totalorder %s132, %s133
    %p145 = scmp.eq.s32.totalorder %s18, 1
    %p146 = por %p144, %p145
    %p148 = scmp.ne.s32.totalorder %s133, %s147
    %p149 = scmp.eq.s32.totalorder %s18, 0
    %p150 = por %p148, %p149
    %s151 = ssub.s32 %s12, %s19
    %p152 = scmp.eq.s32.totalorder %s151, 0
    %s154 = sadd.s32 %s153, 1
    %s155 = scalar_select %p152, %s153, %s154
    %p158 = pneg %p152
    %p159 = scmp.eq.s32.totalorder %s12, 1
    %p160 = por %p158, %p159
    %p161 = scmp.ne.s32.totalorder %s153, %s156
    %p162 = scmp.eq.s32.totalorder %s12, 0
    %p163 = por %p161, %p162
    %p164 = scmp.ne.s32.totalorder %s153, %s156
    %p165 = scmp.eq.s32.totalorder %s17, 1
    %p166 = por %p164, %p165
    %p167 = scmp.ne.s32.totalorder %s156, %s157
    %p168 = scmp.eq.s32.totalorder %s17, 0
    %p169 = por %p167, %p168
    %p170 = scmp.ne.s32.totalorder %s156, %s157
    %p171 = scmp.eq.s32.totalorder %s18, 1
    %p172 = por %p170, %p171
    %p174 = scmp.ne.s32.totalorder %s157, %s173
    %p175 = scmp.eq.s32.totalorder %s18, 0
    %p176 = por %p174, %p175
    %p177 = scmp.le.s32.totalorder 1, %s12
    %p178 = scmp.lt.s32.totalorder %s12, 3
    %p179 = pnand %p177, %p178
    %p180 = pneg %p179
    // Predicated region
    $region9: #{block_forward.5} parent=5 // pred_check
      _
    $region10: #{block_forward.5} parent=5 // pred_check_branch
      %182 = sbr.rel (%p179) target = $region12
    $region11: #{block_forward.5} parent=5 // pred_region
      %s183 = ssub.s32 %s12, 1
      // Predicated region
      $region13: #{block_forward.5} parent=11 // pred_check
        %p184 = pneg %p59
      $region14: #{block_forward.5} parent=11 // pred_check_branch
        %186 = sbr.rel (%p184) target = $region16
      $region15: #{block_forward.5} parent=11 // pred_region
        _
      $region16: #{block_forward.5} parent=11 // pred_fallthru
        _
      // Predicated region
      $region17: #{block_forward.5} parent=11 // pred_check
        %p187 = pneg %p80
      $region18: #{block_forward.5} parent=11 // pred_check_branch
        %189 = sbr.rel (%p187) target = $region20
      $region19: #{block_forward.5} parent=11 // pred_region
        _
      $region20: #{block_forward.5} parent=11 // pred_fallthru
        _
      // Predicated region
      $region21: #{block_forward.5} parent=11 // pred_check
        %p190 = pneg %p101
      $region22: #{block_forward.5} parent=11 // pred_check_branch
        %192 = sbr.rel (%p190) target = $region24
      $region23: #{block_forward.5} parent=11 // pred_region
        _
      $region24: #{block_forward.5} parent=11 // pred_fallthru
        _
      // Predicated region
      $region25: #{block_forward.5} parent=11 // pred_check
        %p193 = pneg %p122
      $region26: #{block_forward.5} parent=11 // pred_check_branch
        %195 = sbr.rel (%p193) target = $region28
      $region27: #{block_forward.5} parent=11 // pred_region
        _
      $region28: #{block_forward.5} parent=11 // pred_fallthru
        _
      // Predicated region
      $region29: #{block_forward.5} parent=11 // pred_check
        %p196 = pneg %p143
      $region30: #{block_forward.5} parent=11 // pred_check_branch
        %198 = sbr.rel (%p196) target = $region32
      $region31: #{block_forward.5} parent=11 // pred_region
        _
      $region32: #{block_forward.5} parent=11 // pred_fallthru
        _
    $region12: #{block_forward.5} parent=5 // pred_fallthru
      _
    %p199 = scmp.lt.s32.totalorder %s12, 2
    // Predicated region
    $region33: #{block_forward.5} parent=5 // pred_check
      %p200 = pneg %p199
    $region34: #{block_forward.5} parent=5 // pred_check_branch
      %202 = sbr.rel (%p200) target = $region36
    $region35: #{block_forward.5} parent=5 // pred_region
      // Predicated region
      $region37: #{block_forward.5} parent=35 // pred_check
        %p203 = pneg %p32
      $region38: #{block_forward.5} parent=35 // pred_check_branch
        %205 = sbr.rel (%p203) target = $region40
      $region39: #{block_forward.5} parent=35 // pred_region
        %p206 = scmp.lt.s32.totalorder %s12, 1
        %s207 = scalar_select %p206, %s12, 1
        %s208 = smul.addr %s207, 2
        %s209 = smul.addr %s208, 4
        %s210 = scalar_lea.vmem %s0, %s209
      $region40: #{block_forward.5} parent=35 // pred_fallthru
        _
    $region36: #{block_forward.5} parent=5 // pred_fallthru
      _
    %p211 = scmp.le.s32.totalorder 1, %s12
    %p212 = scmp.lt.s32.totalorder %s12, 3
    %p213 = pnand %p211, %p212
    %p214 = pneg %p213
    // Predicated region
    $region41: #{block_forward.5} parent=5 // pred_check
      _
    $region42: #{block_forward.5} parent=5 // pred_check_branch
      %216 = sbr.rel (%p213) target = $region44
    $region43: #{block_forward.5} parent=5 // pred_region
      %s217 = ssub.s32 %s12, 1
      %p218 = scmp.lt.s32.totalorder %s17, 1
      %s219 = scalar_select %p218, %s17, 1
      %s220 = smul.addr %s219, 2
      %s221 = smul.addr %s220, 4
      %s222 = scalar_lea.vmem %s0, %s221
      %p223 = pneg %p38
      %p224 = pneg %p35
      %p225 = pneg %p59
      %p226 = pneg %p56
      %p227 = pneg %p80
      %p228 = pneg %p77
      %p229 = pneg %p101
      %p230 = pneg %p98
      %p231 = pneg %p122
      %p232 = pneg %p119
      %p233 = pneg %p143
      %p234 = pneg %p140
      %p235 = pneg %p169
      %p236 = pneg %p166
      %p237 = scmp.lt.s32.totalorder %s17, 1
      %s238 = scalar_select %p237, %s17, 1
      %s239 = smul.addr %s238, 8
      %s240 = scalar_lea.vmem %s6, %s239
      %p241 = scmp.lt.s32.totalorder %s17, 1
      %s242 = scalar_select %p241, %s17, 1
      %s243 = smul.addr %s242, 2
      %s244 = smul.addr %s243, 4
      %s245 = scalar_lea.vmem %s0, %s244
      %p246 = scmp.lt.s32.totalorder %s17, 1
      %s247 = scalar_select %p246, %s17, 1
      %s248 = smul.addr %s247, 8
      %s249 = scalar_lea.vmem %s6, %s248
      %v251 = vld [vmem:[%s245] sm:$0xf]
      %v252 = vld [vmem:[%s245 + $0x4] sm:$0xf]
      %v253 = vunpack.c.l.bf16 %v251
      %v254 = vunpack.c.l.bf16 %v252
      %v255 = vld [vmem:[%s1] sm:$0x1]
      %v257 = vlaneseq
      %v258 = vshrl.u32 %v257, 7
      %v259 = vsub.s32 0, %v258
      %v260 = vrot.slane %v255, %v259
      %v262 = vmul.f32 %v253, %v260
      %v263 = vmul.f32 %v254, %v260
      %v264 = vld [vmem:[%s2] sm:$0x1]
      %v266 = vlaneseq
      %v267 = vshrl.u32 %v266, 7
      %v268 = vsub.s32 0, %v267
      %v269 = vrot.slane %v264, %v268
      %v271 = vadd.f32 %v262, %v269
      %v272 = vadd.f32 %v263, %v269
      %v273 = vpack.c.bf16 %v272, %v271
      %v274 = vld [vmem:[%s5] sm:$0x1]
      %v275 = vld [vmem:[%s3] sm:$0xf]
      %vm276 = vcmask 130048
      %v278 = vsel %vm276, %v275, 0
      %280 = vmatprep.subr.bf16.mxu0 0
      %281 = vmatpush1.bf16.msra.mxu0 0
      %282 = vmatprep.subr.bf16.mxu0 0
      %283 = vmatpush1.bf16.msra.mxu0 0
      %284 = vmatprep.subr.bf16.mxu0 0
      %285 = vmatpush1.bf16.msra.mxu0 0
      %286 = vmatprep.subr.bf16.mxu0 0
      %287 = vmatpush1.bf16.msra.mxu0 0
      %288 = vmatprep.subr.bf16.mxu0 0
      %289 = vmatpush1.bf16.msra.mxu0 0
      %290 = vmatprep.subr.bf16.mxu0 0
      %291 = vmatpush1.bf16.msra.mxu0 0
      %292 = vmatprep.subr.bf16.mxu0 0
      %293 = vmatpush1.bf16.msra.mxu0 0
      %294 = vmatprep.subr.bf16.mxu0 0
      %295 = vmatpush1.bf16.msra.mxu0 %v273
      %296 = vmatprep.subr.bf16.mxu0 0
      %297 = vmatpush2.bf16.msra.mxu0 0
      %298 = vmatprep.subr.bf16.mxu0 0
      %299 = vmatpush2.bf16.msra.mxu0 0
      %300 = vmatprep.subr.bf16.mxu0 0
      %301 = vmatpush2.bf16.msra.mxu0 0
      %302 = vmatprep.subr.bf16.mxu0 0
      %303 = vmatpush2.bf16.msra.mxu0 0
      %304 = vmatprep.subr.bf16.mxu0 0
      %305 = vmatpush2.bf16.msra.mxu0 0
      %306 = vmatprep.subr.bf16.mxu0 0
      %307 = vmatpush2.bf16.msra.mxu0 0
      %308 = vmatprep.subr.bf16.mxu0 0
      %309 = vmatpush2.bf16.msra.mxu0 0
      %310 = vmatprep.subr.bf16.mxu0 0
      %311 = vmatpush2.bf16.msra.mxu0 0
      %312 = vmatprep.mubr.bf16.mxu0 0
      %313 = vmatmul.mubr.bf16.gmra.mxu0 %v278
      %v314 = vpop.f32.mrf.mxu0
      %v315 = vadd.f32 0.0, %v314
      %v316 = vpop.f32.mrf.mxu0
      %v317 = vpop.f32.mrf.mxu0
      %v318 = vpop.f32.mrf.mxu0
      %319 = vdwg.mxu0
      %v320 = vpack.c.bf16 %v315, %v315
      %v321 = vld [vmem:[%s4] sm:$0xf]
      %v322 = vld [vmem:[%s4 + $0x4] sm:$0xf]
      %v323 = vld [vmem:[%s4 + $0x8] sm:$0xf]
      %v324 = vld [vmem:[%s4 + $0xc] sm:$0xf]
      %v325 = vld [vmem:[%s4 + $0x10] sm:$0xf]
      %v326 = vld [vmem:[%s4 + $0x14] sm:$0xf]
      %v327 = vld [vmem:[%s4 + $0x18] sm:$0xf]
      %v328 = vld [vmem:[%s4 + $0x1c] sm:$0xf]
      %v329 = vld [vmem:[%s4 + $0x20] sm:$0xf]
      %v330 = vld [vmem:[%s4 + $0x24] sm:$0xf]
      %v331 = vld [vmem:[%s4 + $0x28] sm:$0xf]
      %v332 = vld [vmem:[%s4 + $0x2c] sm:$0xf]
      %v333 = vld [vmem:[%s4 + $0x30] sm:$0xf]
      %v334 = vld [vmem:[%s4 + $0x34] sm:$0xf]
      %v335 = vld [vmem:[%s4 + $0x38] sm:$0xf]
      %v336 = vld [vmem:[%s4 + $0x3c] sm:$0xf]
      %s337 = scalar_lea.vmem %s3, 4
      %v338 = vld [vmem:[%s337] sm:$0xf]
      %v340 = vsel %vm276, %v338, 0
      %342 = vmatprep.subr.bf16.mxu0 0
      %343 = vmatpush1.bf16.msra.mxu0 0
      %344 = vmatprep.subr.bf16.mxu0 0
      %345 = vmatpush1.bf16.msra.mxu0 0
      %346 = vmatprep.subr.bf16.mxu0 0
      %347 = vmatpush1.bf16.msra.mxu0 0
      %348 = vmatprep.subr.bf16.mxu0 0
      %349 = vmatpush1.bf16.msra.mxu0 0
      %350 = vmatprep.subr.bf16.mxu0 0
      %351 = vmatpush1.bf16.msra.mxu0 0
      %352 = vmatprep.subr.bf16.mxu0 0
      %353 = vmatpush1.bf16.msra.mxu0 0
      %354 = vmatprep.subr.bf16.mxu0 0
      %355 = vmatpush1.bf16.msra.mxu0 0
      %356 = vmatprep.subr.bf16.mxu0 0
      %357 = vmatpush1.bf16.msra.mxu0 %v273
      %358 = vmatprep.subr.bf16.mxu0 0
      %359 = vmatpush2.bf16.msra.mxu0 0
      %360 = vmatprep.subr.bf16.mxu0 0
      %361 = vmatpush2.bf16.msra.mxu0 0
      %362 = vmatprep.subr.bf16.mxu0 0
      %363 = vmatpush2.bf16.msra.mxu0 0
      %364 = vmatprep.subr.bf16.mxu0 0
      %365 = vmatpush2.bf16.msra.mxu0 0
      %366 = vmatprep.subr.bf16.mxu0 0
      %367 = vmatpush2.bf16.msra.mxu0 0
      %368 = vmatprep.subr.bf16.mxu0 0
      %369 = vmatpush2.bf16.msra.mxu0 0
      %370 = vmatprep.subr.bf16.mxu0 0
      %371 = vmatpush2.bf16.msra.mxu0 0
      %372 = vmatprep.subr.bf16.mxu0 0
      %373 = vmatpush2.bf16.msra.mxu0 0
      %374 = vmatprep.mubr.bf16.mxu0 0
      %375 = vmatmul.mubr.bf16.gmra.mxu0 %v340
      %v376 = vpop.f32.mrf.mxu0
      %v377 = vadd.f32 0.0, %v376
      %v378 = vpop.f32.mrf.mxu0
      %v379 = vpop.f32.mrf.mxu0
      %v380 = vpop.f32.mrf.mxu0
      %381 = vdwg.mxu0
      %v382 = vpack.c.bf16 %v377, %v377
      %s383 = scalar_lea.vmem %s4, 64
      %v384 = vld [vmem:[%s383] sm:$0xf]
      %v385 = vld [vmem:[%s383 + $0x4] sm:$0xf]
      %v386 = vld [vmem:[%s383 + $0x8] sm:$0xf]
      %v387 = vld [vmem:[%s383 + $0xc] sm:$0xf]
      %v388 = vld [vmem:[%s383 + $0x10] sm:$0xf]
      %v389 = vld [vmem:[%s383 + $0x14] sm:$0xf]
      %v390 = vld [vmem:[%s383 + $0x18] sm:$0xf]
      %v391 = vld [vmem:[%s383 + $0x1c] sm:$0xf]
      %v392 = vld [vmem:[%s383 + $0x20] sm:$0xf]
      %v393 = vld [vmem:[%s383 + $0x24] sm:$0xf]
      %v394 = vld [vmem:[%s383 + $0x28] sm:$0xf]
      %v395 = vld [vmem:[%s383 + $0x2c] sm:$0xf]
      %v396 = vld [vmem:[%s383 + $0x30] sm:$0xf]
      %v397 = vld [vmem:[%s383 + $0x34] sm:$0xf]
      %v398 = vld [vmem:[%s383 + $0x38] sm:$0xf]
      %v399 = vld [vmem:[%s383 + $0x3c] sm:$0xf]
      %v416 = vunpack.c.l.b16 %v384
      %v417 = vunpack.c.l.b16 %v385
      %v418 = vunpack.c.l.b16 %v386
      %v419 = vunpack.c.l.b16 %v387
      %v420 = vunpack.c.l.b16 %v388
      %v421 = vunpack.c.l.b16 %v389
      %v422 = vunpack.c.l.b16 %v390
      %v423 = vunpack.c.l.b16 %v391
      %v424 = vunpack.c.l.b16 %v392
      %v425 = vunpack.c.l.b16 %v393
      %v426 = vunpack.c.l.b16 %v394
      %v427 = vunpack.c.l.b16 %v395
      %v428 = vunpack.c.l.b16 %v396
      %v429 = vunpack.c.l.b16 %v397
      %v430 = vunpack.c.l.b16 %v398
      %v431 = vunpack.c.l.b16 %v399
      %v432 = vpack.c.b16 %v417, %v416
      %v433 = vpack.c.b16 %v419, %v418
      %v434 = vpack.c.b16 %v421, %v420
      %v435 = vpack.c.b16 %v423, %v422
      %v436 = vpack.c.b16 %v425, %v424
      %v437 = vpack.c.b16 %v427, %v426
      %v438 = vpack.c.b16 %v429, %v428
      %v439 = vpack.c.b16 %v431, %v430
      %448 = vmatprep.subr.bf16.mxu0 0
      %449 = vmatpush1.bf16.msra.mxu0 %v439
      %450 = vmatprep.subr.bf16.mxu0 0
      %451 = vmatpush1.bf16.msra.mxu0 %v438
      %452 = vmatprep.subr.bf16.mxu0 0
      %453 = vmatpush1.bf16.msra.mxu0 %v437
      %454 = vmatprep.subr.bf16.mxu0 0
      %455 = vmatpush1.bf16.msra.mxu0 %v436
      %456 = vmatprep.subr.bf16.mxu0 0
      %457 = vmatpush1.bf16.msra.mxu0 %v435
      %458 = vmatprep.subr.bf16.mxu0 0
      %459 = vmatpush1.bf16.msra.mxu0 %v434
      %460 = vmatprep.subr.bf16.mxu0 0
      %461 = vmatpush1.bf16.msra.mxu0 %v433
      %462 = vmatprep.subr.bf16.mxu0 0
      %463 = vmatpush1.bf16.msra.mxu0 %v432
      %464 = vmatprep.subr.bf16.mxu0 0
      %465 = vmatpush2.bf16.msra.mxu0 0
      %466 = vmatprep.subr.bf16.mxu0 0
      %467 = vmatpush2.bf16.msra.mxu0 0
      %468 = vmatprep.subr.bf16.mxu0 0
      %469 = vmatpush2.bf16.msra.mxu0 0
      %470 = vmatprep.subr.bf16.mxu0 0
      %471 = vmatpush2.bf16.msra.mxu0 0
      %472 = vmatprep.subr.bf16.mxu0 0
      %473 = vmatpush2.bf16.msra.mxu0 0
      %474 = vmatprep.subr.bf16.mxu0 0
      %475 = vmatpush2.bf16.msra.mxu0 0
      %476 = vmatprep.subr.bf16.mxu0 0
      %477 = vmatpush2.bf16.msra.mxu0 0
      %478 = vmatprep.subr.bf16.mxu0 0
      %479 = vmatpush2.bf16.msra.mxu0 0
      %480 = vmatprep.mubr.bf16.mxu0 0
      %481 = vmatmul.mubr.bf16.gmra.mxu0 %v382
      %v482 = vpop.f32.mrf.mxu0
      %v483 = vadd.f32 0.0, %v482
      %v484 = vpop.f32.mrf.mxu0
      %v485 = vpop.f32.mrf.mxu0
      %v486 = vpop.f32.mrf.mxu0
      %487 = vdwg.mxu0
      %v504 = vunpack.c.l.b16 %v321
      %v505 = vunpack.c.l.b16 %v322
      %v506 = vunpack.c.l.b16 %v323
      %v507 = vunpack.c.l.b16 %v324
      %v508 = vunpack.c.l.b16 %v325
      %v509 = vunpack.c.l.b16 %v326
      %v510 = vunpack.c.l.b16 %v327
      %v511 = vunpack.c.l.b16 %v328
      %v512 = vunpack.c.l.b16 %v329
      %v513 = vunpack.c.l.b16 %v330
      %v514 = vunpack.c.l.b16 %v331
      %v515 = vunpack.c.l.b16 %v332
      %v516 = vunpack.c.l.b16 %v333
      %v517 = vunpack.c.l.b16 %v334
      %v518 = vunpack.c.l.b16 %v335
      %v519 = vunpack.c.l.b16 %v336
      %v520 = vpack.c.b16 %v505, %v504
      %v521 = vpack.c.b16 %v507, %v506
      %v522 = vpack.c.b16 %v509, %v508
      %v523 = vpack.c.b16 %v511, %v510
      %v524 = vpack.c.b16 %v513, %v512
      %v525 = vpack.c.b16 %v515, %v514
      %v526 = vpack.c.b16 %v517, %v516
      %v527 = vpack.c.b16 %v519, %v518
      %536 = vmatprep.subr.bf16.mxu0 0
      %537 = vmatpush1.bf16.msra.mxu0 %v527
      %538 = vmatprep.subr.bf16.mxu0 0
      %539 = vmatpush1.bf16.msra.mxu0 %v526
      %540 = vmatprep.subr.bf16.mxu0 0
      %541 = vmatpush1.bf16.msra.mxu0 %v525
      %542 = vmatprep.subr.bf16.mxu0 0
      %543 = vmatpush1.bf16.msra.mxu0 %v524
      %544 = vmatprep.subr.bf16.mxu0 0
      %545 = vmatpush1.bf16.msra.mxu0 %v523
      %546 = vmatprep.subr.bf16.mxu0 0
      %547 = vmatpush1.bf16.msra.mxu0 %v522
      %548 = vmatprep.subr.bf16.mxu0 0
      %549 = vmatpush1.bf16.msra.mxu0 %v521
      %550 = vmatprep.subr.bf16.mxu0 0
      %551 = vmatpush1.bf16.msra.mxu0 %v520
      %552 = vmatprep.subr.bf16.mxu0 0
      %553 = vmatpush2.bf16.msra.mxu0 0
      %554 = vmatprep.subr.bf16.mxu0 0
      %555 = vmatpush2.bf16.msra.mxu0 0
      %556 = vmatprep.subr.bf16.mxu0 0
      %557 = vmatpush2.bf16.msra.mxu0 0
      %558 = vmatprep.subr.bf16.mxu0 0
      %559 = vmatpush2.bf16.msra.mxu0 0
      %560 = vmatprep.subr.bf16.mxu0 0
      %561 = vmatpush2.bf16.msra.mxu0 0
      %562 = vmatprep.subr.bf16.mxu0 0
      %563 = vmatpush2.bf16.msra.mxu0 0
      %564 = vmatprep.subr.bf16.mxu0 0
      %565 = vmatpush2.bf16.msra.mxu0 0
      %566 = vmatprep.subr.bf16.mxu0 0
      %567 = vmatpush2.bf16.msra.mxu0 0
      %568 = vmatprep.mubr.bf16.mxu0 0
      %569 = vmatmul.mubr.bf16.gmra.mxu0 %v320
      %v570 = vpop.f32.mrf.mxu0
      %v571 = vadd.f32 %v483, %v570
      %v572 = vpop.f32.mrf.mxu0
      %v573 = vpop.f32.mrf.mxu0
      %v574 = vpop.f32.mrf.mxu0
      %575 = vdwg.mxu0
      %s576 = scalar_lea.vmem %s3, 8
      %v577 = vld [vmem:[%s576] sm:$0xf]
      %v579 = vsel %vm276, %v577, 0
      %581 = vmatprep.subr.bf16.mxu0 0
      %582 = vmatpush1.bf16.msra.mxu0 0
      %583 = vmatprep.subr.bf16.mxu0 0
      %584 = vmatpush1.bf16.msra.mxu0 0
      %585 = vmatprep.subr.bf16.mxu0 0
      %586 = vmatpush1.bf16.msra.mxu0 0
      %587 = vmatprep.subr.bf16.mxu0 0
      %588 = vmatpush1.bf16.msra.mxu0 0
      %589 = vmatprep.subr.bf16.mxu0 0
      %590 = vmatpush1.bf16.msra.mxu0 0
      %591 = vmatprep.subr.bf16.mxu0 0
      %592 = vmatpush1.bf16.msra.mxu0 0
      %593 = vmatprep.subr.bf16.mxu0 0
      %594 = vmatpush1.bf16.msra.mxu0 0
      %595 = vmatprep.subr.bf16.mxu0 0
      %596 = vmatpush1.bf16.msra.mxu0 %v273
      %597 = vmatprep.subr.bf16.mxu0 0
      %598 = vmatpush2.bf16.msra.mxu0 0
      %599 = vmatprep.subr.bf16.mxu0 0
      %600 = vmatpush2.bf16.msra.mxu0 0
      %601 = vmatprep.subr.bf16.mxu0 0
      %602 = vmatpush2.bf16.msra.mxu0 0
      %603 = vmatprep.subr.bf16.mxu0 0
      %604 = vmatpush2.bf16.msra.mxu0 0
      %605 = vmatprep.subr.bf16.mxu0 0
      %606 = vmatpush2.bf16.msra.mxu0 0
      %607 = vmatprep.subr.bf16.mxu0 0
      %608 = vmatpush2.bf16.msra.mxu0 0
      %609 = vmatprep.subr.bf16.mxu0 0
      %610 = vmatpush2.bf16.msra.mxu0 0
      %611 = vmatprep.subr.bf16.mxu0 0
      %612 = vmatpush2.bf16.msra.mxu0 0
      %613 = vmatprep.mubr.bf16.mxu0 0
      %614 = vmatmul.mubr.bf16.gmra.mxu0 %v579
      %v615 = vpop.f32.mrf.mxu0
      %v616 = vadd.f32 0.0, %v615
      %v617 = vpop.f32.mrf.mxu0
      %v618 = vpop.f32.mrf.mxu0
      %v619 = vpop.f32.mrf.mxu0
      %620 = vdwg.mxu0
      %v621 = vpack.c.bf16 %v616, %v616
      %s622 = scalar_lea.vmem %s4, 128
      %v623 = vld [vmem:[%s622] sm:$0xf]
      %v624 = vld [vmem:[%s622 + $0x4] sm:$0xf]
      %v625 = vld [vmem:[%s622 + $0x8] sm:$0xf]
      %v626 = vld [vmem:[%s622 + $0xc] sm:$0xf]
      %v627 = vld [vmem:[%s622 + $0x10] sm:$0xf]
      %v628 = vld [vmem:[%s622 + $0x14] sm:$0xf]
      %v629 = vld [vmem:[%s622 + $0x18] sm:$0xf]
      %v630 = vld [vmem:[%s622 + $0x1c] sm:$0xf]
      %v631 = vld [vmem:[%s622 + $0x20] sm:$0xf]
      %v632 = vld [vmem:[%s622 + $0x24] sm:$0xf]
      %v633 = vld [vmem:[%s622 + $0x28] sm:$0xf]
      %v634 = vld [vmem:[%s622 + $0x2c] sm:$0xf]
      %v635 = vld [vmem:[%s622 + $0x30] sm:$0xf]
      %v636 = vld [vmem:[%s622 + $0x34] sm:$0xf]
      %v637 = vld [vmem:[%s622 + $0x38] sm:$0xf]
      %v638 = vld [vmem:[%s622 + $0x3c] sm:$0xf]
      %v655 = vunpack.c.l.b16 %v623
      %v656 = vunpack.c.l.b16 %v624
      %v657 = vunpack.c.l.b16 %v625
      %v658 = vunpack.c.l.b16 %v626
      %v659 = vunpack.c.l.b16 %v627
      %v660 = vunpack.c.l.b16 %v628
      %v661 = vunpack.c.l.b16 %v629
      %v662 = vunpack.c.l.b16 %v630
      %v663 = vunpack.c.l.b16 %v631
      %v664 = vunpack.c.l.b16 %v632
      %v665 = vunpack.c.l.b16 %v633
      %v666 = vunpack.c.l.b16 %v634
      %v667 = vunpack.c.l.b16 %v635
      %v668 = vunpack.c.l.b16 %v636
      %v669 = vunpack.c.l.b16 %v637
      %v670 = vunpack.c.l.b16 %v638
      %v671 = vpack.c.b16 %v656, %v655
      %v672 = vpack.c.b16 %v658, %v657
      %v673 = vpack.c.b16 %v660, %v659
      %v674 = vpack.c.b16 %v662, %v661
      %v675 = vpack.c.b16 %v664, %v663
      %v676 = vpack.c.b16 %v666, %v665
      %v677 = vpack.c.b16 %v668, %v667
      %v678 = vpack.c.b16 %v670, %v669
      %687 = vmatprep.subr.bf16.mxu0 0
      %688 = vmatpush1.bf16.msra.mxu0 %v678
      %689 = vmatprep.subr.bf16.mxu0 0
      %690 = vmatpush1.bf16.msra.mxu0 %v677
      %691 = vmatprep.subr.bf16.mxu0 0
      %692 = vmatpush1.bf16.msra.mxu0 %v676
      %693 = vmatprep.subr.bf16.mxu0 0
      %694 = vmatpush1.bf16.msra.mxu0 %v675
      %695 = vmatprep.subr.bf16.mxu0 0
      %696 = vmatpush1.bf16.msra.mxu0 %v674
      %697 = vmatprep.subr.bf16.mxu0 0
      %698 = vmatpush1.bf16.msra.mxu0 %v673
      %699 = vmatprep.subr.bf16.mxu0 0
      %700 = vmatpush1.bf16.msra.mxu0 %v672
      %701 = vmatprep.subr.bf16.mxu0 0
      %702 = vmatpush1.bf16.msra.mxu0 %v671
      %703 = vmatprep.subr.bf16.mxu0 0
      %704 = vmatpush2.bf16.msra.mxu0 0
      %705 = vmatprep.subr.bf16.mxu0 0
      %706 = vmatpush2.bf16.msra.mxu0 0
      %707 = vmatprep.subr.bf16.mxu0 0
      %708 = vmatpush2.bf16.msra.mxu0 0
      %709 = vmatprep.subr.bf16.mxu0 0
      %710 = vmatpush2.bf16.msra.mxu0 0
      %711 = vmatprep.subr.bf16.mxu0 0
      %712 = vmatpush2.bf16.msra.mxu0 0
      %713 = vmatprep.subr.bf16.mxu0 0
      %714 = vmatpush2.bf16.msra.mxu0 0
      %715 = vmatprep.subr.bf16.mxu0 0
      %716 = vmatpush2.bf16.msra.mxu0 0
      %717 = vmatprep.subr.bf16.mxu0 0
      %718 = vmatpush2.bf16.msra.mxu0 0
      %719 = vmatprep.mubr.bf16.mxu0 0
      %720 = vmatmul.mubr.bf16.gmra.mxu0 %v621
      %v721 = vpop.f32.mrf.mxu0
      %v722 = vadd.f32 0.0, %v721
      %v723 = vpop.f32.mrf.mxu0
      %v724 = vpop.f32.mrf.mxu0
      %v725 = vpop.f32.mrf.mxu0
      %726 = vdwg.mxu0
      %v727 = vadd.f32 %v571, %v722
      %s728 = scalar_lea.vmem %s3, 12
      %v729 = vld [vmem:[%s728] sm:$0xf]
      %v731 = vsel %vm276, %v729, 0
      %733 = vmatprep.subr.bf16.mxu0 0
      %734 = vmatpush1.bf16.msra.mxu0 0
      %735 = vmatprep.subr.bf16.mxu0 0
      %736 = vmatpush1.bf16.msra.mxu0 0
      %737 = vmatprep.subr.bf16.mxu0 0
      %738 = vmatpush1.bf16.msra.mxu0 0
      %739 = vmatprep.subr.bf16.mxu0 0
      %740 = vmatpush1.bf16.msra.mxu0 0
      %741 = vmatprep.subr.bf16.mxu0 0
      %742 = vmatpush1.bf16.msra.mxu0 0
      %743 = vmatprep.subr.bf16.mxu0 0
      %744 = vmatpush1.bf16.msra.mxu0 0
      %745 = vmatprep.subr.bf16.mxu0 0
      %746 = vmatpush1.bf16.msra.mxu0 0
      %747 = vmatprep.subr.bf16.mxu0 0
      %748 = vmatpush1.bf16.msra.mxu0 %v273
      %749 = vmatprep.subr.bf16.mxu0 0
      %750 = vmatpush2.bf16.msra.mxu0 0
      %751 = vmatprep.subr.bf16.mxu0 0
      %752 = vmatpush2.bf16.msra.mxu0 0
      %753 = vmatprep.subr.bf16.mxu0 0
      %754 = vmatpush2.bf16.msra.mxu0 0
      %755 = vmatprep.subr.bf16.mxu0 0
      %756 = vmatpush2.bf16.msra.mxu0 0
      %757 = vmatprep.subr.bf16.mxu0 0
      %758 = vmatpush2.bf16.msra.mxu0 0
      %759 = vmatprep.subr.bf16.mxu0 0
      %760 = vmatpush2.bf16.msra.mxu0 0
      %761 = vmatprep.subr.bf16.mxu0 0
      %762 = vmatpush2.bf16.msra.mxu0 0
      %763 = vmatprep.subr.bf16.mxu0 0
      %764 = vmatpush2.bf16.msra.mxu0 0
      %765 = vmatprep.mubr.bf16.mxu0 0
      %766 = vmatmul.mubr.bf16.gmra.mxu0 %v731
      %v767 = vpop.f32.mrf.mxu0
      %v768 = vadd.f32 0.0, %v767
      %v769 = vpop.f32.mrf.mxu0
      %v770 = vpop.f32.mrf.mxu0
      %v771 = vpop.f32.mrf.mxu0
      %772 = vdwg.mxu0
      %v773 = vpack.c.bf16 %v768, %v768
      %s774 = scalar_lea.vmem %s4, 192
      %v775 = vld [vmem:[%s774] sm:$0xf]
      %v776 = vld [vmem:[%s774 + $0x4] sm:$0xf]
      %v777 = vld [vmem:[%s774 + $0x8] sm:$0xf]
      %v778 = vld [vmem:[%s774 + $0xc] sm:$0xf]
      %v779 = vld [vmem:[%s774 + $0x10] sm:$0xf]
      %v780 = vld [vmem:[%s774 + $0x14] sm:$0xf]
      %v781 = vld [vmem:[%s774 + $0x18] sm:$0xf]
      %v782 = vld [vmem:[%s774 + $0x1c] sm:$0xf]
      %v783 = vld [vmem:[%s774 + $0x20] sm:$0xf]
      %v784 = vld [vmem:[%s774 + $0x24] sm:$0xf]
      %v785 = vld [vmem:[%s774 + $0x28] sm:$0xf]
      %v786 = vld [vmem:[%s774 + $0x2c] sm:$0xf]
      %v787 = vld [vmem:[%s774 + $0x30] sm:$0xf]
      %v788 = vld [vmem:[%s774 + $0x34] sm:$0xf]
      %v789 = vld [vmem:[%s774 + $0x38] sm:$0xf]
      %v790 = vld [vmem:[%s774 + $0x3c] sm:$0xf]
      %v807 = vunpack.c.l.b16 %v775
      %v808 = vunpack.c.l.b16 %v776
      %v809 = vunpack.c.l.b16 %v777
      %v810 = vunpack.c.l.b16 %v778
      %v811 = vunpack.c.l.b16 %v779
      %v812 = vunpack.c.l.b16 %v780
      %v813 = vunpack.c.l.b16 %v781
      %v814 = vunpack.c.l.b16 %v782
      %v815 = vunpack.c.l.b16 %v783
      %v816 = vunpack.c.l.b16 %v784
      %v817 = vunpack.c.l.b16 %v785
      %v818 = vunpack.c.l.b16 %v786
      %v819 = vunpack.c.l.b16 %v787
      %v820 = vunpack.c.l.b16 %v788
      %v821 = vunpack.c.l.b16 %v789
      %v822 = vunpack.c.l.b16 %v790
      %v823 = vpack.c.b16 %v808, %v807
      %v824 = vpack.c.b16 %v810, %v809
      %v825 = vpack.c.b16 %v812, %v811
      %v826 = vpack.c.b16 %v814, %v813
      %v827 = vpack.c.b16 %v816, %v815
      %v828 = vpack.c.b16 %v818, %v817
      %v829 = vpack.c.b16 %v820, %v819
      %v830 = vpack.c.b16 %v822, %v821
      %839 = vmatprep.subr.bf16.mxu0 0
      %840 = vmatpush1.bf16.msra.mxu0 %v830
      %841 = vmatprep.subr.bf16.mxu0 0
      %842 = vmatpush1.bf16.msra.mxu0 %v829
      %843 = vmatprep.subr.bf16.mxu0 0
      %844 = vmatpush1.bf16.msra.mxu0 %v828
      %845 = vmatprep.subr.bf16.mxu0 0
      %846 = vmatpush1.bf16.msra.mxu0 %v827
      %847 = vmatprep.subr.bf16.mxu0 0
      %848 = vmatpush1.bf16.msra.mxu0 %v826
      %849 = vmatprep.subr.bf16.mxu0 0
      %850 = vmatpush1.bf16.msra.mxu0 %v825
      %851 = vmatprep.subr.bf16.mxu0 0
      %852 = vmatpush1.bf16.msra.mxu0 %v824
      %853 = vmatprep.subr.bf16.mxu0 0
      %854 = vmatpush1.bf16.msra.mxu0 %v823
      %855 = vmatprep.subr.bf16.mxu0 0
      %856 = vmatpush2.bf16.msra.mxu0 0
      %857 = vmatprep.subr.bf16.mxu0 0
      %858 = vmatpush2.bf16.msra.mxu0 0
      %859 = vmatprep.subr.bf16.mxu0 0
      %860 = vmatpush2.bf16.msra.mxu0 0
      %861 = vmatprep.subr.bf16.mxu0 0
      %862 = vmatpush2.bf16.msra.mxu0 0
      %863 = vmatprep.subr.bf16.mxu0 0
      %864 = vmatpush2.bf16.msra.mxu0 0
      %865 = vmatprep.subr.bf16.mxu0 0
      %866 = vmatpush2.bf16.msra.mxu0 0
      %867 = vmatprep.subr.bf16.mxu0 0
      %868 = vmatpush2.bf16.msra.mxu0 0
      %869 = vmatprep.subr.bf16.mxu0 0
      %870 = vmatpush2.bf16.msra.mxu0 0
      %871 = vmatprep.mubr.bf16.mxu0 0
      %872 = vmatmul.mubr.bf16.gmra.mxu0 %v773
      %v873 = vpop.f32.mrf.mxu0
      %v874 = vadd.f32 0.0, %v873
      %v875 = vpop.f32.mrf.mxu0
      %v876 = vpop.f32.mrf.mxu0
      %v877 = vpop.f32.mrf.mxu0
      %878 = vdwg.mxu0
      %v879 = vadd.f32 %v727, %v874
      %v881 = vlaneseq
      %v882 = vshrl.u32 %v881, 7
      %v883 = vsub.s32 0, %v882
      %v884 = vrot.slane %v274, %v883
      %v886 = vadd.f32 %v879, %v884
      %vm887 = vcmask 523264
      %888 = vst.msk [vmem:[%s249] sm:$0xff] %vm887, %v886
      %p889 = scmp.lt.s32.totalorder %s17, 1
      %s890 = scalar_select %p889, %s17, 1
      %s891 = smul.addr %s890, 8
      %s892 = scalar_lea.vmem %s6, %s891
      // Predicated region
      $region45: #{block_forward.5} parent=43 // pred_check
        %p893 = pneg %p166
      $region46: #{block_forward.5} parent=43 // pred_check_branch
        %895 = sbr.rel (%p893) target = $region48
      $region47: #{block_forward.5} parent=43 // pred_region
        _
      $region48: #{block_forward.5} parent=43 // pred_fallthru
        _
    $region44: #{block_forward.5} parent=5 // pred_fallthru
      _
    %p896 = scmp.le.s32.totalorder 2, %s12
    // Predicated region
    $region49: #{block_forward.5} parent=5 // pred_check
      %p897 = pneg %p896
    $region50: #{block_forward.5} parent=5 // pred_check_branch
      %899 = sbr.rel (%p897) target = $region52
    $region51: #{block_forward.5} parent=5 // pred_region
      %s900 = ssub.s32 %s12, 2
      // Predicated region
      $region53: #{block_forward.5} parent=51 // pred_check
        %p901 = pneg %p172
      $region54: #{block_forward.5} parent=51 // pred_check_branch
        %903 = sbr.rel (%p901) target = $region56
      $region55: #{block_forward.5} parent=51 // pred_region
        %p904 = scmp.lt.s32.totalorder %s18, 1
        %s905 = scalar_select %p904, %s18, 1
        %s906 = smul.addr %s905, 8
        %s907 = scalar_lea.vmem %s6, %s906
      $region56: #{block_forward.5} parent=51 // pred_fallthru
        _
    $region52: #{block_forward.5} parent=5 // pred_fallthru
      _
  $region6: #{block_forward.5} parent=0 // loop_footer
    %s16 = sadd.s32 1, %s12
  $region7: #{block_forward.5} parent=0 // loop_footer_branch
    %11 = sbr.rel target = $region3
  $region8: #{block_forward.5} parent=0 // loop_exit
    _

// kernel: block_forward.3
$region0: #{block_forward.3}
  #allocation0 [shape = 'u32[]', space=smem, size = 0x4, offset = 0x4, fixed_abs, tag = 'smem constant byte address 0x4 - core index']
  #allocation1 [shape = 'u32[144,128]{1,0:T(1,128)}', space=vmem, size = 0x12000, scoped, tag = 'internal scratch']
  %s0 = inlined_call_operand.vmem [shape: bf16[2,16,64], index: 0, kind: input, shape index: {}]
  %s1 = inlined_call_operand.vmem [shape: bf16[3,16,16], index: 1, kind: input, shape index: {}]
  %s2 = inlined_call_operand.vmem [shape: bf16[3,64,128], index: 2, kind: input, shape index: {}]
  %s3 = inlined_call_operand.vmem [shape: f32[1,128], index: 3, kind: input, shape index: {}]
  %s4 = inlined_call_operand.vmem [shape: bf16[2,16,128], index: 4, kind: output, shape index: {0}]
  %s5 = inlined_call_operand.vmem [shape: f32[2,2,128], index: 5, kind: output, shape index: {1}]
  %6 = xla_tuple %s4, %s5
  %s7 = sld [smem:[#allocation0]]
  $region57: #{block_forward.3} parent=0
    _
  %s9 = ssub.s32 1, %s7
  %s10 = scalar_select 0, %s9, %s7
  loop: start=0, step=1, limit=4
  $region2: #{block_forward.3} parent=0 // loop_pre_header
    _
  $region3: #{block_forward.3} parent=0 // loop_header
    %s12 = sphi 0, %s16
    %p13 = scmp.ge.s32.totalorder %s12, 4
    %s22 = sphi 0, %s24
    %s25 = sphi 0, %s22
    %s26 = sphi 0, %s25
    %s42 = sphi 0, %s26
    %s46 = sphi 0, %s46
    %s48 = sphi 0, %s46
    %s49 = sphi 0, %s48
    %s63 = sphi 0, %s49
    %s67 = sphi 0, %s67
    %s69 = sphi 0, %s67
    %s70 = sphi 0, %s69
    %s84 = sphi 0, %s70
    %s88 = sphi 0, %s88
    %s90 = sphi 0, %s88
    %s91 = sphi 0, %s90
    %s105 = sphi 0, %s91
    %s111 = sphi 0, %s113
    %s114 = sphi 0, %s111
    %s115 = sphi 0, %s114
    %s131 = sphi 0, %s115
    %s137 = sphi 0, %s139
    %s140 = sphi 0, %s137
    %s141 = sphi 0, %s140
    %s157 = sphi 0, %s141
  $region4: #{block_forward.3} parent=0 // loop_header_branch
    %15 = sbr.rel (%p13) target = $region8
  $region5: #{block_forward.3} parent=0 // loop_body
    %s17 = ssub.s32 %s12, 1
    %s18 = ssub.s32 %s12, 2
    %s19 = sadd.s32 %s12, 1
    %s20 = ssub.s32 %s12, %s19
    %p21 = scmp.eq.s32.totalorder %s20, 0
    %s23 = sadd.s32 %s22, 1
    %s24 = scalar_select %p21, %s22, %s23
    %p27 = pneg %p21
    %p28 = scmp.eq.s32.totalorder %s12, 1
    %p29 = por %p27, %p28
    %p30 = scmp.ne.s32.totalorder %s22, %s25
    %p31 = scmp.eq.s32.totalorder %s12, 0
    %p32 = por %p30, %p31
    %p33 = scmp.ne.s32.totalorder %s22, %s25
    %p34 = scmp.eq.s32.totalorder %s17, 1
    %p35 = por %p33, %p34
    %p36 = scmp.ne.s32.totalorder %s25, %s26
    %p37 = scmp.eq.s32.totalorder %s17, 0
    %p38 = por %p36, %p37
    %p39 = scmp.ne.s32.totalorder %s25, %s26
    %p40 = scmp.eq.s32.totalorder %s18, 1
    %p41 = por %p39, %p40
    %p43 = scmp.ne.s32.totalorder %s26, %s42
    %p44 = scmp.eq.s32.totalorder %s18, 0
    %p45 = por %p43, %p44
    %s47 = sadd.s32 %s46, 1
    %p50 = scmp.eq.s32.totalorder %s12, 1
    %p51 = scmp.ne.s32.totalorder %s46, %s48
    %p52 = scmp.eq.s32.totalorder %s12, 0
    %p53 = por %p51, %p52
    %p54 = scmp.ne.s32.totalorder %s46, %s48
    %p55 = scmp.eq.s32.totalorder %s17, 1
    %p56 = por %p54, %p55
    %p57 = scmp.ne.s32.totalorder %s48, %s49
    %p58 = scmp.eq.s32.totalorder %s17, 0
    %p59 = por %p57, %p58
    %p60 = scmp.ne.s32.totalorder %s48, %s49
    %p61 = scmp.eq.s32.totalorder %s18, 1
    %p62 = por %p60, %p61
    %p64 = scmp.ne.s32.totalorder %s49, %s63
    %p65 = scmp.eq.s32.totalorder %s18, 0
    %p66 = por %p64, %p65
    %s68 = sadd.s32 %s67, 1
    %p71 = scmp.eq.s32.totalorder %s12, 1
    %p72 = scmp.ne.s32.totalorder %s67, %s69
    %p73 = scmp.eq.s32.totalorder %s12, 0
    %p74 = por %p72, %p73
    %p75 = scmp.ne.s32.totalorder %s67, %s69
    %p76 = scmp.eq.s32.totalorder %s17, 1
    %p77 = por %p75, %p76
    %p78 = scmp.ne.s32.totalorder %s69, %s70
    %p79 = scmp.eq.s32.totalorder %s17, 0
    %p80 = por %p78, %p79
    %p81 = scmp.ne.s32.totalorder %s69, %s70
    %p82 = scmp.eq.s32.totalorder %s18, 1
    %p83 = por %p81, %p82
    %p85 = scmp.ne.s32.totalorder %s70, %s84
    %p86 = scmp.eq.s32.totalorder %s18, 0
    %p87 = por %p85, %p86
    %s89 = sadd.s32 %s88, 1
    %p92 = scmp.eq.s32.totalorder %s12, 1
    %p93 = scmp.ne.s32.totalorder %s88, %s90
    %p94 = scmp.eq.s32.totalorder %s12, 0
    %p95 = por %p93, %p94
    %p96 = scmp.ne.s32.totalorder %s88, %s90
    %p97 = scmp.eq.s32.totalorder %s17, 1
    %p98 = por %p96, %p97
    %p99 = scmp.ne.s32.totalorder %s90, %s91
    %p100 = scmp.eq.s32.totalorder %s17, 0
    %p101 = por %p99, %p100
    %p102 = scmp.ne.s32.totalorder %s90, %s91
    %p103 = scmp.eq.s32.totalorder %s18, 1
    %p104 = por %p102, %p103
    %p106 = scmp.ne.s32.totalorder %s91, %s105
    %p107 = scmp.eq.s32.totalorder %s18, 0
    %p108 = por %p106, %p107
    %s109 = ssub.s32 %s12, %s19
    %p110 = scmp.eq.s32.totalorder %s109, 0
    %s112 = sadd.s32 %s111, 1
    %s113 = scalar_select %p110, %s111, %s112
    %p116 = pneg %p110
    %p117 = scmp.eq.s32.totalorder %s12, 1
    %p118 = por %p116, %p117
    %p119 = scmp.ne.s32.totalorder %s111, %s114
    %p120 = scmp.eq.s32.totalorder %s12, 0
    %p121 = por %p119, %p120
    %p122 = scmp.ne.s32.totalorder %s111, %s114
    %p123 = scmp.eq.s32.totalorder %s17, 1
    %p124 = por %p122, %p123
    %p125 = scmp.ne.s32.totalorder %s114, %s115
    %p126 = scmp.eq.s32.totalorder %s17, 0
    %p127 = por %p125, %p126
    %p128 = scmp.ne.s32.totalorder %s114, %s115
    %p129 = scmp.eq.s32.totalorder %s18, 1
    %p130 = por %p128, %p129
    %p132 = scmp.ne.s32.totalorder %s115, %s131
    %p133 = scmp.eq.s32.totalorder %s18, 0
    %p134 = por %p132, %p133
    %s135 = ssub.s32 %s12, %s19
    %p136 = scmp.eq.s32.totalorder %s135, 0
    %s138 = sadd.s32 %s137, 1
    %s139 = scalar_select %p136, %s137, %s138
    %p142 = pneg %p136
    %p143 = scmp.eq.s32.totalorder %s12, 1
    %p144 = por %p142, %p143
    %p145 = scmp.ne.s32.totalorder %s137, %s140
    %p146 = scmp.eq.s32.totalorder %s12, 0
    %p147 = por %p145, %p146
    %p148 = scmp.ne.s32.totalorder %s137, %s140
    %p149 = scmp.eq.s32.totalorder %s17, 1
    %p150 = por %p148, %p149
    %p151 = scmp.ne.s32.totalorder %s140, %s141
    %p152 = scmp.eq.s32.totalorder %s17, 0
    %p153 = por %p151, %p152
    %p154 = scmp.ne.s32.totalorder %s140, %s141
    %p155 = scmp.eq.s32.totalorder %s18, 1
    %p156 = por %p154, %p155
    %p158 = scmp.ne.s32.totalorder %s141, %s157
    %p159 = scmp.eq.s32.totalorder %s18, 0
    %p160 = por %p158, %p159
    %p161 = scmp.le.s32.totalorder 1, %s12
    %p162 = scmp.lt.s32.totalorder %s12, 3
    %p163 = pnand %p161, %p162
    %p164 = pneg %p163
    // Predicated region
    $region9: #{block_forward.3} parent=5 // pred_check
      _
    $region10: #{block_forward.3} parent=5 // pred_check_branch
      %166 = sbr.rel (%p163) target = $region12
    $region11: #{block_forward.3} parent=5 // pred_region
      %s167 = ssub.s32 %s12, 1
      // Predicated region
      $region13: #{block_forward.3} parent=11 // pred_check
        %p168 = pneg %p59
      $region14: #{block_forward.3} parent=11 // pred_check_branch
        %170 = sbr.rel (%p168) target = $region16
      $region15: #{block_forward.3} parent=11 // pred_region
        _
      $region16: #{block_forward.3} parent=11 // pred_fallthru
        _
      // Predicated region
      $region17: #{block_forward.3} parent=11 // pred_check
        %p171 = pneg %p80
      $region18: #{block_forward.3} parent=11 // pred_check_branch
        %173 = sbr.rel (%p171) target = $region20
      $region19: #{block_forward.3} parent=11 // pred_region
        _
      $region20: #{block_forward.3} parent=11 // pred_fallthru
        _
      // Predicated region
      $region21: #{block_forward.3} parent=11 // pred_check
        %p174 = pneg %p101
      $region22: #{block_forward.3} parent=11 // pred_check_branch
        %176 = sbr.rel (%p174) target = $region24
      $region23: #{block_forward.3} parent=11 // pred_region
        _
      $region24: #{block_forward.3} parent=11 // pred_fallthru
        _
    $region12: #{block_forward.3} parent=5 // pred_fallthru
      _
    %p177 = scmp.lt.s32.totalorder %s12, 2
    // Predicated region
    $region25: #{block_forward.3} parent=5 // pred_check
      %p178 = pneg %p177
    $region26: #{block_forward.3} parent=5 // pred_check_branch
      %180 = sbr.rel (%p178) target = $region28
    $region27: #{block_forward.3} parent=5 // pred_region
      // Predicated region
      $region29: #{block_forward.3} parent=27 // pred_check
        %p181 = pneg %p32
      $region30: #{block_forward.3} parent=27 // pred_check_branch
        %183 = sbr.rel (%p181) target = $region32
      $region31: #{block_forward.3} parent=27 // pred_region
        %p184 = scmp.lt.s32.totalorder %s12, 1
        %s185 = scalar_select %p184, %s12, 1
        %s186 = smul.addr %s185, 2
        %s187 = smul.addr %s186, 4
        %s188 = scalar_lea.vmem %s0, %s187
      $region32: #{block_forward.3} parent=27 // pred_fallthru
        _
    $region28: #{block_forward.3} parent=5 // pred_fallthru
      _
    %p189 = scmp.le.s32.totalorder 1, %s12
    %p190 = scmp.lt.s32.totalorder %s12, 3
    %p191 = pnand %p189, %p190
    %p192 = pneg %p191
    // Predicated region
    $region33: #{block_forward.3} parent=5 // pred_check
      _
    $region34: #{block_forward.3} parent=5 // pred_check_branch
      %194 = sbr.rel (%p191) target = $region36
    $region35: #{block_forward.3} parent=5 // pred_region
      %s195 = ssub.s32 %s12, 1
      %p196 = scmp.lt.s32.totalorder %s17, 1
      %s197 = scalar_select %p196, %s17, 1
      %s198 = smul.addr %s197, 2
      %s199 = smul.addr %s198, 4
      %s200 = scalar_lea.vmem %s0, %s199
      %p201 = pneg %p38
      %p202 = pneg %p35
      %p203 = pneg %p59
      %p204 = pneg %p56
      %p205 = pneg %p80
      %p206 = pneg %p77
      %p207 = pneg %p101
      %p208 = pneg %p98
      %p209 = pneg %p127
      %p210 = pneg %p124
      %p211 = scmp.lt.s32.totalorder %s17, 1
      %s212 = scalar_select %p211, %s17, 1
      %s213 = smul.addr %s212, 2
      %s214 = smul.addr %s213, 4
      %s215 = scalar_lea.vmem %s4, %s214
      %p216 = pneg %p153
      %p217 = pneg %p150
      %p218 = scmp.lt.s32.totalorder %s17, 1
      %s219 = scalar_select %p218, %s17, 1
      %s220 = smul.addr %s219, 2
      %s221 = scalar_lea.vmem %s5, %s220
      %p222 = scmp.lt.s32.totalorder %s17, 1
      %s223 = scalar_select %p222, %s17, 1
      %s224 = smul.addr %s223, 2
      %s225 = smul.addr %s224, 4
      %s226 = scalar_lea.vmem %s0, %s225
      %p227 = scmp.lt.s32.totalorder %s17, 1
      %s228 = scalar_select %p227, %s17, 1
      %s229 = smul.addr %s228, 2
      %s230 = smul.addr %s229, 4
      %s231 = scalar_lea.vmem %s4, %s230
      %p232 = scmp.lt.s32.totalorder %s17, 1
      %s233 = scalar_select %p232, %s17, 1
      %s234 = smul.addr %s233, 2
      %s235 = scalar_lea.vmem %s5, %s234
      %v237 = vld [vmem:[%s226] sm:$0xf]
      %v238 = vld [vmem:[%s226 + $0x4] sm:$0xf]
      %v239 = vld [vmem:[%s3] sm:$0x1]
      %v240 = vld [vmem:[%s1] sm:$0xf]
      %v241 = vld [vmem:[%s1 + $0x4] sm:$0xf]
      %v244 = vunpack.c.l.b16 %v240
      %v245 = vunpack.c.l.b16 %v241
      %v246 = vpack.c.b16 %v245, %v244
      %v249 = vunpack.c.l.b16 %v237
      %v250 = vunpack.c.l.b16 %v238
      %v251 = vpack.c.b16 %v250, %v249
      %vm253 = vcmask 130048
      %v255 = vsel %vm253, %v246, 0
      %257 = vmatprep.subr.bf16.mxu0 0
      %258 = vmatpush1.bf16.msra.mxu0 0
      %259 = vmatprep.subr.bf16.mxu0 0
      %260 = vmatpush1.bf16.msra.mxu0 0
      %261 = vmatprep.subr.bf16.mxu0 0
      %262 = vmatpush1.bf16.msra.mxu0 0
      %263 = vmatprep.subr.bf16.mxu0 0
      %264 = vmatpush1.bf16.msra.mxu0 0
      %265 = vmatprep.subr.bf16.mxu0 0
      %266 = vmatpush1.bf16.msra.mxu0 0
      %267 = vmatprep.subr.bf16.mxu0 0
      %268 = vmatpush1.bf16.msra.mxu0 0
      %269 = vmatprep.subr.bf16.mxu0 0
      %270 = vmatpush1.bf16.msra.mxu0 0
      %271 = vmatprep.subr.bf16.mxu0 0
      %272 = vmatpush1.bf16.msra.mxu0 %v251
      %273 = vmatprep.subr.bf16.mxu0 0
      %274 = vmatpush2.bf16.msra.mxu0 0
      %275 = vmatprep.subr.bf16.mxu0 0
      %276 = vmatpush2.bf16.msra.mxu0 0
      %277 = vmatprep.subr.bf16.mxu0 0
      %278 = vmatpush2.bf16.msra.mxu0 0
      %279 = vmatprep.subr.bf16.mxu0 0
      %280 = vmatpush2.bf16.msra.mxu0 0
      %281 = vmatprep.subr.bf16.mxu0 0
      %282 = vmatpush2.bf16.msra.mxu0 0
      %283 = vmatprep.subr.bf16.mxu0 0
      %284 = vmatpush2.bf16.msra.mxu0 0
      %285 = vmatprep.subr.bf16.mxu0 0
      %286 = vmatpush2.bf16.msra.mxu0 0
      %287 = vmatprep.subr.bf16.mxu0 0
      %288 = vmatpush2.bf16.msra.mxu0 0
      %289 = vmatprep.mubr.bf16.mxu0 0
      %290 = vmatmul.mubr.bf16.gmra.mxu0 %v255
      %v291 = vpop.f32.mrf.mxu0
      %v292 = vadd.f32 0.0, %v291
      %v293 = vpop.f32.mrf.mxu0
      %v294 = vpop.f32.mrf.mxu0
      %v295 = vadd.f32 0.0, %v294
      %v296 = vpop.f32.mrf.mxu0
      %297 = vdwg.mxu0
      %v298 = vpack.c.bf16 %v295, %v292
      %v299 = vld [vmem:[%s2] sm:$0xf]
      %v300 = vld [vmem:[%s2 + $0x4] sm:$0xf]
      %v301 = vld [vmem:[%s2 + $0x8] sm:$0xf]
      %v302 = vld [vmem:[%s2 + $0xc] sm:$0xf]
      %v303 = vld [vmem:[%s2 + $0x10] sm:$0xf]
      %v304 = vld [vmem:[%s2 + $0x14] sm:$0xf]
      %v305 = vld [vmem:[%s2 + $0x18] sm:$0xf]
      %v306 = vld [vmem:[%s2 + $0x1c] sm:$0xf]
      %s307 = scalar_lea.vmem %s1, 8
      %v308 = vld [vmem:[%s307] sm:$0xf]
      %v309 = vld [vmem:[%s307 + $0x4] sm:$0xf]
      %v312 = vunpack.c.l.b16 %v308
      %v313 = vunpack.c.l.b16 %v309
      %v314 = vpack.c.b16 %v313, %v312
      %v316 = vsel %vm253, %v314, 0
      %318 = vmatprep.subr.bf16.mxu0 0
      %319 = vmatpush1.bf16.msra.mxu0 0
      %320 = vmatprep.subr.bf16.mxu0 0
      %321 = vmatpush1.bf16.msra.mxu0 0
      %322 = vmatprep.subr.bf16.mxu0 0
      %323 = vmatpush1.bf16.msra.mxu0 0
      %324 = vmatprep.subr.bf16.mxu0 0
      %325 = vmatpush1.bf16.msra.mxu0 0
      %326 = vmatprep.subr.bf16.mxu0 0
      %327 = vmatpush1.bf16.msra.mxu0 0
      %328 = vmatprep.subr.bf16.mxu0 0
      %329 = vmatpush1.bf16.msra.mxu0 0
      %330 = vmatprep.subr.bf16.mxu0 0
      %331 = vmatpush1.bf16.msra.mxu0 0
      %332 = vmatprep.subr.bf16.mxu0 0
      %333 = vmatpush1.bf16.msra.mxu0 %v251
      %334 = vmatprep.subr.bf16.mxu0 0
      %335 = vmatpush2.bf16.msra.mxu0 0
      %336 = vmatprep.subr.bf16.mxu0 0
      %337 = vmatpush2.bf16.msra.mxu0 0
      %338 = vmatprep.subr.bf16.mxu0 0
      %339 = vmatpush2.bf16.msra.mxu0 0
      %340 = vmatprep.subr.bf16.mxu0 0
      %341 = vmatpush2.bf16.msra.mxu0 0
      %342 = vmatprep.subr.bf16.mxu0 0
      %343 = vmatpush2.bf16.msra.mxu0 0
      %344 = vmatprep.subr.bf16.mxu0 0
      %345 = vmatpush2.bf16.msra.mxu0 0
      %346 = vmatprep.subr.bf16.mxu0 0
      %347 = vmatpush2.bf16.msra.mxu0 0
      %348 = vmatprep.subr.bf16.mxu0 0
      %349 = vmatpush2.bf16.msra.mxu0 0
      %350 = vmatprep.mubr.bf16.mxu0 0
      %351 = vmatmul.mubr.bf16.gmra.mxu0 %v316
      %v352 = vpop.f32.mrf.mxu0
      %v353 = vadd.f32 0.0, %v352
      %v354 = vpop.f32.mrf.mxu0
      %v355 = vpop.f32.mrf.mxu0
      %v356 = vadd.f32 0.0, %v355
      %v357 = vpop.f32.mrf.mxu0
      %358 = vdwg.mxu0
      %v359 = vpack.c.bf16 %v356, %v353
      %s360 = scalar_lea.vmem %s2, 32
      %v361 = vld [vmem:[%s360] sm:$0xf]
      %v362 = vld [vmem:[%s360 + $0x4] sm:$0xf]
      %v363 = vld [vmem:[%s360 + $0x8] sm:$0xf]
      %v364 = vld [vmem:[%s360 + $0xc] sm:$0xf]
      %v365 = vld [vmem:[%s360 + $0x10] sm:$0xf]
      %v366 = vld [vmem:[%s360 + $0x14] sm:$0xf]
      %v367 = vld [vmem:[%s360 + $0x18] sm:$0xf]
      %v368 = vld [vmem:[%s360 + $0x1c] sm:$0xf]
      %v377 = vunpack.c.l.b16 %v361
      %v378 = vunpack.c.l.b16 %v362
      %v379 = vunpack.c.l.b16 %v363
      %v380 = vunpack.c.l.b16 %v364
      %v381 = vunpack.c.l.b16 %v365
      %v382 = vunpack.c.l.b16 %v366
      %v383 = vunpack.c.l.b16 %v367
      %v384 = vunpack.c.l.b16 %v368
      %v385 = vpack.c.b16 %v378, %v377
      %v386 = vpack.c.b16 %v380, %v379
      %v387 = vpack.c.b16 %v382, %v381
      %v388 = vpack.c.b16 %v384, %v383
      %vm393 = vcmask 523264
      %v395 = vsel %vm393, %v359, 0
      %397 = vmatprep.subr.bf16.mxu0 0
      %398 = vmatpush1.bf16.msra.mxu0 0
      %399 = vmatprep.subr.bf16.mxu0 0
      %400 = vmatpush1.bf16.msra.mxu0 0
      %401 = vmatprep.subr.bf16.mxu0 0
      %402 = vmatpush1.bf16.msra.mxu0 0
      %403 = vmatprep.subr.bf16.mxu0 0
      %404 = vmatpush1.bf16.msra.mxu0 0
      %405 = vmatprep.subr.bf16.mxu0 0
      %406 = vmatpush1.bf16.msra.mxu0 %v388
      %407 = vmatprep.subr.bf16.mxu0 0
      %408 = vmatpush1.bf16.msra.mxu0 %v387
      %409 = vmatprep.subr.bf16.mxu0 0
      %410 = vmatpush1.bf16.msra.mxu0 %v386
      %411 = vmatprep.subr.bf16.mxu0 0
      %412 = vmatpush1.bf16.msra.mxu0 %v385
      %413 = vmatprep.subr.bf16.mxu0 0
      %414 = vmatpush2.bf16.msra.mxu0 0
      %415 = vmatprep.subr.bf16.mxu0 0
      %416 = vmatpush2.bf16.msra.mxu0 0
      %417 = vmatprep.subr.bf16.mxu0 0
      %418 = vmatpush2.bf16.msra.mxu0 0
      %419 = vmatprep.subr.bf16.mxu0 0
      %420 = vmatpush2.bf16.msra.mxu0 0
      %421 = vmatprep.subr.bf16.mxu0 0
      %422 = vmatpush2.bf16.msra.mxu0 0
      %423 = vmatprep.subr.bf16.mxu0 0
      %424 = vmatpush2.bf16.msra.mxu0 0
      %425 = vmatprep.subr.bf16.mxu0 0
      %426 = vmatpush2.bf16.msra.mxu0 0
      %427 = vmatprep.subr.bf16.mxu0 0
      %428 = vmatpush2.bf16.msra.mxu0 0
      %429 = vmatprep.mubr.bf16.mxu0 0
      %430 = vmatmul.mubr.bf16.gmra.mxu0 %v395
      %v431 = vpop.f32.mrf.mxu0
      %v432 = vadd.f32 0.0, %v431
      %v433 = vpop.f32.mrf.mxu0
      %v434 = vpop.f32.mrf.mxu0
      %v435 = vadd.f32 0.0, %v434
      %v436 = vpop.f32.mrf.mxu0
      %437 = vdwg.mxu0
      %v446 = vunpack.c.l.b16 %v299
      %v447 = vunpack.c.l.b16 %v300
      %v448 = vunpack.c.l.b16 %v301
      %v449 = vunpack.c.l.b16 %v302
      %v450 = vunpack.c.l.b16 %v303
      %v451 = vunpack.c.l.b16 %v304
      %v452 = vunpack.c.l.b16 %v305
      %v453 = vunpack.c.l.b16 %v306
      %v454 = vpack.c.b16 %v447, %v446
      %v455 = vpack.c.b16 %v449, %v448
      %v456 = vpack.c.b16 %v451, %v450
      %v457 = vpack.c.b16 %v453, %v452
      %v463 = vsel %vm393, %v298, 0
      %465 = vmatprep.subr.bf16.mxu0 0
      %466 = vmatpush1.bf16.msra.mxu0 0
      %467 = vmatprep.subr.bf16.mxu0 0
      %468 = vmatpush1.bf16.msra.mxu0 0
      %469 = vmatprep.subr.bf16.mxu0 0
      %470 = vmatpush1.bf16.msra.mxu0 0
      %471 = vmatprep.subr.bf16.mxu0 0
      %472 = vmatpush1.bf16.msra.mxu0 0
      %473 = vmatprep.subr.bf16.mxu0 0
      %474 = vmatpush1.bf16.msra.mxu0 %v457
      %475 = vmatprep.subr.bf16.mxu0 0
      %476 = vmatpush1.bf16.msra.mxu0 %v456
      %477 = vmatprep.subr.bf16.mxu0 0
      %478 = vmatpush1.bf16.msra.mxu0 %v455
      %479 = vmatprep.subr.bf16.mxu0 0
      %480 = vmatpush1.bf16.msra.mxu0 %v454
      %481 = vmatprep.subr.bf16.mxu0 0
      %482 = vmatpush2.bf16.msra.mxu0 0
      %483 = vmatprep.subr.bf16.mxu0 0
      %484 = vmatpush2.bf16.msra.mxu0 0
      %485 = vmatprep.subr.bf16.mxu0 0
      %486 = vmatpush2.bf16.msra.mxu0 0
      %487 = vmatprep.subr.bf16.mxu0 0
      %488 = vmatpush2.bf16.msra.mxu0 0
      %489 = vmatprep.subr.bf16.mxu0 0
      %490 = vmatpush2.bf16.msra.mxu0 0
      %491 = vmatprep.subr.bf16.mxu0 0
      %492 = vmatpush2.bf16.msra.mxu0 0
      %493 = vmatprep.subr.bf16.mxu0 0
      %494 = vmatpush2.bf16.msra.mxu0 0
      %495 = vmatprep.subr.bf16.mxu0 0
      %496 = vmatpush2.bf16.msra.mxu0 0
      %497 = vmatprep.mubr.bf16.mxu0 0
      %498 = vmatmul.mubr.bf16.gmra.mxu0 %v463
      %v499 = vpop.f32.mrf.mxu0
      %v500 = vadd.f32 %v432, %v499
      %v501 = vpop.f32.mrf.mxu0
      %v502 = vpop.f32.mrf.mxu0
      %v503 = vadd.f32 %v435, %v502
      %v504 = vpop.f32.mrf.mxu0
      %505 = vdwg.mxu0
      %s506 = scalar_lea.vmem %s1, 16
      %v507 = vld [vmem:[%s506] sm:$0xf]
      %v508 = vld [vmem:[%s506 + $0x4] sm:$0xf]
      %v511 = vunpack.c.l.b16 %v507
      %v512 = vunpack.c.l.b16 %v508
      %v513 = vpack.c.b16 %v512, %v511
      %v515 = vsel %vm253, %v513, 0
      %517 = vmatprep.subr.bf16.mxu0 0
      %518 = vmatpush1.bf16.msra.mxu0 0
      %519 = vmatprep.subr.bf16.mxu0 0
      %520 = vmatpush1.bf16.msra.mxu0 0
      %521 = vmatprep.subr.bf16.mxu0 0
      %522 = vmatpush1.bf16.msra.mxu0 0
      %523 = vmatprep.subr.bf16.mxu0 0
      %524 = vmatpush1.bf16.msra.mxu0 0
      %525 = vmatprep.subr.bf16.mxu0 0
      %526 = vmatpush1.bf16.msra.mxu0 0
      %527 = vmatprep.subr.bf16.mxu0 0
      %528 = vmatpush1.bf16.msra.mxu0 0
      %529 = vmatprep.subr.bf16.mxu0 0
      %530 = vmatpush1.bf16.msra.mxu0 0
      %531 = vmatprep.subr.bf16.mxu0 0
      %532 = vmatpush1.bf16.msra.mxu0 %v251
      %533 = vmatprep.subr.bf16.mxu0 0
      %534 = vmatpush2.bf16.msra.mxu0 0
      %535 = vmatprep.subr.bf16.mxu0 0
      %536 = vmatpush2.bf16.msra.mxu0 0
      %537 = vmatprep.subr.bf16.mxu0 0
      %538 = vmatpush2.bf16.msra.mxu0 0
      %539 = vmatprep.subr.bf16.mxu0 0
      %540 = vmatpush2.bf16.msra.mxu0 0
      %541 = vmatprep.subr.bf16.mxu0 0
      %542 = vmatpush2.bf16.msra.mxu0 0
      %543 = vmatprep.subr.bf16.mxu0 0
      %544 = vmatpush2.bf16.msra.mxu0 0
      %545 = vmatprep.subr.bf16.mxu0 0
      %546 = vmatpush2.bf16.msra.mxu0 0
      %547 = vmatprep.subr.bf16.mxu0 0
      %548 = vmatpush2.bf16.msra.mxu0 0
      %549 = vmatprep.mubr.bf16.mxu0 0
      %550 = vmatmul.mubr.bf16.gmra.mxu0 %v515
      %v551 = vpop.f32.mrf.mxu0
      %v552 = vadd.f32 0.0, %v551
      %v553 = vpop.f32.mrf.mxu0
      %v554 = vpop.f32.mrf.mxu0
      %v555 = vadd.f32 0.0, %v554
      %v556 = vpop.f32.mrf.mxu0
      %557 = vdwg.mxu0
      %v558 = vpack.c.bf16 %v555, %v552
      %s559 = scalar_lea.vmem %s2, 64
      %v560 = vld [vmem:[%s559] sm:$0xf]
      %v561 = vld [vmem:[%s559 + $0x4] sm:$0xf]
      %v562 = vld [vmem:[%s559 + $0x8] sm:$0xf]
      %v563 = vld [vmem:[%s559 + $0xc] sm:$0xf]
      %v564 = vld [vmem:[%s559 + $0x10] sm:$0xf]
      %v565 = vld [vmem:[%s559 + $0x14] sm:$0xf]
      %v566 = vld [vmem:[%s559 + $0x18] sm:$0xf]
      %v567 = vld [vmem:[%s559 + $0x1c] sm:$0xf]
      %v576 = vunpack.c.l.b16 %v560
      %v577 = vunpack.c.l.b16 %v561
      %v578 = vunpack.c.l.b16 %v562
      %v579 = vunpack.c.l.b16 %v563
      %v580 = vunpack.c.l.b16 %v564
      %v581 = vunpack.c.l.b16 %v565
      %v582 = vunpack.c.l.b16 %v566
      %v583 = vunpack.c.l.b16 %v567
      %v584 = vpack.c.b16 %v577, %v576
      %v585 = vpack.c.b16 %v579, %v578
      %v586 = vpack.c.b16 %v581, %v580
      %v587 = vpack.c.b16 %v583, %v582
      %v593 = vsel %vm393, %v558, 0
      %595 = vmatprep.subr.bf16.mxu0 0
      %596 = vmatpush1.bf16.msra.mxu0 0
      %597 = vmatprep.subr.bf16.mxu0 0
      %598 = vmatpush1.bf16.msra.mxu0 0
      %599 = vmatprep.subr.bf16.mxu0 0
      %600 = vmatpush1.bf16.msra.mxu0 0
      %601 = vmatprep.subr.bf16.mxu0 0
      %602 = vmatpush1.bf16.msra.mxu0 0
      %603 = vmatprep.subr.bf16.mxu0 0
      %604 = vmatpush1.bf16.msra.mxu0 %v587
      %605 = vmatprep.subr.bf16.mxu0 0
      %606 = vmatpush1.bf16.msra.mxu0 %v586
      %607 = vmatprep.subr.bf16.mxu0 0
      %608 = vmatpush1.bf16.msra.mxu0 %v585
      %609 = vmatprep.subr.bf16.mxu0 0
      %610 = vmatpush1.bf16.msra.mxu0 %v584
      %611 = vmatprep.subr.bf16.mxu0 0
      %612 = vmatpush2.bf16.msra.mxu0 0
      %613 = vmatprep.subr.bf16.mxu0 0
      %614 = vmatpush2.bf16.msra.mxu0 0
      %615 = vmatprep.subr.bf16.mxu0 0
      %616 = vmatpush2.bf16.msra.mxu0 0
      %617 = vmatprep.subr.bf16.mxu0 0
      %618 = vmatpush2.bf16.msra.mxu0 0
      %619 = vmatprep.subr.bf16.mxu0 0
      %620 = vmatpush2.bf16.msra.mxu0 0
      %621 = vmatprep.subr.bf16.mxu0 0
      %622 = vmatpush2.bf16.msra.mxu0 0
      %623 = vmatprep.subr.bf16.mxu0 0
      %624 = vmatpush2.bf16.msra.mxu0 0
      %625 = vmatprep.subr.bf16.mxu0 0
      %626 = vmatpush2.bf16.msra.mxu0 0
      %627 = vmatprep.mubr.bf16.mxu0 0
      %628 = vmatmul.mubr.bf16.gmra.mxu0 %v593
      %v629 = vpop.f32.mrf.mxu0
      %v630 = vadd.f32 0.0, %v629
      %v631 = vpop.f32.mrf.mxu0
      %v632 = vpop.f32.mrf.mxu0
      %v633 = vadd.f32 0.0, %v632
      %v634 = vpop.f32.mrf.mxu0
      %635 = vdwg.mxu0
      %v636 = vadd.f32 %v500, %v630
      %v637 = vadd.f32 %v503, %v633
      %v639 = vlaneseq
      %v640 = vshrl.u32 %v639, 7
      %v641 = vsub.s32 0, %v640
      %v642 = vrot.slane %v239, %v641
      %v644 = vadd.f32 %v636, %v642
      %v645 = vadd.f32 %v637, %v642
      %v646 = vmax.f32 %v644, 0.0
      %v647 = vmax.f32 %v645, 0.0
      %v648 = vpack.c.bf16 %v647, %v646
      %v650 = vunpack.c.l.b16 %v648
      %v651 = vunpack.c.h.b16 %v648
      %v652 = vpack.c.b16 %v650, %v650
      %v653 = vpack.c.b16 %v651, %v651
      %656 = vst [vmem:[%s231] sm:$0xf] %v652
      %657 = vst [vmem:[%s231 + $0x4] sm:$0xf] %v653
      %v658 = vadd.f32 %v646, %v647
      %v659 = vrot.slane %v658, 4
      %v660 = vadd.f32 %v658, %v659
      %v661 = vrot.slane %v660, 2
      %v662 = vadd.f32 %v660, %v661
      %v663 = vrot.slane %v662, 1
      %v664 = vadd.f32 %v662, %v663
      %v665 = vmul.f32 %v646, %v646
      %v666 = vmul.f32 %v647, %v647
      %v667 = vadd.f32 %v665, %v666
      %v668 = vrot.slane %v667, 4
      %v669 = vadd.f32 %v667, %v668
      %v670 = vrot.slane %v669, 2
      %v671 = vadd.f32 %v669, %v670
      %v672 = vrot.slane %v671, 1
      %v673 = vadd.f32 %v671, %v672
      %vm674 = vcmask 1040384
      %v675 = vsel %vm674, %v664, %v673
      %676 = vst [vmem:[%s235] sm:$0x3] %v675
      %p677 = scmp.lt.s32.totalorder %s17, 1
      %s678 = scalar_select %p677, %s17, 1
      %s679 = smul.addr %s678, 2
      %s680 = smul.addr %s679, 4
      %s681 = scalar_lea.vmem %s4, %s680
      %p682 = scmp.lt.s32.totalorder %s17, 1
      %s683 = scalar_select %p682, %s17, 1
      %s684 = smul.addr %s683, 2
      %s685 = scalar_lea.vmem %s5, %s684
      // Predicated region
      $region37: #{block_forward.3} parent=35 // pred_check
        %p686 = pneg %p124
      $region38: #{block_forward.3} parent=35 // pred_check_branch
        %688 = sbr.rel (%p686) target = $region40
      $region39: #{block_forward.3} parent=35 // pred_region
        _
      $region40: #{block_forward.3} parent=35 // pred_fallthru
        _
      // Predicated region
      $region41: #{block_forward.3} parent=35 // pred_check
        %p689 = pneg %p150
      $region42: #{block_forward.3} parent=35 // pred_check_branch
        %691 = sbr.rel (%p689) target = $region44
      $region43: #{block_forward.3} parent=35 // pred_region
        _
      $region44: #{block_forward.3} parent=35 // pred_fallthru
        _
    $region36: #{block_forward.3} parent=5 // pred_fallthru
      _
    %p692 = scmp.le.s32.totalorder 2, %s12
    // Predicated region
    $region45: #{block_forward.3} parent=5 // pred_check
      %p693 = pneg %p692
    $region46: #{block_forward.3} parent=5 // pred_check_branch
      %695 = sbr.rel (%p693) target = $region48
    $region47: #{block_forward.3} parent=5 // pred_region
      %s696 = ssub.s32 %s12, 2
      // Predicated region
      $region49: #{block_forward.3} parent=47 // pred_check
        %p697 = pneg %p130
      $region50: #{block_forward.3} parent=47 // pred_check_branch
        %699 = sbr.rel (%p697) target = $region52
      $region51: #{block_forward.3} parent=47 // pred_region
        %p700 = scmp.lt.s32.totalorder %s18, 1
        %s701 = scalar_select %p700, %s18, 1
        %s702 = smul.addr %s701, 2
        %s703 = smul.addr %s702, 4
        %s704 = scalar_lea.vmem %s4, %s703
      $region52: #{block_forward.3} parent=47 // pred_fallthru
        _
      // Predicated region
      $region53: #{block_forward.3} parent=47 // pred_check
        %p705 = pneg %p156
      $region54: #{block_forward.3} parent=47 // pred_check_branch
        %707 = sbr.rel (%p705) target = $region56
      $region55: #{block_forward.3} parent=47 // pred_region
        %p708 = scmp.lt.s32.totalorder %s18, 1
        %s709 = scalar_select %p708, %s18, 1
        %s710 = smul.addr %s709, 2
        %s711 = scalar_lea.vmem %s5, %s710
      $region56: #{block_forward.3} parent=47 // pred_fallthru
        _
    $region48: #{block_forward.3} parent=5 // pred_fallthru
      _
  $region6: #{block_forward.3} parent=0 // loop_footer
    %s16 = sadd.s32 1, %s12
  $region7: #{block_forward.3} parent=0 // loop_footer_branch
    %11 = sbr.rel target = $region3
  $region8: #{block_forward.3} parent=0 // loop_exit
    _

// kernel: block_forward.4
$region0: #{block_forward.4}
  #allocation0 [shape = 'u32[]', space=smem, size = 0x4, offset = 0x4, fixed_abs, tag = 'smem constant byte address 0x4 - core index']
  #allocation1 [shape = 'u32[144,128]{1,0:T(1,128)}', space=vmem, size = 0x12000, scoped, tag = 'internal scratch']
  %s0 = inlined_call_operand.vmem [shape: bf16[2,16,128], index: 0, kind: input, shape index: {}]
  %s1 = inlined_call_operand.vmem [shape: f32[1,128], index: 1, kind: input, shape index: {}]
  %s2 = inlined_call_operand.vmem [shape: f32[1,128], index: 2, kind: input, shape index: {}]
  %s3 = inlined_call_operand.vmem [shape: bf16[2,1,32], index: 3, kind: input, shape index: {}]
  %s4 = inlined_call_operand.vmem [shape: bf16[32,128], index: 4, kind: input, shape index: {}]
  %s5 = inlined_call_operand.vmem [shape: f32[1,128], index: 5, kind: input, shape index: {}]
  %s6 = inlined_call_operand.vmem [shape: bf16[3,16,16], index: 6, kind: input, shape index: {}]
  %s7 = inlined_call_operand.vmem [shape: bf16[3,128,128], index: 7, kind: input, shape index: {}]
  %s8 = inlined_call_operand.vmem [shape: f32[1,128], index: 8, kind: input, shape index: {}]
  %s9 = inlined_call_operand.vmem [shape: bf16[2,16,128], index: 9, kind: output, shape index: {0}]
  %s10 = inlined_call_operand.vmem [shape: f32[2,2,128], index: 10, kind: output, shape index: {1}]
  %11 = xla_tuple %s9, %s10
  %s12 = sld [smem:[#allocation0]]
  $region77: #{block_forward.4} parent=0
    _
  %s14 = ssub.s32 1, %s12
  %s15 = scalar_select 0, %s14, %s12
  loop: start=0, step=1, limit=4
  $region2: #{block_forward.4} parent=0 // loop_pre_header
    _
  $region3: #{block_forward.4} parent=0 // loop_header
    %s17 = sphi 0, %s21
    %p18 = scmp.ge.s32.totalorder %s17, 4
    %s27 = sphi 0, %s29
    %s30 = sphi 0, %s27
    %s31 = sphi 0, %s30
    %s47 = sphi 0, %s31
    %s51 = sphi 0, %s51
    %s53 = sphi 0, %s51
    %s54 = sphi 0, %s53
    %s68 = sphi 0, %s54
    %s72 = sphi 0, %s72
    %s74 = sphi 0, %s72
    %s75 = sphi 0, %s74
    %s89 = sphi 0, %s75
    %s95 = sphi 0, %s97
    %s98 = sphi 0, %s95
    %s99 = sphi 0, %s98
    %s115 = sphi 0, %s99
    %s119 = sphi 0, %s119
    %s121 = sphi 0, %s119
    %s122 = sphi 0, %s121
    %s136 = sphi 0, %s122
    %s140 = sphi 0, %s140
    %s142 = sphi 0, %s140
    %s143 = sphi 0, %s142
    %s157 = sphi 0, %s143
    %s161 = sphi 0, %s161
    %s163 = sphi 0, %s161
    %s164 = sphi 0, %s163
    %s178 = sphi 0, %s164
    %s182 = sphi 0, %s182
    %s184 = sphi 0, %s182
    %s185 = sphi 0, %s184
    %s199 = sphi 0, %s185
    %s203 = sphi 0, %s203
    %s205 = sphi 0, %s203
    %s206 = sphi 0, %s205
    %s220 = sphi 0, %s206
    %s226 = sphi 0, %s228
    %s229 = sphi 0, %s226
    %s230 = sphi 0, %s229
    %s246 = sphi 0, %s230
    %s252 = sphi 0, %s254
    %s255 = sphi 0, %s252
    %s256 = sphi 0, %s255
    %s272 = sphi 0, %s256
  $region4: #{block_forward.4} parent=0 // loop_header_branch
    %20 = sbr.rel (%p18) target = $region8
  $region5: #{block_forward.4} parent=0 // loop_body
    %s22 = ssub.s32 %s17, 1
    %s23 = ssub.s32 %s17, 2
    %s24 = sadd.s32 %s17, 1
    %s25 = ssub.s32 %s17, %s24
    %p26 = scmp.eq.s32.totalorder %s25, 0
    %s28 = sadd.s32 %s27, 1
    %s29 = scalar_select %p26, %s27, %s28
    %p32 = pneg %p26
    %p33 = scmp.eq.s32.totalorder %s17, 1
    %p34 = por %p32, %p33
    %p35 = scmp.ne.s32.totalorder %s27, %s30
    %p36 = scmp.eq.s32.totalorder %s17, 0
    %p37 = por %p35, %p36
    %p38 = scmp.ne.s32.totalorder %s27, %s30
    %p39 = scmp.eq.s32.totalorder %s22, 1
    %p40 = por %p38, %p39
    %p41 = scmp.ne.s32.totalorder %s30, %s31
    %p42 = scmp.eq.s32.totalorder %s22, 0
    %p43 = por %p41, %p42
    %p44 = scmp.ne.s32.totalorder %s30, %s31
    %p45 = scmp.eq.s32.totalorder %s23, 1
    %p46 = por %p44, %p45
    %p48 = scmp.ne.s32.totalorder %s31, %s47
    %p49 = scmp.eq.s32.totalorder %s23, 0
    %p50 = por %p48, %p49
    %s52 = sadd.s32 %s51, 1
    %p55 = scmp.eq.s32.totalorder %s17, 1
    %p56 = scmp.ne.s32.totalorder %s51, %s53
    %p57 = scmp.eq.s32.totalorder %s17, 0
    %p58 = por %p56, %p57
    %p59 = scmp.ne.s32.totalorder %s51, %s53
    %p60 = scmp.eq.s32.totalorder %s22, 1
    %p61 = por %p59, %p60
    %p62 = scmp.ne.s32.totalorder %s53, %s54
    %p63 = scmp.eq.s32.totalorder %s22, 0
    %p64 = por %p62, %p63
    %p65 = scmp.ne.s32.totalorder %s53, %s54
    %p66 = scmp.eq.s32.totalorder %s23, 1
    %p67 = por %p65, %p66
    %p69 = scmp.ne.s32.totalorder %s54, %s68
    %p70 = scmp.eq.s32.totalorder %s23, 0
    %p71 = por %p69, %p70
    %s73 = sadd.s32 %s72, 1
    %p76 = scmp.eq.s32.totalorder %s17, 1
    %p77 = scmp.ne.s32.totalorder %s72, %s74
    %p78 = scmp.eq.s32.totalorder %s17, 0
    %p79 = por %p77, %p78
    %p80 = scmp.ne.s32.totalorder %s72, %s74
    %p81 = scmp.eq.s32.totalorder %s22, 1
    %p82 = por %p80, %p81
    %p83 = scmp.ne.s32.totalorder %s74, %s75
    %p84 = scmp.eq.s32.totalorder %s22, 0
    %p85 = por %p83, %p84
    %p86 = scmp.ne.s32.totalorder %s74, %s75
    %p87 = scmp.eq.s32.totalorder %s23, 1
    %p88 = por %p86, %p87
    %p90 = scmp.ne.s32.totalorder %s75, %s89
    %p91 = scmp.eq.s32.totalorder %s23, 0
    %p92 = por %p90, %p91
    %s93 = ssub.s32 %s17, %s24
    %p94 = scmp.eq.s32.totalorder %s93, 0
    %s96 = sadd.s32 %s95, 1
    %s97 = scalar_select %p94, %s95, %s96
    %p100 = pneg %p94
    %p101 = scmp.eq.s32.totalorder %s17, 1
    %p102 = por %p100, %p101
    %p103 = scmp.ne.s32.totalorder %s95, %s98
    %p104 = scmp.eq.s32.totalorder %s17, 0
    %p105 = por %p103, %p104
    %p106 = scmp.ne.s32.totalorder %s95, %s98
    %p107 = scmp.eq.s32.totalorder %s22, 1
    %p108 = por %p106, %p107
    %p109 = scmp.ne.s32.totalorder %s98, %s99
    %p110 = scmp.eq.s32.totalorder %s22, 0
    %p111 = por %p109, %p110
    %p112 = scmp.ne.s32.totalorder %s98, %s99
    %p113 = scmp.eq.s32.totalorder %s23, 1
    %p114 = por %p112, %p113
    %p116 = scmp.ne.s32.totalorder %s99, %s115
    %p117 = scmp.eq.s32.totalorder %s23, 0
    %p118 = por %p116, %p117
    %s120 = sadd.s32 %s119, 1
    %p123 = scmp.eq.s32.totalorder %s17, 1
    %p124 = scmp.ne.s32.totalorder %s119, %s121
    %p125 = scmp.eq.s32.totalorder %s17, 0
    %p126 = por %p124, %p125
    %p127 = scmp.ne.s32.totalorder %s119, %s121
    %p128 = scmp.eq.s32.totalorder %s22, 1
    %p129 = por %p127, %p128
    %p130 = scmp.ne.s32.totalorder %s121, %s122
    %p131 = scmp.eq.s32.totalorder %s22, 0
    %p132 = por %p130, %p131
    %p133 = scmp.ne.s32.totalorder %s121, %s122
    %p134 = scmp.eq.s32.totalorder %s23, 1
    %p135 = por %p133, %p134
    %p137 = scmp.ne.s32.totalorder %s122, %s136
    %p138 = scmp.eq.s32.totalorder %s23, 0
    %p139 = por %p137, %p138
    %s141 = sadd.s32 %s140, 1
    %p144 = scmp.eq.s32.totalorder %s17, 1
    %p145 = scmp.ne.s32.totalorder %s140, %s142
    %p146 = scmp.eq.s32.totalorder %s17, 0
    %p147 = por %p145, %p146
    %p148 = scmp.ne.s32.totalorder %s140, %s142
    %p149 = scmp.eq.s32.totalorder %s22, 1
    %p150 = por %p148, %p149
    %p151 = scmp.ne.s32.totalorder %s142, %s143
    %p152 = scmp.eq.s32.totalorder %s22, 0
    %p153 = por %p151, %p152
    %p154 = scmp.ne.s32.totalorder %s142, %s143
    %p155 = scmp.eq.s32.totalorder %s23, 1
    %p156 = por %p154, %p155
    %p158 = scmp.ne.s32.totalorder %s143, %s157
    %p159 = scmp.eq.s32.totalorder %s23, 0
    %p160 = por %p158, %p159
    %s162 = sadd.s32 %s161, 1
    %p165 = scmp.eq.s32.totalorder %s17, 1
    %p166 = scmp.ne.s32.totalorder %s161, %s163
    %p167 = scmp.eq.s32.totalorder %s17, 0
    %p168 = por %p166, %p167
    %p169 = scmp.ne.s32.totalorder %s161, %s163
    %p170 = scmp.eq.s32.totalorder %s22, 1
    %p171 = por %p169, %p170
    %p172 = scmp.ne.s32.totalorder %s163, %s164
    %p173 = scmp.eq.s32.totalorder %s22, 0
    %p174 = por %p172, %p173
    %p175 = scmp.ne.s32.totalorder %s163, %s164
    %p176 = scmp.eq.s32.totalorder %s23, 1
    %p177 = por %p175, %p176
    %p179 = scmp.ne.s32.totalorder %s164, %s178
    %p180 = scmp.eq.s32.totalorder %s23, 0
    %p181 = por %p179, %p180
    %s183 = sadd.s32 %s182, 1
    %p186 = scmp.eq.s32.totalorder %s17, 1
    %p187 = scmp.ne.s32.totalorder %s182, %s184
    %p188 = scmp.eq.s32.totalorder %s17, 0
    %p189 = por %p187, %p188
    %p190 = scmp.ne.s32.totalorder %s182, %s184
    %p191 = scmp.eq.s32.totalorder %s22, 1
    %p192 = por %p190, %p191
    %p193 = scmp.ne.s32.totalorder %s184, %s185
    %p194 = scmp.eq.s32.totalorder %s22, 0
    %p195 = por %p193, %p194
    %p196 = scmp.ne.s32.totalorder %s184, %s185
    %p197 = scmp.eq.s32.totalorder %s23, 1
    %p198 = por %p196, %p197
    %p200 = scmp.ne.s32.totalorder %s185, %s199
    %p201 = scmp.eq.s32.totalorder %s23, 0
    %p202 = por %p200, %p201
    %s204 = sadd.s32 %s203, 1
    %p207 = scmp.eq.s32.totalorder %s17, 1
    %p208 = scmp.ne.s32.totalorder %s203, %s205
    %p209 = scmp.eq.s32.totalorder %s17, 0
    %p210 = por %p208, %p209
    %p211 = scmp.ne.s32.totalorder %s203, %s205
    %p212 = scmp.eq.s32.totalorder %s22, 1
    %p213 = por %p211, %p212
    %p214 = scmp.ne.s32.totalorder %s205, %s206
    %p215 = scmp.eq.s32.totalorder %s22, 0
    %p216 = por %p214, %p215
    %p217 = scmp.ne.s32.totalorder %s205, %s206
    %p218 = scmp.eq.s32.totalorder %s23, 1
    %p219 = por %p217, %p218
    %p221 = scmp.ne.s32.totalorder %s206, %s220
    %p222 = scmp.eq.s32.totalorder %s23, 0
    %p223 = por %p221, %p222
    %s224 = ssub.s32 %s17, %s24
    %p225 = scmp.eq.s32.totalorder %s224, 0
    %s227 = sadd.s32 %s226, 1
    %s228 = scalar_select %p225, %s226, %s227
    %p231 = pneg %p225
    %p232 = scmp.eq.s32.totalorder %s17, 1
    %p233 = por %p231, %p232
    %p234 = scmp.ne.s32.totalorder %s226, %s229
    %p235 = scmp.eq.s32.totalorder %s17, 0
    %p236 = por %p234, %p235
    %p237 = scmp.ne.s32.totalorder %s226, %s229
    %p238 = scmp.eq.s32.totalorder %s22, 1
    %p239 = por %p237, %p238
    %p240 = scmp.ne.s32.totalorder %s229, %s230
    %p241 = scmp.eq.s32.totalorder %s22, 0
    %p242 = por %p240, %p241
    %p243 = scmp.ne.s32.totalorder %s229, %s230
    %p244 = scmp.eq.s32.totalorder %s23, 1
    %p245 = por %p243, %p244
    %p247 = scmp.ne.s32.totalorder %s230, %s246
    %p248 = scmp.eq.s32.totalorder %s23, 0
    %p249 = por %p247, %p248
    %s250 = ssub.s32 %s17, %s24
    %p251 = scmp.eq.s32.totalorder %s250, 0
    %s253 = sadd.s32 %s252, 1
    %s254 = scalar_select %p251, %s252, %s253
    %p257 = pneg %p251
    %p258 = scmp.eq.s32.totalorder %s17, 1
    %p259 = por %p257, %p258
    %p260 = scmp.ne.s32.totalorder %s252, %s255
    %p261 = scmp.eq.s32.totalorder %s17, 0
    %p262 = por %p260, %p261
    %p263 = scmp.ne.s32.totalorder %s252, %s255
    %p264 = scmp.eq.s32.totalorder %s22, 1
    %p265 = por %p263, %p264
    %p266 = scmp.ne.s32.totalorder %s255, %s256
    %p267 = scmp.eq.s32.totalorder %s22, 0
    %p268 = por %p266, %p267
    %p269 = scmp.ne.s32.totalorder %s255, %s256
    %p270 = scmp.eq.s32.totalorder %s23, 1
    %p271 = por %p269, %p270
    %p273 = scmp.ne.s32.totalorder %s256, %s272
    %p274 = scmp.eq.s32.totalorder %s23, 0
    %p275 = por %p273, %p274
    %p276 = scmp.le.s32.totalorder 1, %s17
    %p277 = scmp.lt.s32.totalorder %s17, 3
    %p278 = pnand %p276, %p277
    %p279 = pneg %p278
    // Predicated region
    $region9: #{block_forward.4} parent=5 // pred_check
      _
    $region10: #{block_forward.4} parent=5 // pred_check_branch
      %281 = sbr.rel (%p278) target = $region12
    $region11: #{block_forward.4} parent=5 // pred_region
      %s282 = ssub.s32 %s17, 1
      // Predicated region
      $region13: #{block_forward.4} parent=11 // pred_check
        %p283 = pneg %p64
      $region14: #{block_forward.4} parent=11 // pred_check_branch
        %285 = sbr.rel (%p283) target = $region16
      $region15: #{block_forward.4} parent=11 // pred_region
        _
      $region16: #{block_forward.4} parent=11 // pred_fallthru
        _
      // Predicated region
      $region17: #{block_forward.4} parent=11 // pred_check
        %p286 = pneg %p85
      $region18: #{block_forward.4} parent=11 // pred_check_branch
        %288 = sbr.rel (%p286) target = $region20
      $region19: #{block_forward.4} parent=11 // pred_region
        _
      $region20: #{block_forward.4} parent=11 // pred_fallthru
        _
      // Predicated region
      $region21: #{block_forward.4} parent=11 // pred_check
        %p289 = pneg %p132
      $region22: #{block_forward.4} parent=11 // pred_check_branch
        %291 = sbr.rel (%p289) target = $region24
      $region23: #{block_forward.4} parent=11 // pred_region
        _
      $region24: #{block_forward.4} parent=11 // pred_fallthru
        _
      // Predicated region
      $region25: #{block_forward.4} parent=11 // pred_check
        %p292 = pneg %p153
      $region26: #{block_forward.4} parent=11 // pred_check_branch
        %294 = sbr.rel (%p292) target = $region28
      $region27: #{block_forward.4} parent=11 // pred_region
        _
      $region28: #{block_forward.4} parent=11 // pred_fallthru
        _
      // Predicated region
      $region29: #{block_forward.4} parent=11 // pred_check
        %p295 = pneg %p174
      $region30: #{block_forward.4} parent=11 // pred_check_branch
        %297 = sbr.rel (%p295) target = $region32
      $region31: #{block_forward.4} parent=11 // pred_region
        _
      $region32: #{block_forward.4} parent=11 // pred_fallthru
        _
      // Predicated region
      $region33: #{block_forward.4} parent=11 // pred_check
        %p298 = pneg %p195
      $region34: #{block_forward.4} parent=11 // pred_check_branch
        %300 = sbr.rel (%p298) target = $region36
      $region35: #{block_forward.4} parent=11 // pred_region
        _
      $region36: #{block_forward.4} parent=11 // pred_fallthru
        _
      // Predicated region
      $region37: #{block_forward.4} parent=11 // pred_check
        %p301 = pneg %p216
      $region38: #{block_forward.4} parent=11 // pred_check_branch
        %303 = sbr.rel (%p301) target = $region40
      $region39: #{block_forward.4} parent=11 // pred_region
        _
      $region40: #{block_forward.4} parent=11 // pred_fallthru
        _
    $region12: #{block_forward.4} parent=5 // pred_fallthru
      _
    %p304 = scmp.lt.s32.totalorder %s17, 2
    // Predicated region
    $region41: #{block_forward.4} parent=5 // pred_check
      %p305 = pneg %p304
    $region42: #{block_forward.4} parent=5 // pred_check_branch
      %307 = sbr.rel (%p305) target = $region44
    $region43: #{block_forward.4} parent=5 // pred_region
      // Predicated region
      $region45: #{block_forward.4} parent=43 // pred_check
        %p308 = pneg %p37
      $region46: #{block_forward.4} parent=43 // pred_check_branch
        %310 = sbr.rel (%p308) target = $region48
      $region47: #{block_forward.4} parent=43 // pred_region
        %p311 = scmp.lt.s32.totalorder %s17, 1
        %s312 = scalar_select %p311, %s17, 1
        %s313 = smul.addr %s312, 2
        %s314 = smul.addr %s313, 4
        %s315 = scalar_lea.vmem %s0, %s314
      $region48: #{block_forward.4} parent=43 // pred_fallthru
        _
      // Predicated region
      $region49: #{block_forward.4} parent=43 // pred_check
        %p316 = pneg %p105
      $region50: #{block_forward.4} parent=43 // pred_check_branch
        %318 = sbr.rel (%p316) target = $region52
      $region51: #{block_forward.4} parent=43 // pred_region
        %p319 = scmp.lt.s32.totalorder %s17, 1
        %s320 = scalar_select %p319, %s17, 1
        %s321 = scalar_lea.vmem %s3, %s320
      $region52: #{block_forward.4} parent=43 // pred_fallthru
        _
    $region44: #{block_forward.4} parent=5 // pred_fallthru
      _
    %p322 = scmp.le.s32.totalorder 1, %s17
    %p323 = scmp.lt.s32.totalorder %s17, 3
    %p324 = pnand %p322, %p323
    %p325 = pneg %p324
    // Predicated region
    $region53: #{block_forward.4} parent=5 // pred_check
      _
    $region54: #{block_forward.4} parent=5 // pred_check_branch
      %327 = sbr.rel (%p324) target = $region56
    $region55: #{block_forward.4} parent=5 // pred_region
      %s328 = ssub.s32 %s17, 1
      %p329 = scmp.lt.s32.totalorder %s22, 1
      %s330 = scalar_select %p329, %s22, 1
      %s331 = smul.addr %s330, 2
      %s332 = smul.addr %s331, 4
      %s333 = scalar_lea.vmem %s0, %s332
      %p334 = pneg %p43
      %p335 = pneg %p40
      %p336 = pneg %p64
      %p337 = pneg %p61
      %p338 = pneg %p85
      %p339 = pneg %p82
      %p340 = scmp.lt.s32.totalorder %s22, 1
      %s341 = scalar_select %p340, %s22, 1
      %s342 = scalar_lea.vmem %s3, %s341
      %p343 = pneg %p111
      %p344 = pneg %p108
      %p345 = pneg %p132
      %p346 = pneg %p129
      %p347 = pneg %p153
      %p348 = pneg %p150
      %p349 = pneg %p174
      %p350 = pneg %p171
      %p351 = pneg %p195
      %p352 = pneg %p192
      %p353 = pneg %p216
      %p354 = pneg %p213
      %p355 = pneg %p242
      %p356 = pneg %p239
      %p357 = scmp.lt.s32.totalorder %s22, 1
      %s358 = scalar_select %p357, %s22, 1
      %s359 = smul.addr %s358, 2
      %s360 = smul.addr %s359, 4
      %s361 = scalar_lea.vmem %s9, %s360
      %p362 = pneg %p268
      %p363 = pneg %p265
      %p364 = scmp.lt.s32.totalorder %s22, 1
      %s365 = scalar_select %p364, %s22, 1
      %s366 = smul.addr %s365, 2
      %s367 = scalar_lea.vmem %s10, %s366
      %p368 = scmp.lt.s32.totalorder %s22, 1
      %s369 = scalar_select %p368, %s22, 1
      %s370 = smul.addr %s369, 2
      %s371 = smul.addr %s370, 4
      %s372 = scalar_lea.vmem %s0, %s371
      %p373 = scmp.lt.s32.totalorder %s22, 1
      %s374 = scalar_select %p373, %s22, 1
      %s375 = scalar_lea.vmem %s3, %s374
      %p376 = scmp.lt.s32.totalorder %s22, 1
      %s377 = scalar_select %p376, %s22, 1
      %s378 = smul.addr %s377, 2
      %s379 = smul.addr %s378, 4
      %s380 = scalar_lea.vmem %s9, %s379
      %p381 = scmp.lt.s32.totalorder %s22, 1
      %s382 = scalar_select %p381, %s22, 1
      %s383 = smul.addr %s382, 2
      %s384 = scalar_lea.vmem %s10, %s383
      %v386 = vld [vmem:[%s375] sm:$0x1]
      %v387 = vld [vmem:[%s4] sm:$0xf]
      %v388 = vld [vmem:[%s4 + $0x4] sm:$0xf]
      %v389 = vld [vmem:[%s4 + $0x8] sm:$0xf]
      %v390 = vld [vmem:[%s4 + $0xc] sm:$0xf]
      %v391 = vld [vmem:[%s5] sm:$0x1]
      %v396 = vunpack.c.l.b16 %v387
      %v397 = vunpack.c.l.b16 %v388
      %v398 = vunpack.c.l.b16 %v389
      %v399 = vunpack.c.l.b16 %v390
      %v400 = vpack.c.b16 %v397, %v396
      %v401 = vpack.c.b16 %v399, %v398
      %vm404 = vcmask 261120
      %v406 = vsel %vm404, %v386, 0
      %408 = vmatprep.subr.bf16.mxu0 0
      %409 = vmatpush1.bf16.msra.mxu0 0
      %410 = vmatprep.subr.bf16.mxu0 0
      %411 = vmatpush1.bf16.msra.mxu0 0
      %412 = vmatprep.subr.bf16.mxu0 0
      %413 = vmatpush1.bf16.msra.mxu0 0
      %414 = vmatprep.subr.bf16.mxu0 0
      %415 = vmatpush1.bf16.msra.mxu0 0
      %416 = vmatprep.subr.bf16.mxu0 0
      %417 = vmatpush1.bf16.msra.mxu0 0
      %418 = vmatprep.subr.bf16.mxu0 0
      %419 = vmatpush1.bf16.msra.mxu0 0
      %420 = vmatprep.subr.bf16.mxu0 0
      %421 = vmatpush1.bf16.msra.mxu0 %v401
      %422 = vmatprep.subr.bf16.mxu0 0
      %423 = vmatpush1.bf16.msra.mxu0 %v400
      %424 = vmatprep.subr.bf16.mxu0 0
      %425 = vmatpush2.bf16.msra.mxu0 0
      %426 = vmatprep.subr.bf16.mxu0 0
      %427 = vmatpush2.bf16.msra.mxu0 0
      %428 = vmatprep.subr.bf16.mxu0 0
      %429 = vmatpush2.bf16.msra.mxu0 0
      %430 = vmatprep.subr.bf16.mxu0 0
      %431 = vmatpush2.bf16.msra.mxu0 0
      %432 = vmatprep.subr.bf16.mxu0 0
      %433 = vmatpush2.bf16.msra.mxu0 0
      %434 = vmatprep.subr.bf16.mxu0 0
      %435 = vmatpush2.bf16.msra.mxu0 0
      %436 = vmatprep.subr.bf16.mxu0 0
      %437 = vmatpush2.bf16.msra.mxu0 0
      %438 = vmatprep.subr.bf16.mxu0 0
      %439 = vmatpush2.bf16.msra.mxu0 0
      %440 = vmatprep.mubr.bf16.mxu0 0
      %441 = vmatmul.mubr.bf16.gmra.mxu0 %v406
      %v442 = vpop.f32.mrf.mxu0
      %v443 = vadd.f32 %v391, %v442
      %v444 = vpop.f32.mrf.mxu0
      %v445 = vpop.f32.mrf.mxu0
      %v446 = vpop.f32.mrf.mxu0
      %447 = vdwg.mxu0
      %v448 = vmax.f32 %v443, 0.0
      %v449 = vld [vmem:[%s372] sm:$0xf]
      %v450 = vld [vmem:[%s372 + $0x4] sm:$0xf]
      %v451 = vunpack.c.l.bf16 %v449
      %v452 = vunpack.c.l.bf16 %v450
      %v453 = vld [vmem:[%s1] sm:$0x1]
      %v455 = vlaneseq
      %v456 = vshrl.u32 %v455, 7
      %v457 = vsub.s32 0, %v456
      %v458 = vrot.slane %v453, %v457
      %v460 = vmul.f32 %v451, %v458
      %v461 = vmul.f32 %v452, %v458
      %v462 = vld [vmem:[%s2] sm:$0x1]
      %v464 = vlaneseq
      %v465 = vshrl.u32 %v464, 7
      %v466 = vsub.s32 0, %v465
      %v467 = vrot.slane %v462, %v466
      %v469 = vadd.f32 %v460, %v467
      %v470 = vadd.f32 %v461, %v467
      %v471 = vlaneseq
      %v472 = vshrl.u32 %v471, 7
      %v473 = vsub.s32 0, %v472
      %v474 = vrot.slane %v448, %v473
      %v475 = vadd.f32 %v469, %v474
      %v476 = vadd.f32 %v470, %v474
      %v477 = vpack.c.bf16 %v476, %v475
      %v478 = vld [vmem:[%s8] sm:$0x1]
      %v479 = vld [vmem:[%s6] sm:$0xf]
      %v480 = vld [vmem:[%s6 + $0x4] sm:$0xf]
      %v483 = vunpack.c.l.b16 %v479
      %v484 = vunpack.c.l.b16 %v480
      %v485 = vpack.c.b16 %v484, %v483
      %vm486 = vcmask 130048
      %v488 = vsel %vm486, %v485, 0
      %490 = vmatprep.subr.bf16.mxu0 0
      %491 = vmatpush1.bf16.msra.mxu0 0
      %492 = vmatprep.subr.bf16.mxu0 0
      %493 = vmatpush1.bf16.msra.mxu0 0
      %494 = vmatprep.subr.bf16.mxu0 0
      %495 = vmatpush1.bf16.msra.mxu0 0
      %496 = vmatprep.subr.bf16.mxu0 0
      %497 = vmatpush1.bf16.msra.mxu0 0
      %498 = vmatprep.subr.bf16.mxu0 0
      %499 = vmatpush1.bf16.msra.mxu0 0
      %500 = vmatprep.subr.bf16.mxu0 0
      %501 = vmatpush1.bf16.msra.mxu0 0
      %502 = vmatprep.subr.bf16.mxu0 0
      %503 = vmatpush1.bf16.msra.mxu0 0
      %504 = vmatprep.subr.bf16.mxu0 0
      %505 = vmatpush1.bf16.msra.mxu0 %v477
      %506 = vmatprep.subr.bf16.mxu0 0
      %507 = vmatpush2.bf16.msra.mxu0 0
      %508 = vmatprep.subr.bf16.mxu0 0
      %509 = vmatpush2.bf16.msra.mxu0 0
      %510 = vmatprep.subr.bf16.mxu0 0
      %511 = vmatpush2.bf16.msra.mxu0 0
      %512 = vmatprep.subr.bf16.mxu0 0
      %513 = vmatpush2.bf16.msra.mxu0 0
      %514 = vmatprep.subr.bf16.mxu0 0
      %515 = vmatpush2.bf16.msra.mxu0 0
      %516 = vmatprep.subr.bf16.mxu0 0
      %517 = vmatpush2.bf16.msra.mxu0 0
      %518 = vmatprep.subr.bf16.mxu0 0
      %519 = vmatpush2.bf16.msra.mxu0 0
      %520 = vmatprep.subr.bf16.mxu0 0
      %521 = vmatpush2.bf16.msra.mxu0 0
      %522 = vmatprep.mubr.bf16.mxu0 0
      %523 = vmatmul.mubr.bf16.gmra.mxu0 %v488
      %v524 = vpop.f32.mrf.mxu0
      %v525 = vadd.f32 0.0, %v524
      %v526 = vpop.f32.mrf.mxu0
      %v527 = vpop.f32.mrf.mxu0
      %v528 = vadd.f32 0.0, %v527
      %v529 = vpop.f32.mrf.mxu0
      %530 = vdwg.mxu0
      %v531 = vpack.c.bf16 %v528, %v525
      %v532 = vld [vmem:[%s7] sm:$0xf]
      %v533 = vld [vmem:[%s7 + $0x4] sm:$0xf]
      %v534 = vld [vmem:[%s7 + $0x8] sm:$0xf]
      %v535 = vld [vmem:[%s7 + $0xc] sm:$0xf]
      %v536 = vld [vmem:[%s7 + $0x10] sm:$0xf]
      %v537 = vld [vmem:[%s7 + $0x14] sm:$0xf]
      %v538 = vld [vmem:[%s7 + $0x18] sm:$0xf]
      %v539 = vld [vmem:[%s7 + $0x1c] sm:$0xf]
      %v540 = vld [vmem:[%s7 + $0x20] sm:$0xf]
      %v541 = vld [vmem:[%s7 + $0x24] sm:$0xf]
      %v542 = vld [vmem:[%s7 + $0x28] sm:$0xf]
      %v543 = vld [vmem:[%s7 + $0x2c] sm:$0xf]
      %v544 = vld [vmem:[%s7 + $0x30] sm:$0xf]
      %v545 = vld [vmem:[%s7 + $0x34] sm:$0xf]
      %v546 = vld [vmem:[%s7 + $0x38] sm:$0xf]
      %v547 = vld [vmem:[%s7 + $0x3c] sm:$0xf]
      %s548 = scalar_lea.vmem %s6, 8
      %v549 = vld [vmem:[%s548] sm:$0xf]
      %v550 = vld [vmem:[%s548 + $0x4] sm:$0xf]
      %v553 = vunpack.c.l.b16 %v549
      %v554 = vunpack.c.l.b16 %v550
      %v555 = vpack.c.b16 %v554, %v553
      %v557 = vsel %vm486, %v555, 0
      %559 = vmatprep.subr.bf16.mxu0 0
      %560 = vmatpush1.bf16.msra.mxu0 0
      %561 = vmatprep.subr.bf16.mxu0 0
      %562 = vmatpush1.bf16.msra.mxu0 0
      %563 = vmatprep.subr.bf16.mxu0 0
      %564 = vmatpush1.bf16.msra.mxu0 0
      %565 = vmatprep.subr.bf16.mxu0 0
      %566 = vmatpush1.bf16.msra.mxu0 0
      %567 = vmatprep.subr.bf16.mxu0 0
      %568 = vmatpush1.bf16.msra.mxu0 0
      %569 = vmatprep.subr.bf16.mxu0 0
      %570 = vmatpush1.bf16.msra.mxu0 0
      %571 = vmatprep.subr.bf16.mxu0 0
      %572 = vmatpush1.bf16.msra.mxu0 0
      %573 = vmatprep.subr.bf16.mxu0 0
      %574 = vmatpush1.bf16.msra.mxu0 %v477
      %575 = vmatprep.subr.bf16.mxu0 0
      %576 = vmatpush2.bf16.msra.mxu0 0
      %577 = vmatprep.subr.bf16.mxu0 0
      %578 = vmatpush2.bf16.msra.mxu0 0
      %579 = vmatprep.subr.bf16.mxu0 0
      %580 = vmatpush2.bf16.msra.mxu0 0
      %581 = vmatprep.subr.bf16.mxu0 0
      %582 = vmatpush2.bf16.msra.mxu0 0
      %583 = vmatprep.subr.bf16.mxu0 0
      %584 = vmatpush2.bf16.msra.mxu0 0
      %585 = vmatprep.subr.bf16.mxu0 0
      %586 = vmatpush2.bf16.msra.mxu0 0
      %587 = vmatprep.subr.bf16.mxu0 0
      %588 = vmatpush2.bf16.msra.mxu0 0
      %589 = vmatprep.subr.bf16.mxu0 0
      %590 = vmatpush2.bf16.msra.mxu0 0
      %591 = vmatprep.mubr.bf16.mxu0 0
      %592 = vmatmul.mubr.bf16.gmra.mxu0 %v557
      %v593 = vpop.f32.mrf.mxu0
      %v594 = vadd.f32 0.0, %v593
      %v595 = vpop.f32.mrf.mxu0
      %v596 = vpop.f32.mrf.mxu0
      %v597 = vadd.f32 0.0, %v596
      %v598 = vpop.f32.mrf.mxu0
      %599 = vdwg.mxu0
      %v600 = vpack.c.bf16 %v597, %v594
      %s601 = scalar_lea.vmem %s7, 64
      %v602 = vld [vmem:[%s601] sm:$0xf]
      %v603 = vld [vmem:[%s601 + $0x4] sm:$0xf]
      %v604 = vld [vmem:[%s601 + $0x8] sm:$0xf]
      %v605 = vld [vmem:[%s601 + $0xc] sm:$0xf]
      %v606 = vld [vmem:[%s601 + $0x10] sm:$0xf]
      %v607 = vld [vmem:[%s601 + $0x14] sm:$0xf]
      %v608 = vld [vmem:[%s601 + $0x18] sm:$0xf]
      %v609 = vld [vmem:[%s601 + $0x1c] sm:$0xf]
      %v610 = vld [vmem:[%s601 + $0x20] sm:$0xf]
      %v611 = vld [vmem:[%s601 + $0x24] sm:$0xf]
      %v612 = vld [vmem:[%s601 + $0x28] sm:$0xf]
      %v613 = vld [vmem:[%s601 + $0x2c] sm:$0xf]
      %v614 = vld [vmem:[%s601 + $0x30] sm:$0xf]
      %v615 = vld [vmem:[%s601 + $0x34] sm:$0xf]
      %v616 = vld [vmem:[%s601 + $0x38] sm:$0xf]
      %v617 = vld [vmem:[%s601 + $0x3c] sm:$0xf]
      %v634 = vunpack.c.l.b16 %v602
      %v635 = vunpack.c.l.b16 %v603
      %v636 = vunpack.c.l.b16 %v604
      %v637 = vunpack.c.l.b16 %v605
      %v638 = vunpack.c.l.b16 %v606
      %v639 = vunpack.c.l.b16 %v607
      %v640 = vunpack.c.l.b16 %v608
      %v641 = vunpack.c.l.b16 %v609
      %v642 = vunpack.c.l.b16 %v610
      %v643 = vunpack.c.l.b16 %v611
      %v644 = vunpack.c.l.b16 %v612
      %v645 = vunpack.c.l.b16 %v613
      %v646 = vunpack.c.l.b16 %v614
      %v647 = vunpack.c.l.b16 %v615
      %v648 = vunpack.c.l.b16 %v616
      %v649 = vunpack.c.l.b16 %v617
      %v650 = vpack.c.b16 %v635, %v634
      %v651 = vpack.c.b16 %v637, %v636
      %v652 = vpack.c.b16 %v639, %v638
      %v653 = vpack.c.b16 %v641, %v640
      %v654 = vpack.c.b16 %v643, %v642
      %v655 = vpack.c.b16 %v645, %v644
      %v656 = vpack.c.b16 %v647, %v646
      %v657 = vpack.c.b16 %v649, %v648
      %666 = vmatprep.subr.bf16.mxu0 0
      %667 = vmatpush1.bf16.msra.mxu0 %v657
      %668 = vmatprep.subr.bf16.mxu0 0
      %669 = vmatpush1.bf16.msra.mxu0 %v656
      %670 = vmatprep.subr.bf16.mxu0 0
      %671 = vmatpush1.bf16.msra.mxu0 %v655
      %672 = vmatprep.subr.bf16.mxu0 0
      %673 = vmatpush1.bf16.msra.mxu0 %v654
      %674 = vmatprep.subr.bf16.mxu0 0
      %675 = vmatpush1.bf16.msra.mxu0 %v653
      %676 = vmatprep.subr.bf16.mxu0 0
      %677 = vmatpush1.bf16.msra.mxu0 %v652
      %678 = vmatprep.subr.bf16.mxu0 0
      %679 = vmatpush1.bf16.msra.mxu0 %v651
      %680 = vmatprep.subr.bf16.mxu0 0
      %681 = vmatpush1.bf16.msra.mxu0 %v650
      %682 = vmatprep.subr.bf16.mxu0 0
      %683 = vmatpush2.bf16.msra.mxu0 0
      %684 = vmatprep.subr.bf16.mxu0 0
      %685 = vmatpush2.bf16.msra.mxu0 0
      %686 = vmatprep.subr.bf16.mxu0 0
      %687 = vmatpush2.bf16.msra.mxu0 0
      %688 = vmatprep.subr.bf16.mxu0 0
      %689 = vmatpush2.bf16.msra.mxu0 0
      %690 = vmatprep.subr.bf16.mxu0 0
      %691 = vmatpush2.bf16.msra.mxu0 0
      %692 = vmatprep.subr.bf16.mxu0 0
      %693 = vmatpush2.bf16.msra.mxu0 0
      %694 = vmatprep.subr.bf16.mxu0 0
      %695 = vmatpush2.bf16.msra.mxu0 0
      %696 = vmatprep.subr.bf16.mxu0 0
      %697 = vmatpush2.bf16.msra.mxu0 0
      %698 = vmatprep.mubr.bf16.mxu0 0
      %699 = vmatmul.mubr.bf16.gmra.mxu0 %v600
      %v700 = vpop.f32.mrf.mxu0
      %v701 = vadd.f32 0.0, %v700
      %v702 = vpop.f32.mrf.mxu0
      %v703 = vpop.f32.mrf.mxu0
      %v704 = vadd.f32 0.0, %v703
      %v705 = vpop.f32.mrf.mxu0
      %706 = vdwg.mxu0
      %v723 = vunpack.c.l.b16 %v532
      %v724 = vunpack.c.l.b16 %v533
      %v725 = vunpack.c.l.b16 %v534
      %v726 = vunpack.c.l.b16 %v535
      %v727 = vunpack.c.l.b16 %v536
      %v728 = vunpack.c.l.b16 %v537
      %v729 = vunpack.c.l.b16 %v538
      %v730 = vunpack.c.l.b16 %v539
      %v731 = vunpack.c.l.b16 %v540
      %v732 = vunpack.c.l.b16 %v541
      %v733 = vunpack.c.l.b16 %v542
      %v734 = vunpack.c.l.b16 %v543
      %v735 = vunpack.c.l.b16 %v544
      %v736 = vunpack.c.l.b16 %v545
      %v737 = vunpack.c.l.b16 %v546
      %v738 = vunpack.c.l.b16 %v547
      %v739 = vpack.c.b16 %v724, %v723
      %v740 = vpack.c.b16 %v726, %v725
      %v741 = vpack.c.b16 %v728, %v727
      %v742 = vpack.c.b16 %v730, %v729
      %v743 = vpack.c.b16 %v732, %v731
      %v744 = vpack.c.b16 %v734, %v733
      %v745 = vpack.c.b16 %v736, %v735
      %v746 = vpack.c.b16 %v738, %v737
      %755 = vmatprep.subr.bf16.mxu0 0
      %756 = vmatpush1.bf16.msra.mxu0 %v746
      %757 = vmatprep.subr.bf16.mxu0 0
      %758 = vmatpush1.bf16.msra.mxu0 %v745
      %759 = vmatprep.subr.bf16.mxu0 0
      %760 = vmatpush1.bf16.msra.mxu0 %v744
      %761 = vmatprep.subr.bf16.mxu0 0
      %762 = vmatpush1.bf16.msra.mxu0 %v743
      %763 = vmatprep.subr.bf16.mxu0 0
      %764 = vmatpush1.bf16.msra.mxu0 %v742
      %765 = vmatprep.subr.bf16.mxu0 0
      %766 = vmatpush1.bf16.msra.mxu0 %v741
      %767 = vmatprep.subr.bf16.mxu0 0
      %768 = vmatpush1.bf16.msra.mxu0 %v740
      %769 = vmatprep.subr.bf16.mxu0 0
      %770 = vmatpush1.bf16.msra.mxu0 %v739
      %771 = vmatprep.subr.bf16.mxu0 0
      %772 = vmatpush2.bf16.msra.mxu0 0
      %773 = vmatprep.subr.bf16.mxu0 0
      %774 = vmatpush2.bf16.msra.mxu0 0
      %775 = vmatprep.subr.bf16.mxu0 0
      %776 = vmatpush2.bf16.msra.mxu0 0
      %777 = vmatprep.subr.bf16.mxu0 0
      %778 = vmatpush2.bf16.msra.mxu0 0
      %779 = vmatprep.subr.bf16.mxu0 0
      %780 = vmatpush2.bf16.msra.mxu0 0
      %781 = vmatprep.subr.bf16.mxu0 0
      %782 = vmatpush2.bf16.msra.mxu0 0
      %783 = vmatprep.subr.bf16.mxu0 0
      %784 = vmatpush2.bf16.msra.mxu0 0
      %785 = vmatprep.subr.bf16.mxu0 0
      %786 = vmatpush2.bf16.msra.mxu0 0
      %787 = vmatprep.mubr.bf16.mxu0 0
      %788 = vmatmul.mubr.bf16.gmra.mxu0 %v531
      %v789 = vpop.f32.mrf.mxu0
      %v790 = vadd.f32 %v701, %v789
      %v791 = vpop.f32.mrf.mxu0
      %v792 = vpop.f32.mrf.mxu0
      %v793 = vadd.f32 %v704, %v792
      %v794 = vpop.f32.mrf.mxu0
      %795 = vdwg.mxu0
      %s796 = scalar_lea.vmem %s6, 16
      %v797 = vld [vmem:[%s796] sm:$0xf]
      %v798 = vld [vmem:[%s796 + $0x4] sm:$0xf]
      %v801 = vunpack.c.l.b16 %v797
      %v802 = vunpack.c.l.b16 %v798
      %v803 = vpack.c.b16 %v802, %v801
      %v805 = vsel %vm486, %v803, 0
      %807 = vmatprep.subr.bf16.mxu0 0
      %808 = vmatpush1.bf16.msra.mxu0 0
      %809 = vmatprep.subr.bf16.mxu0 0
      %810 = vmatpush1.bf16.msra.mxu0 0
      %811 = vmatprep.subr.bf16.mxu0 0
      %812 = vmatpush1.bf16.msra.mxu0 0
      %813 = vmatprep.subr.bf16.mxu0 0
      %814 = vmatpush1.bf16.msra.mxu0 0
      %815 = vmatprep.subr.bf16.mxu0 0
      %816 = vmatpush1.bf16.msra.mxu0 0
      %817 = vmatprep.subr.bf16.mxu0 0
      %818 = vmatpush1.bf16.msra.mxu0 0
      %819 = vmatprep.subr.bf16.mxu0 0
      %820 = vmatpush1.bf16.msra.mxu0 0
      %821 = vmatprep.subr.bf16.mxu0 0
      %822 = vmatpush1.bf16.msra.mxu0 %v477
      %823 = vmatprep.subr.bf16.mxu0 0
      %824 = vmatpush2.bf16.msra.mxu0 0
      %825 = vmatprep.subr.bf16.mxu0 0
      %826 = vmatpush2.bf16.msra.mxu0 0
      %827 = vmatprep.subr.bf16.mxu0 0
      %828 = vmatpush2.bf16.msra.mxu0 0
      %829 = vmatprep.subr.bf16.mxu0 0
      %830 = vmatpush2.bf16.msra.mxu0 0
      %831 = vmatprep.subr.bf16.mxu0 0
      %832 = vmatpush2.bf16.msra.mxu0 0
      %833 = vmatprep.subr.bf16.mxu0 0
      %834 = vmatpush2.bf16.msra.mxu0 0
      %835 = vmatprep.subr.bf16.mxu0 0
      %836 = vmatpush2.bf16.msra.mxu0 0
      %837 = vmatprep.subr.bf16.mxu0 0
      %838 = vmatpush2.bf16.msra.mxu0 0
      %839 = vmatprep.mubr.bf16.mxu0 0
      %840 = vmatmul.mubr.bf16.gmra.mxu0 %v805
      %v841 = vpop.f32.mrf.mxu0
      %v842 = vadd.f32 0.0, %v841
      %v843 = vpop.f32.mrf.mxu0
      %v844 = vpop.f32.mrf.mxu0
      %v845 = vadd.f32 0.0, %v844
      %v846 = vpop.f32.mrf.mxu0
      %847 = vdwg.mxu0
      %v848 = vpack.c.bf16 %v845, %v842
      %s849 = scalar_lea.vmem %s7, 128
      %v850 = vld [vmem:[%s849] sm:$0xf]
      %v851 = vld [vmem:[%s849 + $0x4] sm:$0xf]
      %v852 = vld [vmem:[%s849 + $0x8] sm:$0xf]
      %v853 = vld [vmem:[%s849 + $0xc] sm:$0xf]
      %v854 = vld [vmem:[%s849 + $0x10] sm:$0xf]
      %v855 = vld [vmem:[%s849 + $0x14] sm:$0xf]
      %v856 = vld [vmem:[%s849 + $0x18] sm:$0xf]
      %v857 = vld [vmem:[%s849 + $0x1c] sm:$0xf]
      %v858 = vld [vmem:[%s849 + $0x20] sm:$0xf]
      %v859 = vld [vmem:[%s849 + $0x24] sm:$0xf]
      %v860 = vld [vmem:[%s849 + $0x28] sm:$0xf]
      %v861 = vld [vmem:[%s849 + $0x2c] sm:$0xf]
      %v862 = vld [vmem:[%s849 + $0x30] sm:$0xf]
      %v863 = vld [vmem:[%s849 + $0x34] sm:$0xf]
      %v864 = vld [vmem:[%s849 + $0x38] sm:$0xf]
      %v865 = vld [vmem:[%s849 + $0x3c] sm:$0xf]
      %v882 = vunpack.c.l.b16 %v850
      %v883 = vunpack.c.l.b16 %v851
      %v884 = vunpack.c.l.b16 %v852
      %v885 = vunpack.c.l.b16 %v853
      %v886 = vunpack.c.l.b16 %v854
      %v887 = vunpack.c.l.b16 %v855
      %v888 = vunpack.c.l.b16 %v856
      %v889 = vunpack.c.l.b16 %v857
      %v890 = vunpack.c.l.b16 %v858
      %v891 = vunpack.c.l.b16 %v859
      %v892 = vunpack.c.l.b16 %v860
      %v893 = vunpack.c.l.b16 %v861
      %v894 = vunpack.c.l.b16 %v862
      %v895 = vunpack.c.l.b16 %v863
      %v896 = vunpack.c.l.b16 %v864
      %v897 = vunpack.c.l.b16 %v865
      %v898 = vpack.c.b16 %v883, %v882
      %v899 = vpack.c.b16 %v885, %v884
      %v900 = vpack.c.b16 %v887, %v886
      %v901 = vpack.c.b16 %v889, %v888
      %v902 = vpack.c.b16 %v891, %v890
      %v903 = vpack.c.b16 %v893, %v892
      %v904 = vpack.c.b16 %v895, %v894
      %v905 = vpack.c.b16 %v897, %v896
      %914 = vmatprep.subr.bf16.mxu0 0
      %915 = vmatpush1.bf16.msra.mxu0 %v905
      %916 = vmatprep.subr.bf16.mxu0 0
      %917 = vmatpush1.bf16.msra.mxu0 %v904
      %918 = vmatprep.subr.bf16.mxu0 0
      %919 = vmatpush1.bf16.msra.mxu0 %v903
      %920 = vmatprep.subr.bf16.mxu0 0
      %921 = vmatpush1.bf16.msra.mxu0 %v902
      %922 = vmatprep.subr.bf16.mxu0 0
      %923 = vmatpush1.bf16.msra.mxu0 %v901
      %924 = vmatprep.subr.bf16.mxu0 0
      %925 = vmatpush1.bf16.msra.mxu0 %v900
      %926 = vmatprep.subr.bf16.mxu0 0
      %927 = vmatpush1.bf16.msra.mxu0 %v899
      %928 = vmatprep.subr.bf16.mxu0 0
      %929 = vmatpush1.bf16.msra.mxu0 %v898
      %930 = vmatprep.subr.bf16.mxu0 0
      %931 = vmatpush2.bf16.msra.mxu0 0
      %932 = vmatprep.subr.bf16.mxu0 0
      %933 = vmatpush2.bf16.msra.mxu0 0
      %934 = vmatprep.subr.bf16.mxu0 0
      %935 = vmatpush2.bf16.msra.mxu0 0
      %936 = vmatprep.subr.bf16.mxu0 0
      %937 = vmatpush2.bf16.msra.mxu0 0
      %938 = vmatprep.subr.bf16.mxu0 0
      %939 = vmatpush2.bf16.msra.mxu0 0
      %940 = vmatprep.subr.bf16.mxu0 0
      %941 = vmatpush2.bf16.msra.mxu0 0
      %942 = vmatprep.subr.bf16.mxu0 0
      %943 = vmatpush2.bf16.msra.mxu0 0
      %944 = vmatprep.subr.bf16.mxu0 0
      %945 = vmatpush2.bf16.msra.mxu0 0
      %946 = vmatprep.mubr.bf16.mxu0 0
      %947 = vmatmul.mubr.bf16.gmra.mxu0 %v848
      %v948 = vpop.f32.mrf.mxu0
      %v949 = vadd.f32 0.0, %v948
      %v950 = vpop.f32.mrf.mxu0
      %v951 = vpop.f32.mrf.mxu0
      %v952 = vadd.f32 0.0, %v951
      %v953 = vpop.f32.mrf.mxu0
      %954 = vdwg.mxu0
      %v955 = vadd.f32 %v790, %v949
      %v956 = vadd.f32 %v793, %v952
      %v958 = vlaneseq
      %v959 = vshrl.u32 %v958, 7
      %v960 = vsub.s32 0, %v959
      %v961 = vrot.slane %v478, %v960
      %v963 = vadd.f32 %v955, %v961
      %v964 = vadd.f32 %v956, %v961
      %v965 = vmax.f32 %v963, 0.0
      %v966 = vmax.f32 %v964, 0.0
      %v967 = vpack.c.bf16 %v966, %v965
      %v969 = vunpack.c.l.b16 %v967
      %v970 = vunpack.c.h.b16 %v967
      %v971 = vpack.c.b16 %v969, %v969
      %v972 = vpack.c.b16 %v970, %v970
      %975 = vst [vmem:[%s380] sm:$0xf] %v971
      %976 = vst [vmem:[%s380 + $0x4] sm:$0xf] %v972
      %v977 = vadd.f32 %v965, %v966
      %v978 = vrot.slane %v977, 4
      %v979 = vadd.f32 %v977, %v978
      %v980 = vrot.slane %v979, 2
      %v981 = vadd.f32 %v979, %v980
      %v982 = vrot.slane %v981, 1
      %v983 = vadd.f32 %v981, %v982
      %v984 = vmul.f32 %v965, %v965
      %v985 = vmul.f32 %v966, %v966
      %v986 = vadd.f32 %v984, %v985
      %v987 = vrot.slane %v986, 4
      %v988 = vadd.f32 %v986, %v987
      %v989 = vrot.slane %v988, 2
      %v990 = vadd.f32 %v988, %v989
      %v991 = vrot.slane %v990, 1
      %v992 = vadd.f32 %v990, %v991
      %vm993 = vcmask 1040384
      %v994 = vsel %vm993, %v983, %v992
      %995 = vst [vmem:[%s384] sm:$0x3] %v994
      %p996 = scmp.lt.s32.totalorder %s22, 1
      %s997 = scalar_select %p996, %s22, 1
      %s998 = smul.addr %s997, 2
      %s999 = smul.addr %s998, 4
      %s1000 = scalar_lea.vmem %s9, %s999
      %p1001 = scmp.lt.s32.totalorder %s22, 1
      %s1002 = scalar_select %p1001, %s22, 1
      %s1003 = smul.addr %s1002, 2
      %s1004 = scalar_lea.vmem %s10, %s1003
      // Predicated region
      $region57: #{block_forward.4} parent=55 // pred_check
        %p1005 = pneg %p239
      $region58: #{block_forward.4} parent=55 // pred_check_branch
        %1007 = sbr.rel (%p1005) target = $region60
      $region59: #{block_forward.4} parent=55 // pred_region
        _
      $region60: #{block_forward.4} parent=55 // pred_fallthru
        _
      // Predicated region
      $region61: #{block_forward.4} parent=55 // pred_check
        %p1008 = pneg %p265
      $region62: #{block_forward.4} parent=55 // pred_check_branch
        %1010 = sbr.rel (%p1008) target = $region64
      $region63: #{block_forward.4} parent=55 // pred_region
        _
      $region64: #{block_forward.4} parent=55 // pred_fallthru
        _
    $region56: #{block_forward.4} parent=5 // pred_fallthru
      _
    %p1011 = scmp.le.s32.totalorder 2, %s17
    // Predicated region
    $region65: #{block_forward.4} parent=5 // pred_check
      %p1012 = pneg %p1011
    $region66: #{block_forward.4} parent=5 // pred_check_branch
      %1014 = sbr.rel (%p1012) target = $region68
    $region67: #{block_forward.4} parent=5 // pred_region
      %s1015 = ssub.s32 %s17, 2
      // Predicated region
      $region69: #{block_forward.4} parent=67 // pred_check
        %p1016 = pneg %p245
      $region70: #{block_forward.4} parent=67 // pred_check_branch
        %1018 = sbr.rel (%p1016) target = $region72
      $region71: #{block_forward.4} parent=67 // pred_region
        %p1019 = scmp.lt.s32.totalorder %s23, 1
        %s1020 = scalar_select %p1019, %s23, 1
        %s1021 = smul.addr %s1020, 2
        %s1022 = smul.addr %s1021, 4
        %s1023 = scalar_lea.vmem %s9, %s1022
      $region72: #{block_forward.4} parent=67 // pred_fallthru
        _
      // Predicated region
      $region73: #{block_forward.4} parent=67 // pred_check
        %p1024 = pneg %p271
      $region74: #{block_forward.4} parent=67 // pred_check_branch
        %1026 = sbr.rel (%p1024) target = $region76
      $region75: #{block_forward.4} parent=67 // pred_region
        %p1027 = scmp.lt.s32.totalorder %s23, 1
        %s1028 = scalar_select %p1027, %s23, 1
        %s1029 = smul.addr %s1028, 2
        %s1030 = scalar_lea.vmem %s10, %s1029
      $region76: #{block_forward.4} parent=67 // pred_fallthru
        _
    $region68: #{block_forward.4} parent=5 // pred_fallthru
      _
  $region6: #{block_forward.4} parent=0 // loop_footer
    %s21 = sadd.s32 1, %s17
  $region7: #{block_forward.4} parent=0 // loop_footer_branch
    %16 = sbr.rel target = $region3
  $region8: #{block_forward.4} parent=0 // loop_exit
    _

</llo_original>
